<compile_context>
chip_gen: v7x
topology: tpu7x:2x2x1
jax: 0.10.0
libtpu: 0.0.40
codegen_flags: <defaults>
</compile_context>

<pallas_src>
from functools import partial

import jax
import jax.numpy as jnp
from jax import lax
from jax.experimental import pallas as pl
from jax.experimental.pallas import tpu as pltpu


# ----------------------------------------------------------------------------
# Kernel
# ----------------------------------------------------------------------------
def _overlap_kernel(p_ref, b_ref, area_ref, out_ref, *, k, f_pad):
    # p_ref:    (tile_R, 8)    point rows [x, y, z, valid, 0, 0, 0, 0]
    # b_ref:    (8, 4*f_pad)   per-candidate-face matrix (resident across grid)
    # area_ref: (1, f_pad)     candidate-face areas, pre-thresholded (> 1e-6),
    #                          0 for padded faces
    # out_ref:  (1, 8, 128)    lane-dense per-tile partial sum
    P = p_ref[...]
    B = b_ref[...]

    # One skinny MXU matmul gives the three edge tests and the centroid
    # distance proxy.  HIGHEST precision keeps f32 accuracy for the sign tests.
    M = jnp.dot(P, B, precision=lax.Precision.HIGHEST,
                preferred_element_type=jnp.float32)          # (tile_R, 4*f_pad)

    uu = M[:, 0 * f_pad:1 * f_pad]
    vv = M[:, 1 * f_pad:2 * f_pad]
    ww = M[:, 2 * f_pad:3 * f_pad]
    d = M[:, 3 * f_pad:4 * f_pad]     # = |p-c|^2 - |p|^2 : same ordering as cdist

    inside = (uu >= 0.0) & (vv >= 0.0) & (ww >= 0.0)
    area_row = area_ref[...]                                  # (1, f_pad)
    inside_area = jnp.where(inside, area_row, 0.0)            # (tile_R, f_pad)
    valid = P[:, 3:4]                                         # 1.0 real row, 0.0 pad

    # k-nearest candidate faces per row via threshold select:
    #  - extract k minima on a working copy (min + invalidate only),
    #  - keep the k-th minimum,
    #  - build the selection mask once with `d <= kth`.
    # Padded faces carry a +3e38 distance bias (never selected for real rows);
    # padded rows are neutralized by the `valid` column below.
    d_work = d
    kth = jnp.full((d.shape[0], 1), jnp.inf, jnp.float32)
    for _ in range(k):                                        # k is a small static int
        kth = jnp.min(d_work, axis=-1, keepdims=True)
        d_work = jnp.where(d_work <= kth, jnp.inf, d_work)

    contrib = jnp.where(d <= kth, inside_area, 0.0)
    row_sum = jnp.sum(contrib, axis=-1, keepdims=True)        # (tile_R, 1)
    total = jnp.sum(row_sum * valid)                          # scalar, pad rows zeroed
    out_ref[...] = jnp.broadcast_to(total, out_ref.shape)


# ----------------------------------------------------------------------------
# Wrapper glue (hoisted O(F) geometry, layout, generation-aware tiling)
# ----------------------------------------------------------------------------
def _face_matrix(v0, v1, v2, f_pad):
    """Build the (8, 4*f_pad) face matrix B and the (1, f_pad) area row."""
    F = v0.shape[0]
    n = jnp.cross(v1 - v0, v2 - v0)                 # (F, 3) triangle normals
    area = 0.5 * jnp.linalg.norm(n, axis=-1)        # (F,)
    # Fold torch's `abs(area) > 1e-6` gate into the area values themselves.
    area = jnp.where(area > 1e-6, area, 0.0)
    c = (v0 + v1 + v2) / 3.0                        # centroids

    g_u = jnp.cross(n, v2 - v1)                     # (e x (p - r)) . n = p.g - r.g
    g_v = jnp.cross(n, v0 - v2)
    g_w = jnp.cross(n, v1 - v0)
    b_u = -jnp.sum(v1 * g_u, axis=-1)
    b_v = -jnp.sum(v2 * g_v, axis=-1)
    b_w = -jnp.sum(v0 * g_w, axis=-1)

    def block(vec, bias, pad_bias=0.0):
        blk = jnp.zeros((8, f_pad), jnp.float32)
        blk = blk.at[0:3, :F].set(vec.T.astype(jnp.float32))
        blk = blk.at[3, :F].set(bias.astype(jnp.float32))
        if f_pad > F:
            blk = blk.at[3, F:].set(pad_bias)       # padded faces: huge distance
        return blk

    B = jnp.concatenate(
        [block(g_u, b_u),
         block(g_v, b_v),
         block(g_w, b_w),
         block(-2.0 * c, jnp.sum(c * c, axis=-1), pad_bias=3.0e38)],
        axis=1)                                     # (8, 4*f_pad)

    area_row = jnp.zeros((1, f_pad), jnp.float32).at[0, :F].set(area)
    return B, area_row


def _sample_points(v0, v1, v2, key, num_samples):
    """Barycentric sampling, same reflection rule as the torch module."""
    F = v0.shape[0]
    ku, kv = jax.random.split(key)
    u = jax.random.uniform(ku, (F, num_samples), jnp.float32)
    v = jax.random.uniform(kv, (F, num_samples), jnp.float32)
    refl = (u + v) > 1.0
    u = jnp.where(refl, 1.0 - u, u)
    v = jnp.where(refl, 1.0 - v, v)
    w0 = 1.0 - u - v
    pts = (v0[:, None, :] * w0[..., None]
           + v1[:, None, :] * u[..., None]
           + v2[:, None, :] * v[..., None])         # (F, S, 3), face-major like torch
    return pts.reshape(-1, 3)


def _vmem_capacity_bytes():
    """Physical VMEM per TensorCore (v5e/v6e: 128 MiB, v7x: 64 MiB)."""
    try:
        return int(pltpu.get_tpu_info().vmem_capacity_bytes)
    except Exception:
        return 64 * 1024 * 1024   # conservative default = v7x


def _choose_tile_rows(n_rows, f_pad, vmem_cap):
    # Per-row intermediates: M (4*f_pad cols) + uu/vv/ww/d views + d_work copy +
    # inside / inside_area / contrib etc. ~= 14 f32 lanes of width f_pad, plus
    # the point tile's lane-padded footprint (128 lanes, x2 pipeline buffers).
    per_row = (14 * f_pad + 2 * 128) * 4
    # Resident inputs: face matrix (budgeted at 2 buffers in case single
    # buffering is unavailable) + area row + lane-dense output double buffer.
    resident = (2 * (8 * 4 * f_pad) + 2 * f_pad + 2 * 8 * 128) * 4
    budget = int(vmem_cap * 0.45) - resident        # headroom for compiler scratch
    t = (min(max(budget // per_row, 8), 4096) // 8) * 8
    t = max(t, 8)
    # Keep >= 2 grid steps so the "parallel" row axis can feed both v7x cores.
    half = (((n_rows + 1) // 2) + 7) // 8 * 8
    t = min(t, max(half, 8))
    return int(t)


def _run_pallas(P, B, area_row, *, k_eff, f_pad, tile_r, num_tiles, vmem_limit,
                single_buffer_resident):
    resident_kw = ({"pipeline_mode": pl.Buffered(1)}
                   if single_buffer_resident else {})
    return pl.pallas_call(
        partial(_overlap_kernel, k=k_eff, f_pad=f_pad),
        out_shape=jax.ShapeDtypeStruct((num_tiles, 8, 128), jnp.float32),
        grid=(num_tiles,),
        in_specs=[
            pl.BlockSpec((tile_r, 8), lambda i: (i, 0)),               # points (tiled)
            pl.BlockSpec((8, 4 * f_pad), lambda i: (0, 0), **resident_kw),  # faces
            pl.BlockSpec((1, f_pad), lambda i: (0, 0), **resident_kw),      # areas
        ],
        out_specs=pl.BlockSpec((1, 8, 128), lambda i: (i, 0, 0)),
        compiler_params=pltpu.CompilerParams(
            dimension_semantics=("parallel",),
            vmem_limit_bytes=vmem_limit,
        ),
    )(P, B, area_row)


def overlapping_triangles_loss(vertices, faces, key, *, num_samples=10, k=5):
    """vertices: (V, 3) f32, faces: (F, 3) i32. Returns scalar f32 loss."""
    F = faces.shape[0]
    if F == 0:  # matches the torch early-return
        return jnp.float32(0.0)
    k_eff = min(k, F)
    if k_eff == 0:  # torch: empty nearest set -> zero penalty
        return jnp.float32(0.0)

    vertices = vertices.astype(jnp.float32)
    v0 = vertices[faces[:, 0]]
    v1 = vertices[faces[:, 1]]
    v2 = vertices[faces[:, 2]]

    f_pad = max(128, ((F + 127) // 128) * 128)      # lane-dense candidate axis
    B, area_row = _face_matrix(v0, v1, v2, f_pad)

    pts = _sample_points(v0, v1, v2, key, num_samples)   # (N, 3), N = F*num_samples
    N = pts.shape[0]

    vmem_cap = _vmem_capacity_bytes()
    tile_r = _choose_tile_rows(N, f_pad, vmem_cap)
    n_pad = ((N + tile_r - 1) // tile_r) * tile_r
    num_tiles = n_pad // tile_r
    vmem_limit = min(vmem_cap * 3 // 4, 100 * 1024 * 1024)  # 96 MiB v5e/v6e, 48 MiB v7x

    # Point rows: [x, y, z, 1, 0, 0, 0, 0]; padded rows stay all-zero (valid=0).
    P = jnp.zeros((n_pad, 8), jnp.float32)
    P = P.at[:N, 0:3].set(pts)
    P = P.at[:N, 3].set(1.0)

    # TODO(synk): for very large F (f_pad >> VMEM budget), add an inner
    # candidate-axis grid dimension ("arbitrary") with an online top-k /
    # threshold merge in VMEM scratch so tile_r does not collapse to 8 rows.
    kwargs = dict(k_eff=k_eff, f_pad=f_pad, tile_r=tile_r, num_tiles=num_tiles,
                  vmem_limit=vmem_limit)
    try:
        partials = _run_pallas(P, B, area_row, single_buffer_resident=True, **kwargs)
    except Exception:
        # pl.Buffered(1) not accepted by this JAX build: fall back to the
        # default double-buffered pipeline for the grid-invariant inputs.
        partials = _run_pallas(P, B, area_row, single_buffer_resident=False, **kwargs)

    return jnp.sum(partials[:, 0, 0])


if __name__ == "__main__":
    key = jax.random.PRNGKey(0)
    k_vert, k_face, k_loss = jax.random.split(key, 3)

    V, F = 12, 16
    vertices = jax.random.normal(k_vert, (V, 3), jnp.float32)
    faces = jax.random.randint(k_face, (F, 3), 0, V, jnp.int32)

    loss = overlapping_triangles_loss(vertices, faces, k_loss, num_samples=10, k=5)
    loss = jax.block_until_ready(loss)
    assert jnp.isfinite(loss), "loss is not finite"
    print("KERNEL_OK")
</pallas_src>

<mosaic_0001>
module attributes {stable_mosaic.version = 11 : i64} {
  func.func @_overlap_kernel(%arg0: i32, %arg1: memref<80x8xf32, #tpu.memory_space<vmem>>, %arg2: memref<8x512xf32, #tpu.memory_space<vmem>>, %arg3: memref<1x128xf32, #tpu.memory_space<vmem>>, %arg4: memref<1x8x128xf32, #tpu.memory_space<vmem>>) attributes {dimension_semantics = [#tpu.dimension_semantics<parallel>], iteration_bounds = array<i64: 2>, scalar_prefetch = 0 : i64, scratch_operands = 0 : i64, tpu.core_type = #tpu.core_type<tc>, window_params = [{transform_indices = @transform_0, window_bounds = array<i64: 80, 8>}, {pipeline_mode = #tpu.pipeline_mode<synchronous>, transform_indices = @transform_1, window_bounds = array<i64: 8, 512>}, {pipeline_mode = #tpu.pipeline_mode<synchronous>, transform_indices = @transform_2, window_bounds = array<i64: 1, 128>}, {transform_indices = @transform_3, window_bounds = array<i64: 1, 8, 128>}]} {
    %c0 = arith.constant 0 : index
    %c0_0 = arith.constant 0 : index
    %0 = vector.load %arg1[%c0, %c0_0] : memref<80x8xf32, #tpu.memory_space<vmem>>, vector<80x8xf32>
    %c0_1 = arith.constant 0 : index
    %c0_2 = arith.constant 0 : index
    %1 = vector.load %arg2[%c0_1, %c0_2] : memref<8x512xf32, #tpu.memory_space<vmem>>, vector<8x512xf32>
    %cst = arith.constant dense<0.000000e+00> : vector<80x512xf32>
    %2 = tpu.matmul %0, %1, %cst {dimension_numbers = #tpu.dot_dimension_numbers<[1], [0], [0], [1], [0, 0, 1, 1], [], []>, precision = #tpu.contract_precision<fp32>} : vector<80x8xf32>, vector<8x512xf32>, vector<80x512xf32> -> vector<80x512xf32>
    %3 = vector.extract_strided_slice %2 {offsets = [0, 0], sizes = [80, 128], strides = [1, 1]} : vector<80x512xf32> to vector<80x128xf32>
    %4 = vector.extract_strided_slice %2 {offsets = [0, 128], sizes = [80, 128], strides = [1, 1]} : vector<80x512xf32> to vector<80x128xf32>
    %5 = vector.extract_strided_slice %2 {offsets = [0, 256], sizes = [80, 128], strides = [1, 1]} : vector<80x512xf32> to vector<80x128xf32>
    %6 = vector.extract_strided_slice %2 {offsets = [0, 384], sizes = [80, 128], strides = [1, 1]} : vector<80x512xf32> to vector<80x128xf32>
    %cst_3 = arith.constant 0.000000e+00 : f32
    %7 = vector.broadcast %cst_3 : f32 to vector<80x128xf32>
    %8 = arith.cmpf oge, %3, %7 : vector<80x128xf32>
    %cst_4 = arith.constant 0.000000e+00 : f32
    %9 = vector.broadcast %cst_4 : f32 to vector<80x128xf32>
    %10 = arith.cmpf oge, %4, %9 : vector<80x128xf32>
    %11 = arith.andi %8, %10 : vector<80x128xi1>
    %cst_5 = arith.constant 0.000000e+00 : f32
    %12 = vector.broadcast %cst_5 : f32 to vector<80x128xf32>
    %13 = arith.cmpf oge, %5, %12 : vector<80x128xf32>
    %14 = arith.andi %11, %13 : vector<80x128xi1>
    %c0_6 = arith.constant 0 : index
    %c0_7 = arith.constant 0 : index
    %15 = vector.load %arg3[%c0_6, %c0_7] : memref<1x128xf32, #tpu.memory_space<vmem>>, vector<1x128xf32>
    %cst_8 = arith.constant 0.000000e+00 : f32
    %16 = vector.shape_cast %15 : vector<1x128xf32> to vector<1x128xf32>
    %17 = vector.broadcast %16 : vector<1x128xf32> to vector<80x128xf32>
    %18 = vector.broadcast %cst_8 : f32 to vector<80x128xf32>
    %19 = arith.select %14, %17, %18 : vector<80x128xi1>, vector<80x128xf32>
    %20 = vector.extract_strided_slice %0 {offsets = [0, 3], sizes = [80, 1], strides = [1, 1]} : vector<80x8xf32> to vector<80x1xf32>
    %cst_9 = arith.constant dense<0x7F800000> : vector<80xf32>
    %21 = vector.multi_reduction <minimumf>, %6, %cst_9 [1] : vector<80x128xf32> to vector<80xf32>
    %22 = vector.shape_cast %21 : vector<80xf32> to vector<80x1xf32>
    %23 = vector.broadcast %22 : vector<80x1xf32> to vector<80x128xf32>
    %24 = arith.cmpf ole, %6, %23 : vector<80x128xf32>
    %cst_10 = arith.constant 0x7F800000 : f32
    %25 = vector.broadcast %cst_10 : f32 to vector<80x128xf32>
    %26 = arith.select %24, %25, %6 : vector<80x128xi1>, vector<80x128xf32>
    %cst_11 = arith.constant dense<0x7F800000> : vector<80xf32>
    %27 = vector.multi_reduction <minimumf>, %26, %cst_11 [1] : vector<80x128xf32> to vector<80xf32>
    %28 = vector.shape_cast %27 : vector<80xf32> to vector<80x1xf32>
    %29 = vector.broadcast %28 : vector<80x1xf32> to vector<80x128xf32>
    %30 = arith.cmpf ole, %26, %29 : vector<80x128xf32>
    %cst_12 = arith.constant 0x7F800000 : f32
    %31 = vector.broadcast %cst_12 : f32 to vector<80x128xf32>
    %32 = arith.select %30, %31, %26 : vector<80x128xi1>, vector<80x128xf32>
    %cst_13 = arith.constant dense<0x7F800000> : vector<80xf32>
    %33 = vector.multi_reduction <minimumf>, %32, %cst_13 [1] : vector<80x128xf32> to vector<80xf32>
    %34 = vector.shape_cast %33 : vector<80xf32> to vector<80x1xf32>
    %35 = vector.broadcast %34 : vector<80x1xf32> to vector<80x128xf32>
    %36 = arith.cmpf ole, %32, %35 : vector<80x128xf32>
    %cst_14 = arith.constant 0x7F800000 : f32
    %37 = vector.broadcast %cst_14 : f32 to vector<80x128xf32>
    %38 = arith.select %36, %37, %32 : vector<80x128xi1>, vector<80x128xf32>
    %cst_15 = arith.constant dense<0x7F800000> : vector<80xf32>
    %39 = vector.multi_reduction <minimumf>, %38, %cst_15 [1] : vector<80x128xf32> to vector<80xf32>
    %40 = vector.shape_cast %39 : vector<80xf32> to vector<80x1xf32>
    %41 = vector.broadcast %40 : vector<80x1xf32> to vector<80x128xf32>
    %42 = arith.cmpf ole, %38, %41 : vector<80x128xf32>
    %cst_16 = arith.constant 0x7F800000 : f32
    %43 = vector.broadcast %cst_16 : f32 to vector<80x128xf32>
    %44 = arith.select %42, %43, %38 : vector<80x128xi1>, vector<80x128xf32>
    %cst_17 = arith.constant dense<0x7F800000> : vector<80xf32>
    %45 = vector.multi_reduction <minimumf>, %44, %cst_17 [1] : vector<80x128xf32> to vector<80xf32>
    %46 = vector.shape_cast %45 : vector<80xf32> to vector<80x1xf32>
    %47 = vector.broadcast %46 : vector<80x1xf32> to vector<80x128xf32>
    %48 = arith.cmpf ole, %6, %47 : vector<80x128xf32>
    %cst_18 = arith.constant 0.000000e+00 : f32
    %49 = vector.broadcast %cst_18 : f32 to vector<80x128xf32>
    %50 = arith.select %48, %19, %49 : vector<80x128xi1>, vector<80x128xf32>
    %cst_19 = arith.constant dense<0.000000e+00> : vector<80xf32>
    %51 = vector.multi_reduction <add>, %50, %cst_19 [1] : vector<80x128xf32> to vector<80xf32>
    %52 = vector.shape_cast %51 : vector<80xf32> to vector<80x1xf32>
    %53 = arith.mulf %52, %20 : vector<80x1xf32>
    %54 = vector.shape_cast %53 : vector<80x1xf32> to vector<1x80x1xf32>
    %cst_20 = arith.constant dense<0.000000e+00> : vector<1xf32>
    %55 = vector.multi_reduction <add>, %54, %cst_20 [1, 2] : vector<1x80x1xf32> to vector<1xf32>
    %56 = vector.shape_cast %55 : vector<1xf32> to vector<1x1x1xf32>
    %57 = vector.extract %56[0, 0, 0] : f32 from vector<1x1x1xf32>
    %58 = vector.broadcast %57 : f32 to vector<1x8x128xf32>
    %c0_21 = arith.constant 0 : index
    %c0_22 = arith.constant 0 : index
    %c0_23 = arith.constant 0 : index
    %59 = vector.load %arg4[%c0_21, %c0_22, %c0_23] : memref<1x8x128xf32, #tpu.memory_space<vmem>>, vector<1x8x128xf32>
    tpu.vector_store %arg4[%c0_21, %c0_22, %c0_23], %58 {strides = array<i32>} : memref<1x8x128xf32, #tpu.memory_space<vmem>>, vector<1x8x128xf32>,
    return
  }
  func.func @transform_0(%arg0: i32) -> (i32, i32) {
    %c0_i32 = arith.constant 0 : i32
    %c0_i32_0 = arith.constant 0 : i32
    return %arg0, %c0_i32 : i32, i32
  }
  func.func @transform_1(%arg0: i32) -> (i32, i32) {
    %c0_i32 = arith.constant 0 : i32
    %c0_i32_0 = arith.constant 0 : i32
    %c0_i32_1 = arith.constant 0 : i32
    return %c0_i32, %c0_i32_0 : i32, i32
  }
  func.func @transform_2(%arg0: i32) -> (i32, i32) {
    %c0_i32 = arith.constant 0 : i32
    %c0_i32_0 = arith.constant 0 : i32
    %c0_i32_1 = arith.constant 0 : i32
    return %c0_i32, %c0_i32_0 : i32, i32
  }
  func.func @transform_3(%arg0: i32) -> (i32, i32, i32) {
    %c0_i32 = arith.constant 0 : i32
    %c0_i32_0 = arith.constant 0 : i32
    %c0_i32_1 = arith.constant 0 : i32
    return %arg0, %c0_i32, %c0_i32_0 : i32, i32, i32
  }
}

module attributes {stable_mosaic.version = 11 : i64} {
  func.func @_overlap_kernel(%arg0: i32, %arg1: memref<80x8xf32, #tpu.memory_space<vmem>>, %arg2: memref<8x512xf32, #tpu.memory_space<vmem>>, %arg3: memref<1x128xf32, #tpu.memory_space<vmem>>, %arg4: memref<1x8x128xf32, #tpu.memory_space<vmem>>) attributes {dimension_semantics = [#tpu.dimension_semantics<parallel>], iteration_bounds = array<i64: 2>, scalar_prefetch = 0 : i64, scratch_operands = 0 : i64, tpu.core_type = #tpu.core_type<tc>, window_params = [{transform_indices = @transform_0, window_bounds = array<i64: 80, 8>}, {pipeline_mode = #tpu.pipeline_mode<synchronous>, transform_indices = @transform_1, window_bounds = array<i64: 8, 512>}, {pipeline_mode = #tpu.pipeline_mode<synchronous>, transform_indices = @transform_2, window_bounds = array<i64: 1, 128>}, {transform_indices = @transform_3, window_bounds = array<i64: 1, 8, 128>}]} {
    %c0 = arith.constant 0 : index
    %c0_0 = arith.constant 0 : index
    %0 = vector.load %arg1[%c0, %c0_0] : memref<80x8xf32, #tpu.memory_space<vmem>>, vector<80x8xf32>
    %c0_1 = arith.constant 0 : index
    %c0_2 = arith.constant 0 : index
    %1 = vector.load %arg2[%c0_1, %c0_2] : memref<8x512xf32, #tpu.memory_space<vmem>>, vector<8x512xf32>
    %cst = arith.constant dense<0.000000e+00> : vector<80x512xf32>
    %2 = tpu.matmul %0, %1, %cst {dimension_numbers = #tpu.dot_dimension_numbers<[1], [0], [0], [1], [0, 0, 1, 1], [], []>, precision = #tpu.contract_precision<fp32>} : vector<80x8xf32>, vector<8x512xf32>, vector<80x512xf32> -> vector<80x512xf32>
    %3 = vector.extract_strided_slice %2 {offsets = [0, 0], sizes = [80, 128], strides = [1, 1]} : vector<80x512xf32> to vector<80x128xf32>
    %4 = vector.extract_strided_slice %2 {offsets = [0, 128], sizes = [80, 128], strides = [1, 1]} : vector<80x512xf32> to vector<80x128xf32>
    %5 = vector.extract_strided_slice %2 {offsets = [0, 256], sizes = [80, 128], strides = [1, 1]} : vector<80x512xf32> to vector<80x128xf32>
    %6 = vector.extract_strided_slice %2 {offsets = [0, 384], sizes = [80, 128], strides = [1, 1]} : vector<80x512xf32> to vector<80x128xf32>
    %cst_3 = arith.constant 0.000000e+00 : f32
    %7 = vector.broadcast %cst_3 : f32 to vector<80x128xf32>
    %8 = arith.cmpf oge, %3, %7 : vector<80x128xf32>
    %cst_4 = arith.constant 0.000000e+00 : f32
    %9 = vector.broadcast %cst_4 : f32 to vector<80x128xf32>
    %10 = arith.cmpf oge, %4, %9 : vector<80x128xf32>
    %11 = arith.andi %8, %10 : vector<80x128xi1>
    %cst_5 = arith.constant 0.000000e+00 : f32
    %12 = vector.broadcast %cst_5 : f32 to vector<80x128xf32>
    %13 = arith.cmpf oge, %5, %12 : vector<80x128xf32>
    %14 = arith.andi %11, %13 : vector<80x128xi1>
    %c0_6 = arith.constant 0 : index
    %c0_7 = arith.constant 0 : index
    %15 = vector.load %arg3[%c0_6, %c0_7] : memref<1x128xf32, #tpu.memory_space<vmem>>, vector<1x128xf32>
    %cst_8 = arith.constant 0.000000e+00 : f32
    %16 = vector.shape_cast %15 : vector<1x128xf32> to vector<1x128xf32>
    %17 = vector.broadcast %16 : vector<1x128xf32> to vector<80x128xf32>
    %18 = vector.broadcast %cst_8 : f32 to vector<80x128xf32>
    %19 = arith.select %14, %17, %18 : vector<80x128xi1>, vector<80x128xf32>
    %20 = vector.extract_strided_slice %0 {offsets = [0, 3], sizes = [80, 1], strides = [1, 1]} : vector<80x8xf32> to vector<80x1xf32>
    %cst_9 = arith.constant dense<0x7F800000> : vector<80xf32>
    %21 = vector.multi_reduction <minimumf>, %6, %cst_9 [1] : vector<80x128xf32> to vector<80xf32>
    %22 = vector.shape_cast %21 : vector<80xf32> to vector<80x1xf32>
    %23 = vector.broadcast %22 : vector<80x1xf32> to vector<80x128xf32>
    %24 = arith.cmpf ole, %6, %23 : vector<80x128xf32>
    %cst_10 = arith.constant 0x7F800000 : f32
    %25 = vector.broadcast %cst_10 : f32 to vector<80x128xf32>
    %26 = arith.select %24, %25, %6 : vector<80x128xi1>, vector<80x128xf32>
    %cst_11 = arith.constant dense<0x7F800000> : vector<80xf32>
    %27 = vector.multi_reduction <minimumf>, %26, %cst_11 [1] : vector<80x128xf32> to vector<80xf32>
    %28 = vector.shape_cast %27 : vector<80xf32> to vector<80x1xf32>
    %29 = vector.broadcast %28 : vector<80x1xf32> to vector<80x128xf32>
    %30 = arith.cmpf ole, %26, %29 : vector<80x128xf32>
    %cst_12 = arith.constant 0x7F800000 : f32
    %31 = vector.broadcast %cst_12 : f32 to vector<80x128xf32>
    %32 = arith.select %30, %31, %26 : vector<80x128xi1>, vector<80x128xf32>
    %cst_13 = arith.constant dense<0x7F800000> : vector<80xf32>
    %33 = vector.multi_reduction <minimumf>, %32, %cst_13 [1] : vector<80x128xf32> to vector<80xf32>
    %34 = vector.shape_cast %33 : vector<80xf32> to vector<80x1xf32>
    %35 = vector.broadcast %34 : vector<80x1xf32> to vector<80x128xf32>
    %36 = arith.cmpf ole, %32, %35 : vector<80x128xf32>
    %cst_14 = arith.constant 0x7F800000 : f32
    %37 = vector.broadcast %cst_14 : f32 to vector<80x128xf32>
    %38 = arith.select %36, %37, %32 : vector<80x128xi1>, vector<80x128xf32>
    %cst_15 = arith.constant dense<0x7F800000> : vector<80xf32>
    %39 = vector.multi_reduction <minimumf>, %38, %cst_15 [1] : vector<80x128xf32> to vector<80xf32>
    %40 = vector.shape_cast %39 : vector<80xf32> to vector<80x1xf32>
    %41 = vector.broadcast %40 : vector<80x1xf32> to vector<80x128xf32>
    %42 = arith.cmpf ole, %38, %41 : vector<80x128xf32>
    %cst_16 = arith.constant 0x7F800000 : f32
    %43 = vector.broadcast %cst_16 : f32 to vector<80x128xf32>
    %44 = arith.select %42, %43, %38 : vector<80x128xi1>, vector<80x128xf32>
    %cst_17 = arith.constant dense<0x7F800000> : vector<80xf32>
    %45 = vector.multi_reduction <minimumf>, %44, %cst_17 [1] : vector<80x128xf32> to vector<80xf32>
    %46 = vector.shape_cast %45 : vector<80xf32> to vector<80x1xf32>
    %47 = vector.broadcast %46 : vector<80x1xf32> to vector<80x128xf32>
    %48 = arith.cmpf ole, %6, %47 : vector<80x128xf32>
    %cst_18 = arith.constant 0.000000e+00 : f32
    %49 = vector.broadcast %cst_18 : f32 to vector<80x128xf32>
    %50 = arith.select %48, %19, %49 : vector<80x128xi1>, vector<80x128xf32>
    %cst_19 = arith.constant dense<0.000000e+00> : vector<80xf32>
    %51 = vector.multi_reduction <add>, %50, %cst_19 [1] : vector<80x128xf32> to vector<80xf32>
    %52 = vector.shape_cast %51 : vector<80xf32> to vector<80x1xf32>
    %53 = arith.mulf %52, %20 : vector<80x1xf32>
    %54 = vector.shape_cast %53 : vector<80x1xf32> to vector<1x80x1xf32>
    %cst_20 = arith.constant dense<0.000000e+00> : vector<1xf32>
    %55 = vector.multi_reduction <add>, %54, %cst_20 [1, 2] : vector<1x80x1xf32> to vector<1xf32>
    %56 = vector.shape_cast %55 : vector<1xf32> to vector<1x1x1xf32>
    %57 = vector.extract %56[0, 0, 0] : f32 from vector<1x1x1xf32>
    %58 = vector.broadcast %57 : f32 to vector<1x8x128xf32>
    %c0_21 = arith.constant 0 : index
    %c0_22 = arith.constant 0 : index
    %c0_23 = arith.constant 0 : index
    %59 = vector.load %arg4[%c0_21, %c0_22, %c0_23] : memref<1x8x128xf32, #tpu.memory_space<vmem>>, vector<1x8x128xf32>
    tpu.vector_store %arg4[%c0_21, %c0_22, %c0_23], %58 {strides = array<i32>} : memref<1x8x128xf32, #tpu.memory_space<vmem>>, vector<1x8x128xf32>,
    return
  }
  func.func @transform_0(%arg0: i32) -> (i32, i32) {
    %c0_i32 = arith.constant 0 : i32
    %c0_i32_0 = arith.constant 0 : i32
    return %arg0, %c0_i32 : i32, i32
  }
  func.func @transform_1(%arg0: i32) -> (i32, i32) {
    %c0_i32 = arith.constant 0 : i32
    %c0_i32_0 = arith.constant 0 : i32
    %c0_i32_1 = arith.constant 0 : i32
    return %c0_i32, %c0_i32_0 : i32, i32
  }
  func.func @transform_2(%arg0: i32) -> (i32, i32) {
    %c0_i32 = arith.constant 0 : i32
    %c0_i32_0 = arith.constant 0 : i32
    %c0_i32_1 = arith.constant 0 : i32
    return %c0_i32, %c0_i32_0 : i32, i32
  }
  func.func @transform_3(%arg0: i32) -> (i32, i32, i32) {
    %c0_i32 = arith.constant 0 : i32
    %c0_i32_0 = arith.constant 0 : i32
    %c0_i32_1 = arith.constant 0 : i32
    return %arg0, %c0_i32, %c0_i32_0 : i32, i32, i32
  }
}

</mosaic_0001>

<llo_original>
// kernel: tpu_custom_call.1
$region0: #{tpu_custom_call.1}
  #allocation0 [shape = 'u32[]', space=smem, size = 0x4, offset = 0x4, fixed_abs, tag = 'smem constant byte address 0x4 - core index']
  #allocation1 [shape = 'u32[144,128]{1,0:T(1,128)}', space=vmem, size = 0x12000, scoped, tag = 'internal scratch']
  %s0 = inlined_call_operand.vmem [shape: f32[160,8], index: 0, kind: input, shape index: {}]
  %s1 = inlined_call_operand.vmem [shape: f32[8,512], index: 1, kind: input, shape index: {}]
  %s2 = inlined_call_operand.vmem [shape: f32[1,128], index: 2, kind: input, shape index: {}]
  %s3 = inlined_call_operand.hbm [shape: f32[2,8,128], index: 3, kind: output, shape index: {}]
  %s4 = sld [smem:[#allocation0]]
  $region45: #{tpu_custom_call.1} parent=0
    _
  %s6 = ssub.s32 1, %s4
  %s7 = scalar_select 0, %s6, %s4
  $region1: #{tpu_custom_call.1} parent=0
    #allocation2 [shape = 'u8[8192]{0}', space=vmem, size = 0x2000, scoped, tag = 'output window, operand 0']
    #allocation3 [shape = 's32[2]{0}', space=sflag, size = 0x8, scoped, tag = 'scoped memory for tpu_custom_call.1']
    %8 = vsyncpa [#allocation3], 0
    %s9 = scalar_lea.sflag [#allocation3], 1
    %10 = vsyncpa %s9, 0
    loop: start=0, step=1, limit=4
    $region2: #{tpu_custom_call.1} parent=1 // loop_pre_header
      _
    $region3: #{tpu_custom_call.1} parent=1 // loop_header
      %s12 = sphi 0, %s16
      %p13 = scmp.ge.s32.totalorder %s12, 4
      %s22 = sphi 0, %s24
      %s25 = sphi 0, %s22
      %s26 = sphi 0, %s25
      %s42 = sphi 0, %s26
      %s46 = sphi 0, %s46
      %s48 = sphi 0, %s46
      %s49 = sphi 0, %s48
      %s63 = sphi 0, %s49
      %s67 = sphi 0, %s67
      %s69 = sphi 0, %s67
      %s70 = sphi 0, %s69
      %s84 = sphi 0, %s70
      %s90 = sphi 0, %s92
      %s93 = sphi 0, %s90
      %s94 = sphi 0, %s93
      %s110 = sphi 0, %s94
    $region4: #{tpu_custom_call.1} parent=1 // loop_header_branch
      %15 = sbr.rel (%p13) target = $region8
    $region5: #{tpu_custom_call.1} parent=1 // loop_body
      %s17 = ssub.s32 %s12, 1
      %s18 = ssub.s32 %s12, 2
      %s19 = sadd.s32 %s12, 1
      %s20 = ssub.s32 %s12, %s19
      %p21 = scmp.eq.s32.totalorder %s20, 0
      %s23 = sadd.s32 %s22, 1
      %s24 = scalar_select %p21, %s22, %s23
      %p27 = pneg %p21
      %p28 = scmp.eq.s32.totalorder %s12, 1
      %p29 = por %p27, %p28
      %p30 = scmp.ne.s32.totalorder %s22, %s25
      %p31 = scmp.eq.s32.totalorder %s12, 0
      %p32 = por %p30, %p31
      %p33 = scmp.ne.s32.totalorder %s22, %s25
      %p34 = scmp.eq.s32.totalorder %s17, 1
      %p35 = por %p33, %p34
      %p36 = scmp.ne.s32.totalorder %s25, %s26
      %p37 = scmp.eq.s32.totalorder %s17, 0
      %p38 = por %p36, %p37
      %p39 = scmp.ne.s32.totalorder %s25, %s26
      %p40 = scmp.eq.s32.totalorder %s18, 1
      %p41 = por %p39, %p40
      %p43 = scmp.ne.s32.totalorder %s26, %s42
      %p44 = scmp.eq.s32.totalorder %s18, 0
      %p45 = por %p43, %p44
      %s47 = sadd.s32 %s46, 1
      %p50 = scmp.eq.s32.totalorder %s12, 1
      %p51 = scmp.ne.s32.totalorder %s46, %s48
      %p52 = scmp.eq.s32.totalorder %s12, 0
      %p53 = por %p51, %p52
      %p54 = scmp.ne.s32.totalorder %s46, %s48
      %p55 = scmp.eq.s32.totalorder %s17, 1
      %p56 = por %p54, %p55
      %p57 = scmp.ne.s32.totalorder %s48, %s49
      %p58 = scmp.eq.s32.totalorder %s17, 0
      %p59 = por %p57, %p58
      %p60 = scmp.ne.s32.totalorder %s48, %s49
      %p61 = scmp.eq.s32.totalorder %s18, 1
      %p62 = por %p60, %p61
      %p64 = scmp.ne.s32.totalorder %s49, %s63
      %p65 = scmp.eq.s32.totalorder %s18, 0
      %p66 = por %p64, %p65
      %s68 = sadd.s32 %s67, 1
      %p71 = scmp.eq.s32.totalorder %s12, 1
      %p72 = scmp.ne.s32.totalorder %s67, %s69
      %p73 = scmp.eq.s32.totalorder %s12, 0
      %p74 = por %p72, %p73
      %p75 = scmp.ne.s32.totalorder %s67, %s69
      %p76 = scmp.eq.s32.totalorder %s17, 1
      %p77 = por %p75, %p76
      %p78 = scmp.ne.s32.totalorder %s69, %s70
      %p79 = scmp.eq.s32.totalorder %s17, 0
      %p80 = por %p78, %p79
      %p81 = scmp.ne.s32.totalorder %s69, %s70
      %p82 = scmp.eq.s32.totalorder %s18, 1
      %p83 = por %p81, %p82
      %p85 = scmp.ne.s32.totalorder %s70, %s84
      %p86 = scmp.eq.s32.totalorder %s18, 0
      %p87 = por %p85, %p86
      %s88 = ssub.s32 %s12, %s19
      %p89 = scmp.eq.s32.totalorder %s88, 0
      %s91 = sadd.s32 %s90, 1
      %s92 = scalar_select %p89, %s90, %s91
      %p95 = pneg %p89
      %p96 = scmp.eq.s32.totalorder %s12, 1
      %p97 = por %p95, %p96
      %p98 = scmp.ne.s32.totalorder %s90, %s93
      %p99 = scmp.eq.s32.totalorder %s12, 0
      %p100 = por %p98, %p99
      %p101 = scmp.ne.s32.totalorder %s90, %s93
      %p102 = scmp.eq.s32.totalorder %s17, 1
      %p103 = por %p101, %p102
      %p104 = scmp.ne.s32.totalorder %s93, %s94
      %p105 = scmp.eq.s32.totalorder %s17, 0
      %p106 = por %p104, %p105
      %p107 = scmp.ne.s32.totalorder %s93, %s94
      %p108 = scmp.eq.s32.totalorder %s18, 1
      %p109 = por %p107, %p108
      %p111 = scmp.ne.s32.totalorder %s94, %s110
      %p112 = scmp.eq.s32.totalorder %s18, 0
      %p113 = por %p111, %p112
      %p114 = scmp.le.s32.totalorder 1, %s12
      %p115 = scmp.lt.s32.totalorder %s12, 3
      %p116 = pnand %p114, %p115
      %p117 = pneg %p116
      // Predicated region
      $region9: #{tpu_custom_call.1} parent=5 // pred_check
        _
      $region10: #{tpu_custom_call.1} parent=5 // pred_check_branch
        %119 = sbr.rel (%p116) target = $region12
      $region11: #{tpu_custom_call.1} parent=5 // pred_region
        %s120 = ssub.s32 %s12, 1
        // Predicated region
        $region13: #{tpu_custom_call.1} parent=11 // pred_check
          %p121 = pneg %p59
        $region14: #{tpu_custom_call.1} parent=11 // pred_check_branch
          %123 = sbr.rel (%p121) target = $region16
        $region15: #{tpu_custom_call.1} parent=11 // pred_region
          _
        $region16: #{tpu_custom_call.1} parent=11 // pred_fallthru
          _
        // Predicated region
        $region17: #{tpu_custom_call.1} parent=11 // pred_check
          %p124 = pneg %p80
        $region18: #{tpu_custom_call.1} parent=11 // pred_check_branch
          %126 = sbr.rel (%p124) target = $region20
        $region19: #{tpu_custom_call.1} parent=11 // pred_region
          _
        $region20: #{tpu_custom_call.1} parent=11 // pred_fallthru
          _
      $region12: #{tpu_custom_call.1} parent=5 // pred_fallthru
        _
      %p127 = scmp.lt.s32.totalorder %s12, 2
      // Predicated region
      $region21: #{tpu_custom_call.1} parent=5 // pred_check
        %p128 = pneg %p127
      $region22: #{tpu_custom_call.1} parent=5 // pred_check_branch
        %130 = sbr.rel (%p128) target = $region24
      $region23: #{tpu_custom_call.1} parent=5 // pred_region
        // Predicated region
        $region25: #{tpu_custom_call.1} parent=23 // pred_check
          %p131 = pneg %p32
        $region26: #{tpu_custom_call.1} parent=23 // pred_check_branch
          %133 = sbr.rel (%p131) target = $region28
        $region27: #{tpu_custom_call.1} parent=23 // pred_region
          %s134 = smul.u32 10, %s12
          %p135 = scmp.lt.s32.totalorder %s134, 19
          %s136 = scalar_select %p135, %s134, 19
          %s137 = smul.addr %s136, 8
          %s138 = scalar_lea.vmem %s0, %s137
          %s139 = smul.u32 10, %s12
        $region28: #{tpu_custom_call.1} parent=23 // pred_fallthru
          _
      $region24: #{tpu_custom_call.1} parent=5 // pred_fallthru
        _
      %p140 = scmp.le.s32.totalorder 1, %s12
      %p141 = scmp.lt.s32.totalorder %s12, 3
      %p142 = pnand %p140, %p141
      %p143 = pneg %p142
      // Predicated region
      $region29: #{tpu_custom_call.1} parent=5 // pred_check
        _
      $region30: #{tpu_custom_call.1} parent=5 // pred_check_branch
        %145 = sbr.rel (%p142) target = $region32
      $region31: #{tpu_custom_call.1} parent=5 // pred_region
        %s146 = ssub.s32 %s12, 1
        %s147 = smul.u32 10, %s17
        %p148 = scmp.lt.s32.totalorder %s147, 19
        %s149 = scalar_select %p148, %s147, 19
        %s150 = smul.addr %s149, 8
        %s151 = scalar_lea.vmem %s0, %s150
        %p152 = pneg %p38
        %p153 = pneg %p35
        %p154 = pneg %p59
        %p155 = pneg %p56
        %p156 = pneg %p80
        %p157 = pneg %p77
        %p158 = pneg %p106
        %p159 = pneg %p103
        %s160 = sand.u32 %s93, 1
        %s161 = scalar_lea.sflag [#allocation3], %s160
        %s162 = sand.u32 %s93, 1
        %s163 = smul.addr %s162, 8
        %s164 = scalar_lea.vmem [#allocation2], %s163
        %s165 = smul.u32 10, %s17
        %p166 = scmp.lt.s32.totalorder %s165, 19
        %s167 = scalar_select %p166, %s165, 19
        %s168 = smul.addr %s167, 8
        %s169 = scalar_lea.vmem %s0, %s168
        %s170 = smul.u32 10, %s17
        %v171 = vld [vmem:[%s169] sm:$0xff]
        %v172 = vld [vmem:[%s169 + $0x8] sm:$0xff]
        %v173 = vld [vmem:[%s169 + $0x10] sm:$0xff]
        %v174 = vld [vmem:[%s169 + $0x18] sm:$0xff]
        %v175 = vld [vmem:[%s169 + $0x20] sm:$0xff]
        %v176 = vld [vmem:[%s169 + $0x28] sm:$0xff]
        %v177 = vld [vmem:[%s169 + $0x30] sm:$0xff]
        %v178 = vld [vmem:[%s169 + $0x38] sm:$0xff]
        %v179 = vld [vmem:[%s169 + $0x40] sm:$0xff]
        %v180 = vld [vmem:[%s169 + $0x48] sm:$0xff]
        %v181 = vld [vmem:[%s1] sm:$0xff]
        %v182 = vld [vmem:[%s1 + $0x8] sm:$0xff]
        %v183 = vld [vmem:[%s1 + $0x10] sm:$0xff]
        %v184 = vld [vmem:[%s1 + $0x18] sm:$0xff]
        %vm185 = vcmask 64512
        %v187 = vsel %vm185, %v171, 0
        %v190 = vsel %vm185, %v172, 0
        %v193 = vsel %vm185, %v173, 0
        %v196 = vsel %vm185, %v174, 0
        %v199 = vsel %vm185, %v175, 0
        %v202 = vsel %vm185, %v176, 0
        %v205 = vsel %vm185, %v177, 0
        %v208 = vsel %vm185, %v178, 0
        %v211 = vsel %vm185, %v179, 0
        %v214 = vsel %vm185, %v180, 0
        %v216 = vand.u32 %v182, 4294901760
        %217 = vmatprep.subr.mxu0 %v216
        %v218 = vand.u32 %v181, 4294901760
        %219 = vmatpush1.msra.mxu0 %v218
        %220 = vmatprep.subr.mxu0 0.0
        %221 = vmatpush1.msra.mxu0 0.0
        %222 = vmatprep.subr.mxu0 0.0
        %223 = vmatpush1.msra.mxu0 0.0
        %224 = vmatprep.subr.mxu0 0.0
        %225 = vmatpush1.msra.mxu0 0.0
        %226 = vmatprep.subr.mxu0 0.0
        %227 = vmatpush1.msra.mxu0 0.0
        %228 = vmatprep.subr.mxu0 0.0
        %229 = vmatpush1.msra.mxu0 0.0
        %230 = vmatprep.subr.mxu0 0.0
        %231 = vmatpush1.msra.mxu0 0.0
        %232 = vmatprep.subr.mxu0 0.0
        %233 = vmatpush1.msra.mxu0 0.0
        %234 = vmatprep.subr.mxu0 0.0
        %235 = vmatpush1.msra.mxu0 0.0
        %236 = vmatprep.subr.mxu0 0.0
        %237 = vmatpush1.msra.mxu0 0.0
        %238 = vmatprep.subr.mxu0 0.0
        %239 = vmatpush1.msra.mxu0 0.0
        %240 = vmatprep.subr.mxu0 0.0
        %241 = vmatpush1.msra.mxu0 0.0
        %242 = vmatprep.subr.mxu0 0.0
        %243 = vmatpush1.msra.mxu0 0.0
        %244 = vmatprep.subr.mxu0 0.0
        %245 = vmatpush1.msra.mxu0 0.0
        %246 = vmatprep.subr.mxu0 0.0
        %247 = vmatpush1.msra.mxu0 0.0
        %248 = vmatprep.subr.mxu0 0.0
        %249 = vmatpush1.msra.mxu0 0.0
        %250 = vmatprep.subr.mxu0 0.0
        %251 = vmatpush1.msra.mxu0 0.0
        %252 = vmatprep.subr.mxu0 0.0
        %253 = vmatpush1.msra.mxu0 0.0
        %254 = vmatprep.subr.mxu0 0.0
        %255 = vmatpush1.msra.mxu0 0.0
        %256 = vmatprep.subr.mxu0 0.0
        %257 = vmatpush1.msra.mxu0 0.0
        %258 = vmatprep.subr.mxu0 0.0
        %259 = vmatpush1.msra.mxu0 0.0
        %260 = vmatprep.subr.mxu0 0.0
        %261 = vmatpush1.msra.mxu0 0.0
        %262 = vmatprep.subr.mxu0 0.0
        %263 = vmatpush1.msra.mxu0 0.0
        %264 = vmatprep.subr.mxu0 0.0
        %265 = vmatpush1.msra.mxu0 0.0
        %266 = vmatprep.subr.mxu0 0.0
        %267 = vmatpush1.msra.mxu0 0.0
        %268 = vmatprep.subr.mxu0 0.0
        %269 = vmatpush1.msra.mxu0 0.0
        %270 = vmatprep.subr.mxu0 0.0
        %271 = vmatpush1.msra.mxu0 0.0
        %272 = vmatprep.subr.mxu0 0.0
        %273 = vmatpush1.msra.mxu0 0.0
        %274 = vmatprep.subr.mxu0 0.0
        %275 = vmatpush1.msra.mxu0 0.0
        %276 = vmatprep.subr.mxu0 0.0
        %277 = vmatpush1.msra.mxu0 0.0
        %278 = vmatprep.subr.mxu0 0.0
        %279 = vmatpush1.msra.mxu0 0.0
        %280 = vmatprep.subr.mxu0 0.0
        %281 = vmatpush1.msra.mxu0 0.0
        %282 = vmatprep.mubr.f32.mxu0 0.0
        %v283 = vand.u32 %v187, 4294901760
        %v284 = vsub.f32 %v187, %v283
        %v285 = vand.u32 %v284, 4294901760
        %v286 = vsub.f32 %v284, %v285
        %v287 = vand.u32 %v286, 4294901760
        %288 = vmatmul.mubr.f32.gmra.mrb[0].mxu0 %v287
        %v289 = vpop.f32.mrb[0].mxu0
        %v290 = vadd.f32 0.0, %v289
        %v291 = vpop.f32.mrb[0].mxu0
        %v292 = vadd.f32 0.0, %v291
        %293 = vmatprep.mubr.f32.mxu0 0.0
        %v294 = vand.u32 %v190, 4294901760
        %v295 = vsub.f32 %v190, %v294
        %v296 = vand.u32 %v295, 4294901760
        %v297 = vsub.f32 %v295, %v296
        %v298 = vand.u32 %v297, 4294901760
        %299 = vmatmul.mubr.f32.gmra.mrb[0].mxu0 %v298
        %v300 = vpop.f32.mrb[0].mxu0
        %v301 = vadd.f32 0.0, %v300
        %v302 = vpop.f32.mrb[0].mxu0
        %v303 = vadd.f32 0.0, %v302
        %304 = vmatprep.mubr.f32.mxu0 0.0
        %v305 = vand.u32 %v193, 4294901760
        %v306 = vsub.f32 %v193, %v305
        %v307 = vand.u32 %v306, 4294901760
        %v308 = vsub.f32 %v306, %v307
        %v309 = vand.u32 %v308, 4294901760
        %310 = vmatmul.mubr.f32.gmra.mrb[0].mxu0 %v309
        %v311 = vpop.f32.mrb[0].mxu0
        %v312 = vadd.f32 0.0, %v311
        %v313 = vpop.f32.mrb[0].mxu0
        %v314 = vadd.f32 0.0, %v313
        %315 = vmatprep.mubr.f32.mxu0 0.0
        %v316 = vand.u32 %v196, 4294901760
        %v317 = vsub.f32 %v196, %v316
        %v318 = vand.u32 %v317, 4294901760
        %v319 = vsub.f32 %v317, %v318
        %v320 = vand.u32 %v319, 4294901760
        %321 = vmatmul.mubr.f32.gmra.mrb[0].mxu0 %v320
        %v322 = vpop.f32.mrb[0].mxu0
        %v323 = vadd.f32 0.0, %v322
        %v324 = vpop.f32.mrb[0].mxu0
        %v325 = vadd.f32 0.0, %v324
        %326 = vmatprep.mubr.f32.mxu0 0.0
        %v327 = vand.u32 %v199, 4294901760
        %v328 = vsub.f32 %v199, %v327
        %v329 = vand.u32 %v328, 4294901760
        %v330 = vsub.f32 %v328, %v329
        %v331 = vand.u32 %v330, 4294901760
        %332 = vmatmul.mubr.f32.gmra.mrb[0].mxu0 %v331
        %v333 = vpop.f32.mrb[0].mxu0
        %v334 = vadd.f32 0.0, %v333
        %v335 = vpop.f32.mrb[0].mxu0
        %v336 = vadd.f32 0.0, %v335
        %337 = vmatprep.mubr.f32.mxu0 0.0
        %v338 = vand.u32 %v202, 4294901760
        %v339 = vsub.f32 %v202, %v338
        %v340 = vand.u32 %v339, 4294901760
        %v341 = vsub.f32 %v339, %v340
        %v342 = vand.u32 %v341, 4294901760
        %343 = vmatmul.mubr.f32.gmra.mrb[0].mxu0 %v342
        %v344 = vpop.f32.mrb[0].mxu0
        %v345 = vadd.f32 0.0, %v344
        %v346 = vpop.f32.mrb[0].mxu0
        %v347 = vadd.f32 0.0, %v346
        %348 = vmatprep.mubr.f32.mxu0 0.0
        %v349 = vand.u32 %v205, 4294901760
        %v350 = vsub.f32 %v205, %v349
        %v351 = vand.u32 %v350, 4294901760
        %v352 = vsub.f32 %v350, %v351
        %v353 = vand.u32 %v352, 4294901760
        %354 = vmatmul.mubr.f32.gmra.mrb[0].mxu0 %v353
        %v355 = vpop.f32.mrb[0].mxu0
        %v356 = vadd.f32 0.0, %v355
        %v357 = vpop.f32.mrb[0].mxu0
        %v358 = vadd.f32 0.0, %v357
        %359 = vmatprep.mubr.f32.mxu0 0.0
        %v360 = vand.u32 %v208, 4294901760
        %v361 = vsub.f32 %v208, %v360
        %v362 = vand.u32 %v361, 4294901760
        %v363 = vsub.f32 %v361, %v362
        %v364 = vand.u32 %v363, 4294901760
        %365 = vmatmul.mubr.f32.gmra.mrb[0].mxu0 %v364
        %v366 = vpop.f32.mrb[0].mxu0
        %v367 = vadd.f32 0.0, %v366
        %v368 = vpop.f32.mrb[0].mxu0
        %v369 = vadd.f32 0.0, %v368
        %370 = vmatprep.mubr.f32.mxu0 0.0
        %v371 = vand.u32 %v211, 4294901760
        %v372 = vsub.f32 %v211, %v371
        %v373 = vand.u32 %v372, 4294901760
        %v374 = vsub.f32 %v372, %v373
        %v375 = vand.u32 %v374, 4294901760
        %376 = vmatmul.mubr.f32.gmra.mrb[0].mxu0 %v375
        %v377 = vpop.f32.mrb[0].mxu0
        %v378 = vadd.f32 0.0, %v377
        %v379 = vpop.f32.mrb[0].mxu0
        %v380 = vadd.f32 0.0, %v379
        %381 = vmatprep.mubr.f32.mxu0 0.0
        %v382 = vand.u32 %v214, 4294901760
        %v383 = vsub.f32 %v214, %v382
        %v384 = vand.u32 %v383, 4294901760
        %v385 = vsub.f32 %v383, %v384
        %v386 = vand.u32 %v385, 4294901760
        %387 = vmatmul.mubr.f32.gmra.mrb[0].mxu0 %v386
        %v388 = vpop.f32.mrb[0].mxu0
        %v389 = vadd.f32 0.0, %v388
        %v390 = vpop.f32.mrb[0].mxu0
        %v391 = vadd.f32 0.0, %v390
        %392 = vdwg.mxu0
        %v393 = vand.u32 %v182, 4294901760
        %v394 = vsub.f32 %v182, %v393
        %v395 = vand.u32 %v394, 4294901760
        %v396 = vsub.f32 %v394, %v395
        %v397 = vand.u32 %v396, 4294901760
        %398 = vmatprep.subr.mxu0 %v397
        %v399 = vand.u32 %v181, 4294901760
        %v400 = vsub.f32 %v181, %v399
        %v401 = vand.u32 %v400, 4294901760
        %v402 = vsub.f32 %v400, %v401
        %v403 = vand.u32 %v402, 4294901760
        %404 = vmatpush1.msra.mxu0 %v403
        %405 = vmatprep.subr.mxu0 0.0
        %406 = vmatpush1.msra.mxu0 0.0
        %407 = vmatprep.subr.mxu0 0.0
        %408 = vmatpush1.msra.mxu0 0.0
        %409 = vmatprep.subr.mxu0 0.0
        %410 = vmatpush1.msra.mxu0 0.0
        %411 = vmatprep.subr.mxu0 0.0
        %412 = vmatpush1.msra.mxu0 0.0
        %413 = vmatprep.subr.mxu0 0.0
        %414 = vmatpush1.msra.mxu0 0.0
        %415 = vmatprep.subr.mxu0 0.0
        %416 = vmatpush1.msra.mxu0 0.0
        %417 = vmatprep.subr.mxu0 0.0
        %418 = vmatpush1.msra.mxu0 0.0
        %419 = vmatprep.subr.mxu0 0.0
        %420 = vmatpush1.msra.mxu0 0.0
        %421 = vmatprep.subr.mxu0 0.0
        %422 = vmatpush1.msra.mxu0 0.0
        %423 = vmatprep.subr.mxu0 0.0
        %424 = vmatpush1.msra.mxu0 0.0
        %425 = vmatprep.subr.mxu0 0.0
        %426 = vmatpush1.msra.mxu0 0.0
        %427 = vmatprep.subr.mxu0 0.0
        %428 = vmatpush1.msra.mxu0 0.0
        %429 = vmatprep.subr.mxu0 0.0
        %430 = vmatpush1.msra.mxu0 0.0
        %431 = vmatprep.subr.mxu0 0.0
        %432 = vmatpush1.msra.mxu0 0.0
        %433 = vmatprep.subr.mxu0 0.0
        %434 = vmatpush1.msra.mxu0 0.0
        %435 = vmatprep.subr.mxu0 0.0
        %436 = vmatpush1.msra.mxu0 0.0
        %437 = vmatprep.subr.mxu0 0.0
        %438 = vmatpush1.msra.mxu0 0.0
        %439 = vmatprep.subr.mxu0 0.0
        %440 = vmatpush1.msra.mxu0 0.0
        %441 = vmatprep.subr.mxu0 0.0
        %442 = vmatpush1.msra.mxu0 0.0
        %443 = vmatprep.subr.mxu0 0.0
        %444 = vmatpush1.msra.mxu0 0.0
        %445 = vmatprep.subr.mxu0 0.0
        %446 = vmatpush1.msra.mxu0 0.0
        %447 = vmatprep.subr.mxu0 0.0
        %448 = vmatpush1.msra.mxu0 0.0
        %449 = vmatprep.subr.mxu0 0.0
        %450 = vmatpush1.msra.mxu0 0.0
        %451 = vmatprep.subr.mxu0 0.0
        %452 = vmatpush1.msra.mxu0 0.0
        %453 = vmatprep.subr.mxu0 0.0
        %454 = vmatpush1.msra.mxu0 0.0
        %455 = vmatprep.subr.mxu0 0.0
        %456 = vmatpush1.msra.mxu0 0.0
        %457 = vmatprep.subr.mxu0 0.0
        %458 = vmatpush1.msra.mxu0 0.0
        %459 = vmatprep.subr.mxu0 0.0
        %460 = vmatpush1.msra.mxu0 0.0
        %461 = vmatprep.subr.mxu0 0.0
        %462 = vmatpush1.msra.mxu0 0.0
        %463 = vmatprep.subr.mxu0 0.0
        %464 = vmatpush1.msra.mxu0 0.0
        %465 = vmatprep.subr.mxu0 0.0
        %466 = vmatpush1.msra.mxu0 0.0
        %467 = vmatprep.mubr.f32.mxu0 0.0
        %v468 = vand.u32 %v187, 4294901760
        %469 = vmatmul.mubr.f32.gmra.mrb[0].mxu0 %v468
        %v470 = vpop.f32.mrb[0].mxu0
        %v471 = vadd.f32 %v290, %v470
        %v472 = vpop.f32.mrb[0].mxu0
        %v473 = vadd.f32 %v292, %v472
        %474 = vmatprep.mubr.f32.mxu0 0.0
        %v475 = vand.u32 %v190, 4294901760
        %476 = vmatmul.mubr.f32.gmra.mrb[0].mxu0 %v475
        %v477 = vpop.f32.mrb[0].mxu0
        %v478 = vadd.f32 %v301, %v477
        %v479 = vpop.f32.mrb[0].mxu0
        %v480 = vadd.f32 %v303, %v479
        %481 = vmatprep.mubr.f32.mxu0 0.0
        %v482 = vand.u32 %v193, 4294901760
        %483 = vmatmul.mubr.f32.gmra.mrb[0].mxu0 %v482
        %v484 = vpop.f32.mrb[0].mxu0
        %v485 = vadd.f32 %v312, %v484
        %v486 = vpop.f32.mrb[0].mxu0
        %v487 = vadd.f32 %v314, %v486
        %488 = vmatprep.mubr.f32.mxu0 0.0
        %v489 = vand.u32 %v196, 4294901760
        %490 = vmatmul.mubr.f32.gmra.mrb[0].mxu0 %v489
        %v491 = vpop.f32.mrb[0].mxu0
        %v492 = vadd.f32 %v323, %v491
        %v493 = vpop.f32.mrb[0].mxu0
        %v494 = vadd.f32 %v325, %v493
        %495 = vmatprep.mubr.f32.mxu0 0.0
        %v496 = vand.u32 %v199, 4294901760
        %497 = vmatmul.mubr.f32.gmra.mrb[0].mxu0 %v496
        %v498 = vpop.f32.mrb[0].mxu0
        %v499 = vadd.f32 %v334, %v498
        %v500 = vpop.f32.mrb[0].mxu0
        %v501 = vadd.f32 %v336, %v500
        %502 = vmatprep.mubr.f32.mxu0 0.0
        %v503 = vand.u32 %v202, 4294901760
        %504 = vmatmul.mubr.f32.gmra.mrb[0].mxu0 %v503
        %v505 = vpop.f32.mrb[0].mxu0
        %v506 = vadd.f32 %v345, %v505
        %v507 = vpop.f32.mrb[0].mxu0
        %v508 = vadd.f32 %v347, %v507
        %509 = vmatprep.mubr.f32.mxu0 0.0
        %v510 = vand.u32 %v205, 4294901760
        %511 = vmatmul.mubr.f32.gmra.mrb[0].mxu0 %v510
        %v512 = vpop.f32.mrb[0].mxu0
        %v513 = vadd.f32 %v356, %v512
        %v514 = vpop.f32.mrb[0].mxu0
        %v515 = vadd.f32 %v358, %v514
        %516 = vmatprep.mubr.f32.mxu0 0.0
        %v517 = vand.u32 %v208, 4294901760
        %518 = vmatmul.mubr.f32.gmra.mrb[0].mxu0 %v517
        %v519 = vpop.f32.mrb[0].mxu0
        %v520 = vadd.f32 %v367, %v519
        %v521 = vpop.f32.mrb[0].mxu0
        %v522 = vadd.f32 %v369, %v521
        %523 = vmatprep.mubr.f32.mxu0 0.0
        %v524 = vand.u32 %v211, 4294901760
        %525 = vmatmul.mubr.f32.gmra.mrb[0].mxu0 %v524
        %v526 = vpop.f32.mrb[0].mxu0
        %v527 = vadd.f32 %v378, %v526
        %v528 = vpop.f32.mrb[0].mxu0
        %v529 = vadd.f32 %v380, %v528
        %530 = vmatprep.mubr.f32.mxu0 0.0
        %v531 = vand.u32 %v214, 4294901760
        %532 = vmatmul.mubr.f32.gmra.mrb[0].mxu0 %v531
        %v533 = vpop.f32.mrb[0].mxu0
        %v534 = vadd.f32 %v389, %v533
        %v535 = vpop.f32.mrb[0].mxu0
        %v536 = vadd.f32 %v391, %v535
        %537 = vdwg.mxu0
        %v538 = vand.u32 %v182, 4294901760
        %v539 = vsub.f32 %v182, %v538
        %540 = vmatprep.subr.mxu0 %v539
        %v541 = vand.u32 %v181, 4294901760
        %v542 = vsub.f32 %v181, %v541
        %543 = vmatpush1.msra.mxu0 %v542
        %544 = vmatprep.subr.mxu0 0.0
        %545 = vmatpush1.msra.mxu0 0.0
        %546 = vmatprep.subr.mxu0 0.0
        %547 = vmatpush1.msra.mxu0 0.0
        %548 = vmatprep.subr.mxu0 0.0
        %549 = vmatpush1.msra.mxu0 0.0
        %550 = vmatprep.subr.mxu0 0.0
        %551 = vmatpush1.msra.mxu0 0.0
        %552 = vmatprep.subr.mxu0 0.0
        %553 = vmatpush1.msra.mxu0 0.0
        %554 = vmatprep.subr.mxu0 0.0
        %555 = vmatpush1.msra.mxu0 0.0
        %556 = vmatprep.subr.mxu0 0.0
        %557 = vmatpush1.msra.mxu0 0.0
        %558 = vmatprep.subr.mxu0 0.0
        %559 = vmatpush1.msra.mxu0 0.0
        %560 = vmatprep.subr.mxu0 0.0
        %561 = vmatpush1.msra.mxu0 0.0
        %562 = vmatprep.subr.mxu0 0.0
        %563 = vmatpush1.msra.mxu0 0.0
        %564 = vmatprep.subr.mxu0 0.0
        %565 = vmatpush1.msra.mxu0 0.0
        %566 = vmatprep.subr.mxu0 0.0
        %567 = vmatpush1.msra.mxu0 0.0
        %568 = vmatprep.subr.mxu0 0.0
        %569 = vmatpush1.msra.mxu0 0.0
        %570 = vmatprep.subr.mxu0 0.0
        %571 = vmatpush1.msra.mxu0 0.0
        %572 = vmatprep.subr.mxu0 0.0
        %573 = vmatpush1.msra.mxu0 0.0
        %574 = vmatprep.subr.mxu0 0.0
        %575 = vmatpush1.msra.mxu0 0.0
        %576 = vmatprep.subr.mxu0 0.0
        %577 = vmatpush1.msra.mxu0 0.0
        %578 = vmatprep.subr.mxu0 0.0
        %579 = vmatpush1.msra.mxu0 0.0
        %580 = vmatprep.subr.mxu0 0.0
        %581 = vmatpush1.msra.mxu0 0.0
        %582 = vmatprep.subr.mxu0 0.0
        %583 = vmatpush1.msra.mxu0 0.0
        %584 = vmatprep.subr.mxu0 0.0
        %585 = vmatpush1.msra.mxu0 0.0
        %586 = vmatprep.subr.mxu0 0.0
        %587 = vmatpush1.msra.mxu0 0.0
        %588 = vmatprep.subr.mxu0 0.0
        %589 = vmatpush1.msra.mxu0 0.0
        %590 = vmatprep.subr.mxu0 0.0
        %591 = vmatpush1.msra.mxu0 0.0
        %592 = vmatprep.subr.mxu0 0.0
        %593 = vmatpush1.msra.mxu0 0.0
        %594 = vmatprep.subr.mxu0 0.0
        %595 = vmatpush1.msra.mxu0 0.0
        %596 = vmatprep.subr.mxu0 0.0
        %597 = vmatpush1.msra.mxu0 0.0
        %598 = vmatprep.subr.mxu0 0.0
        %599 = vmatpush1.msra.mxu0 0.0
        %600 = vmatprep.subr.mxu0 0.0
        %601 = vmatpush1.msra.mxu0 0.0
        %602 = vmatprep.subr.mxu0 0.0
        %603 = vmatpush1.msra.mxu0 0.0
        %604 = vmatprep.subr.mxu0 0.0
        %605 = vmatpush1.msra.mxu0 0.0
        %606 = vmatprep.mubr.f32.mxu0 0.0
        %v607 = vand.u32 %v187, 4294901760
        %v608 = vsub.f32 %v187, %v607
        %609 = vmatmul.mubr.f32.gmra.mrb[0].mxu0 %v608
        %v610 = vpop.f32.mrb[0].mxu0
        %v611 = vadd.f32 %v471, %v610
        %v612 = vpop.f32.mrb[0].mxu0
        %v613 = vadd.f32 %v473, %v612
        %614 = vmatprep.mubr.f32.mxu0 0.0
        %v615 = vand.u32 %v190, 4294901760
        %v616 = vsub.f32 %v190, %v615
        %617 = vmatmul.mubr.f32.gmra.mrb[0].mxu0 %v616
        %v618 = vpop.f32.mrb[0].mxu0
        %v619 = vadd.f32 %v478, %v618
        %v620 = vpop.f32.mrb[0].mxu0
        %v621 = vadd.f32 %v480, %v620
        %622 = vmatprep.mubr.f32.mxu0 0.0
        %v623 = vand.u32 %v193, 4294901760
        %v624 = vsub.f32 %v193, %v623
        %625 = vmatmul.mubr.f32.gmra.mrb[0].mxu0 %v624
        %v626 = vpop.f32.mrb[0].mxu0
        %v627 = vadd.f32 %v485, %v626
        %v628 = vpop.f32.mrb[0].mxu0
        %v629 = vadd.f32 %v487, %v628
        %630 = vmatprep.mubr.f32.mxu0 0.0
        %v631 = vand.u32 %v196, 4294901760
        %v632 = vsub.f32 %v196, %v631
        %633 = vmatmul.mubr.f32.gmra.mrb[0].mxu0 %v632
        %v634 = vpop.f32.mrb[0].mxu0
        %v635 = vadd.f32 %v492, %v634
        %v636 = vpop.f32.mrb[0].mxu0
        %v637 = vadd.f32 %v494, %v636
        %638 = vmatprep.mubr.f32.mxu0 0.0
        %v639 = vand.u32 %v199, 4294901760
        %v640 = vsub.f32 %v199, %v639
        %641 = vmatmul.mubr.f32.gmra.mrb[0].mxu0 %v640
        %v642 = vpop.f32.mrb[0].mxu0
        %v643 = vadd.f32 %v499, %v642
        %v644 = vpop.f32.mrb[0].mxu0
        %v645 = vadd.f32 %v501, %v644
        %646 = vmatprep.mubr.f32.mxu0 0.0
        %v647 = vand.u32 %v202, 4294901760
        %v648 = vsub.f32 %v202, %v647
        %649 = vmatmul.mubr.f32.gmra.mrb[0].mxu0 %v648
        %v650 = vpop.f32.mrb[0].mxu0
        %v651 = vadd.f32 %v506, %v650
        %v652 = vpop.f32.mrb[0].mxu0
        %v653 = vadd.f32 %v508, %v652
        %654 = vmatprep.mubr.f32.mxu0 0.0
        %v655 = vand.u32 %v205, 4294901760
        %v656 = vsub.f32 %v205, %v655
        %657 = vmatmul.mubr.f32.gmra.mrb[0].mxu0 %v656
        %v658 = vpop.f32.mrb[0].mxu0
        %v659 = vadd.f32 %v513, %v658
        %v660 = vpop.f32.mrb[0].mxu0
        %v661 = vadd.f32 %v515, %v660
        %662 = vmatprep.mubr.f32.mxu0 0.0
        %v663 = vand.u32 %v208, 4294901760
        %v664 = vsub.f32 %v208, %v663
        %665 = vmatmul.mubr.f32.gmra.mrb[0].mxu0 %v664
        %v666 = vpop.f32.mrb[0].mxu0
        %v667 = vadd.f32 %v520, %v666
        %v668 = vpop.f32.mrb[0].mxu0
        %v669 = vadd.f32 %v522, %v668
        %670 = vmatprep.mubr.f32.mxu0 0.0
        %v671 = vand.u32 %v211, 4294901760
        %v672 = vsub.f32 %v211, %v671
        %673 = vmatmul.mubr.f32.gmra.mrb[0].mxu0 %v672
        %v674 = vpop.f32.mrb[0].mxu0
        %v675 = vadd.f32 %v527, %v674
        %v676 = vpop.f32.mrb[0].mxu0
        %v677 = vadd.f32 %v529, %v676
        %678 = vmatprep.mubr.f32.mxu0 0.0
        %v679 = vand.u32 %v214, 4294901760
        %v680 = vsub.f32 %v214, %v679
        %681 = vmatmul.mubr.f32.gmra.mrb[0].mxu0 %v680
        %v682 = vpop.f32.mrb[0].mxu0
        %v683 = vadd.f32 %v534, %v682
        %v684 = vpop.f32.mrb[0].mxu0
        %v685 = vadd.f32 %v536, %v684
        %686 = vdwg.mxu0
        %v687 = vand.u32 %v182, 4294901760
        %688 = vmatprep.subr.mxu0 %v687
        %v689 = vand.u32 %v181, 4294901760
        %690 = vmatpush1.msra.mxu0 %v689
        %691 = vmatprep.subr.mxu0 0.0
        %692 = vmatpush1.msra.mxu0 0.0
        %693 = vmatprep.subr.mxu0 0.0
        %694 = vmatpush1.msra.mxu0 0.0
        %695 = vmatprep.subr.mxu0 0.0
        %696 = vmatpush1.msra.mxu0 0.0
        %697 = vmatprep.subr.mxu0 0.0
        %698 = vmatpush1.msra.mxu0 0.0
        %699 = vmatprep.subr.mxu0 0.0
        %700 = vmatpush1.msra.mxu0 0.0
        %701 = vmatprep.subr.mxu0 0.0
        %702 = vmatpush1.msra.mxu0 0.0
        %703 = vmatprep.subr.mxu0 0.0
        %704 = vmatpush1.msra.mxu0 0.0
        %705 = vmatprep.subr.mxu0 0.0
        %706 = vmatpush1.msra.mxu0 0.0
        %707 = vmatprep.subr.mxu0 0.0
        %708 = vmatpush1.msra.mxu0 0.0
        %709 = vmatprep.subr.mxu0 0.0
        %710 = vmatpush1.msra.mxu0 0.0
        %711 = vmatprep.subr.mxu0 0.0
        %712 = vmatpush1.msra.mxu0 0.0
        %713 = vmatprep.subr.mxu0 0.0
        %714 = vmatpush1.msra.mxu0 0.0
        %715 = vmatprep.subr.mxu0 0.0
        %716 = vmatpush1.msra.mxu0 0.0
        %717 = vmatprep.subr.mxu0 0.0
        %718 = vmatpush1.msra.mxu0 0.0
        %719 = vmatprep.subr.mxu0 0.0
        %720 = vmatpush1.msra.mxu0 0.0
        %721 = vmatprep.subr.mxu0 0.0
        %722 = vmatpush1.msra.mxu0 0.0
        %723 = vmatprep.subr.mxu0 0.0
        %724 = vmatpush1.msra.mxu0 0.0
        %725 = vmatprep.subr.mxu0 0.0
        %726 = vmatpush1.msra.mxu0 0.0
        %727 = vmatprep.subr.mxu0 0.0
        %728 = vmatpush1.msra.mxu0 0.0
        %729 = vmatprep.subr.mxu0 0.0
        %730 = vmatpush1.msra.mxu0 0.0
        %731 = vmatprep.subr.mxu0 0.0
        %732 = vmatpush1.msra.mxu0 0.0
        %733 = vmatprep.subr.mxu0 0.0
        %734 = vmatpush1.msra.mxu0 0.0
        %735 = vmatprep.subr.mxu0 0.0
        %736 = vmatpush1.msra.mxu0 0.0
        %737 = vmatprep.subr.mxu0 0.0
        %738 = vmatpush1.msra.mxu0 0.0
        %739 = vmatprep.subr.mxu0 0.0
        %740 = vmatpush1.msra.mxu0 0.0
        %741 = vmatprep.subr.mxu0 0.0
        %742 = vmatpush1.msra.mxu0 0.0
        %743 = vmatprep.subr.mxu0 0.0
        %744 = vmatpush1.msra.mxu0 0.0
        %745 = vmatprep.subr.mxu0 0.0
        %746 = vmatpush1.msra.mxu0 0.0
        %747 = vmatprep.subr.mxu0 0.0
        %748 = vmatpush1.msra.mxu0 0.0
        %749 = vmatprep.subr.mxu0 0.0
        %750 = vmatpush1.msra.mxu0 0.0
        %751 = vmatprep.subr.mxu0 0.0
        %752 = vmatpush1.msra.mxu0 0.0
        %753 = vmatprep.mubr.f32.mxu0 0.0
        %v754 = vand.u32 %v187, 4294901760
        %v755 = vsub.f32 %v187, %v754
        %v756 = vand.u32 %v755, 4294901760
        %757 = vmatmul.mubr.f32.gmra.mrb[0].mxu0 %v756
        %v758 = vpop.f32.mrb[0].mxu0
        %v759 = vadd.f32 %v611, %v758
        %v760 = vpop.f32.mrb[0].mxu0
        %v761 = vadd.f32 %v613, %v760
        %762 = vmatprep.mubr.f32.mxu0 0.0
        %v763 = vand.u32 %v190, 4294901760
        %v764 = vsub.f32 %v190, %v763
        %v765 = vand.u32 %v764, 4294901760
        %766 = vmatmul.mubr.f32.gmra.mrb[0].mxu0 %v765
        %v767 = vpop.f32.mrb[0].mxu0
        %v768 = vadd.f32 %v619, %v767
        %v769 = vpop.f32.mrb[0].mxu0
        %v770 = vadd.f32 %v621, %v769
        %771 = vmatprep.mubr.f32.mxu0 0.0
        %v772 = vand.u32 %v193, 4294901760
        %v773 = vsub.f32 %v193, %v772
        %v774 = vand.u32 %v773, 4294901760
        %775 = vmatmul.mubr.f32.gmra.mrb[0].mxu0 %v774
        %v776 = vpop.f32.mrb[0].mxu0
        %v777 = vadd.f32 %v627, %v776
        %v778 = vpop.f32.mrb[0].mxu0
        %v779 = vadd.f32 %v629, %v778
        %780 = vmatprep.mubr.f32.mxu0 0.0
        %v781 = vand.u32 %v196, 4294901760
        %v782 = vsub.f32 %v196, %v781
        %v783 = vand.u32 %v782, 4294901760
        %784 = vmatmul.mubr.f32.gmra.mrb[0].mxu0 %v783
        %v785 = vpop.f32.mrb[0].mxu0
        %v786 = vadd.f32 %v635, %v785
        %v787 = vpop.f32.mrb[0].mxu0
        %v788 = vadd.f32 %v637, %v787
        %789 = vmatprep.mubr.f32.mxu0 0.0
        %v790 = vand.u32 %v199, 4294901760
        %v791 = vsub.f32 %v199, %v790
        %v792 = vand.u32 %v791, 4294901760
        %793 = vmatmul.mubr.f32.gmra.mrb[0].mxu0 %v792
        %v794 = vpop.f32.mrb[0].mxu0
        %v795 = vadd.f32 %v643, %v794
        %v796 = vpop.f32.mrb[0].mxu0
        %v797 = vadd.f32 %v645, %v796
        %798 = vmatprep.mubr.f32.mxu0 0.0
        %v799 = vand.u32 %v202, 4294901760
        %v800 = vsub.f32 %v202, %v799
        %v801 = vand.u32 %v800, 4294901760
        %802 = vmatmul.mubr.f32.gmra.mrb[0].mxu0 %v801
        %v803 = vpop.f32.mrb[0].mxu0
        %v804 = vadd.f32 %v651, %v803
        %v805 = vpop.f32.mrb[0].mxu0
        %v806 = vadd.f32 %v653, %v805
        %807 = vmatprep.mubr.f32.mxu0 0.0
        %v808 = vand.u32 %v205, 4294901760
        %v809 = vsub.f32 %v205, %v808
        %v810 = vand.u32 %v809, 4294901760
        %811 = vmatmul.mubr.f32.gmra.mrb[0].mxu0 %v810
        %v812 = vpop.f32.mrb[0].mxu0
        %v813 = vadd.f32 %v659, %v812
        %v814 = vpop.f32.mrb[0].mxu0
        %v815 = vadd.f32 %v661, %v814
        %816 = vmatprep.mubr.f32.mxu0 0.0
        %v817 = vand.u32 %v208, 4294901760
        %v818 = vsub.f32 %v208, %v817
        %v819 = vand.u32 %v818, 4294901760
        %820 = vmatmul.mubr.f32.gmra.mrb[0].mxu0 %v819
        %v821 = vpop.f32.mrb[0].mxu0
        %v822 = vadd.f32 %v667, %v821
        %v823 = vpop.f32.mrb[0].mxu0
        %v824 = vadd.f32 %v669, %v823
        %825 = vmatprep.mubr.f32.mxu0 0.0
        %v826 = vand.u32 %v211, 4294901760
        %v827 = vsub.f32 %v211, %v826
        %v828 = vand.u32 %v827, 4294901760
        %829 = vmatmul.mubr.f32.gmra.mrb[0].mxu0 %v828
        %v830 = vpop.f32.mrb[0].mxu0
        %v831 = vadd.f32 %v675, %v830
        %v832 = vpop.f32.mrb[0].mxu0
        %v833 = vadd.f32 %v677, %v832
        %834 = vmatprep.mubr.f32.mxu0 0.0
        %v835 = vand.u32 %v214, 4294901760
        %v836 = vsub.f32 %v214, %v835
        %v837 = vand.u32 %v836, 4294901760
        %838 = vmatmul.mubr.f32.gmra.mrb[0].mxu0 %v837
        %v839 = vpop.f32.mrb[0].mxu0
        %v840 = vadd.f32 %v683, %v839
        %v841 = vpop.f32.mrb[0].mxu0
        %v842 = vadd.f32 %v685, %v841
        %843 = vdwg.mxu0
        %v844 = vand.u32 %v182, 4294901760
        %v845 = vsub.f32 %v182, %v844
        %v846 = vand.u32 %v845, 4294901760
        %847 = vmatprep.subr.mxu0 %v846
        %v848 = vand.u32 %v181, 4294901760
        %v849 = vsub.f32 %v181, %v848
        %v850 = vand.u32 %v849, 4294901760
        %851 = vmatpush1.msra.mxu0 %v850
        %852 = vmatprep.subr.mxu0 0.0
        %853 = vmatpush1.msra.mxu0 0.0
        %854 = vmatprep.subr.mxu0 0.0
        %855 = vmatpush1.msra.mxu0 0.0
        %856 = vmatprep.subr.mxu0 0.0
        %857 = vmatpush1.msra.mxu0 0.0
        %858 = vmatprep.subr.mxu0 0.0
        %859 = vmatpush1.msra.mxu0 0.0
        %860 = vmatprep.subr.mxu0 0.0
        %861 = vmatpush1.msra.mxu0 0.0
        %862 = vmatprep.subr.mxu0 0.0
        %863 = vmatpush1.msra.mxu0 0.0
        %864 = vmatprep.subr.mxu0 0.0
        %865 = vmatpush1.msra.mxu0 0.0
        %866 = vmatprep.subr.mxu0 0.0
        %867 = vmatpush1.msra.mxu0 0.0
        %868 = vmatprep.subr.mxu0 0.0
        %869 = vmatpush1.msra.mxu0 0.0
        %870 = vmatprep.subr.mxu0 0.0
        %871 = vmatpush1.msra.mxu0 0.0
        %872 = vmatprep.subr.mxu0 0.0
        %873 = vmatpush1.msra.mxu0 0.0
        %874 = vmatprep.subr.mxu0 0.0
        %875 = vmatpush1.msra.mxu0 0.0
        %876 = vmatprep.subr.mxu0 0.0
        %877 = vmatpush1.msra.mxu0 0.0
        %878 = vmatprep.subr.mxu0 0.0
        %879 = vmatpush1.msra.mxu0 0.0
        %880 = vmatprep.subr.mxu0 0.0
        %881 = vmatpush1.msra.mxu0 0.0
        %882 = vmatprep.subr.mxu0 0.0
        %883 = vmatpush1.msra.mxu0 0.0
        %884 = vmatprep.subr.mxu0 0.0
        %885 = vmatpush1.msra.mxu0 0.0
        %886 = vmatprep.subr.mxu0 0.0
        %887 = vmatpush1.msra.mxu0 0.0
        %888 = vmatprep.subr.mxu0 0.0
        %889 = vmatpush1.msra.mxu0 0.0
        %890 = vmatprep.subr.mxu0 0.0
        %891 = vmatpush1.msra.mxu0 0.0
        %892 = vmatprep.subr.mxu0 0.0
        %893 = vmatpush1.msra.mxu0 0.0
        %894 = vmatprep.subr.mxu0 0.0
        %895 = vmatpush1.msra.mxu0 0.0
        %896 = vmatprep.subr.mxu0 0.0
        %897 = vmatpush1.msra.mxu0 0.0
        %898 = vmatprep.subr.mxu0 0.0
        %899 = vmatpush1.msra.mxu0 0.0
        %900 = vmatprep.subr.mxu0 0.0
        %901 = vmatpush1.msra.mxu0 0.0
        %902 = vmatprep.subr.mxu0 0.0
        %903 = vmatpush1.msra.mxu0 0.0
        %904 = vmatprep.subr.mxu0 0.0
        %905 = vmatpush1.msra.mxu0 0.0
        %906 = vmatprep.subr.mxu0 0.0
        %907 = vmatpush1.msra.mxu0 0.0
        %908 = vmatprep.subr.mxu0 0.0
        %909 = vmatpush1.msra.mxu0 0.0
        %910 = vmatprep.subr.mxu0 0.0
        %911 = vmatpush1.msra.mxu0 0.0
        %912 = vmatprep.subr.mxu0 0.0
        %913 = vmatpush1.msra.mxu0 0.0
        %914 = vmatprep.mubr.f32.mxu0 0.0
        %v915 = vand.u32 %v187, 4294901760
        %916 = vmatmul.mubr.f32.gmra.mrb[0].mxu0 %v915
        %v917 = vpop.f32.mrb[0].mxu0
        %v918 = vadd.f32 %v759, %v917
        %v919 = vpop.f32.mrb[0].mxu0
        %v920 = vadd.f32 %v761, %v919
        %921 = vmatprep.mubr.f32.mxu0 0.0
        %v922 = vand.u32 %v190, 4294901760
        %923 = vmatmul.mubr.f32.gmra.mrb[0].mxu0 %v922
        %v924 = vpop.f32.mrb[0].mxu0
        %v925 = vadd.f32 %v768, %v924
        %v926 = vpop.f32.mrb[0].mxu0
        %v927 = vadd.f32 %v770, %v926
        %928 = vmatprep.mubr.f32.mxu0 0.0
        %v929 = vand.u32 %v193, 4294901760
        %930 = vmatmul.mubr.f32.gmra.mrb[0].mxu0 %v929
        %v931 = vpop.f32.mrb[0].mxu0
        %v932 = vadd.f32 %v777, %v931
        %v933 = vpop.f32.mrb[0].mxu0
        %v934 = vadd.f32 %v779, %v933
        %935 = vmatprep.mubr.f32.mxu0 0.0
        %v936 = vand.u32 %v196, 4294901760
        %937 = vmatmul.mubr.f32.gmra.mrb[0].mxu0 %v936
        %v938 = vpop.f32.mrb[0].mxu0
        %v939 = vadd.f32 %v786, %v938
        %v940 = vpop.f32.mrb[0].mxu0
        %v941 = vadd.f32 %v788, %v940
        %942 = vmatprep.mubr.f32.mxu0 0.0
        %v943 = vand.u32 %v199, 4294901760
        %944 = vmatmul.mubr.f32.gmra.mrb[0].mxu0 %v943
        %v945 = vpop.f32.mrb[0].mxu0
        %v946 = vadd.f32 %v795, %v945
        %v947 = vpop.f32.mrb[0].mxu0
        %v948 = vadd.f32 %v797, %v947
        %949 = vmatprep.mubr.f32.mxu0 0.0
        %v950 = vand.u32 %v202, 4294901760
        %951 = vmatmul.mubr.f32.gmra.mrb[0].mxu0 %v950
        %v952 = vpop.f32.mrb[0].mxu0
        %v953 = vadd.f32 %v804, %v952
        %v954 = vpop.f32.mrb[0].mxu0
        %v955 = vadd.f32 %v806, %v954
        %956 = vmatprep.mubr.f32.mxu0 0.0
        %v957 = vand.u32 %v205, 4294901760
        %958 = vmatmul.mubr.f32.gmra.mrb[0].mxu0 %v957
        %v959 = vpop.f32.mrb[0].mxu0
        %v960 = vadd.f32 %v813, %v959
        %v961 = vpop.f32.mrb[0].mxu0
        %v962 = vadd.f32 %v815, %v961
        %963 = vmatprep.mubr.f32.mxu0 0.0
        %v964 = vand.u32 %v208, 4294901760
        %965 = vmatmul.mubr.f32.gmra.mrb[0].mxu0 %v964
        %v966 = vpop.f32.mrb[0].mxu0
        %v967 = vadd.f32 %v822, %v966
        %v968 = vpop.f32.mrb[0].mxu0
        %v969 = vadd.f32 %v824, %v968
        %970 = vmatprep.mubr.f32.mxu0 0.0
        %v971 = vand.u32 %v211, 4294901760
        %972 = vmatmul.mubr.f32.gmra.mrb[0].mxu0 %v971
        %v973 = vpop.f32.mrb[0].mxu0
        %v974 = vadd.f32 %v831, %v973
        %v975 = vpop.f32.mrb[0].mxu0
        %v976 = vadd.f32 %v833, %v975
        %977 = vmatprep.mubr.f32.mxu0 0.0
        %v978 = vand.u32 %v214, 4294901760
        %979 = vmatmul.mubr.f32.gmra.mrb[0].mxu0 %v978
        %v980 = vpop.f32.mrb[0].mxu0
        %v981 = vadd.f32 %v840, %v980
        %v982 = vpop.f32.mrb[0].mxu0
        %v983 = vadd.f32 %v842, %v982
        %984 = vdwg.mxu0
        %v985 = vand.u32 %v182, 4294901760
        %986 = vmatprep.subr.mxu0 %v985
        %v987 = vand.u32 %v181, 4294901760
        %988 = vmatpush1.msra.mxu0 %v987
        %989 = vmatprep.subr.mxu0 0.0
        %990 = vmatpush1.msra.mxu0 0.0
        %991 = vmatprep.subr.mxu0 0.0
        %992 = vmatpush1.msra.mxu0 0.0
        %993 = vmatprep.subr.mxu0 0.0
        %994 = vmatpush1.msra.mxu0 0.0
        %995 = vmatprep.subr.mxu0 0.0
        %996 = vmatpush1.msra.mxu0 0.0
        %997 = vmatprep.subr.mxu0 0.0
        %998 = vmatpush1.msra.mxu0 0.0
        %999 = vmatprep.subr.mxu0 0.0
        %1000 = vmatpush1.msra.mxu0 0.0
        %1001 = vmatprep.subr.mxu0 0.0
        %1002 = vmatpush1.msra.mxu0 0.0
        %1003 = vmatprep.subr.mxu0 0.0
        %1004 = vmatpush1.msra.mxu0 0.0
        %1005 = vmatprep.subr.mxu0 0.0
        %1006 = vmatpush1.msra.mxu0 0.0
        %1007 = vmatprep.subr.mxu0 0.0
        %1008 = vmatpush1.msra.mxu0 0.0
        %1009 = vmatprep.subr.mxu0 0.0
        %1010 = vmatpush1.msra.mxu0 0.0
        %1011 = vmatprep.subr.mxu0 0.0
        %1012 = vmatpush1.msra.mxu0 0.0
        %1013 = vmatprep.subr.mxu0 0.0
        %1014 = vmatpush1.msra.mxu0 0.0
        %1015 = vmatprep.subr.mxu0 0.0
        %1016 = vmatpush1.msra.mxu0 0.0
        %1017 = vmatprep.subr.mxu0 0.0
        %1018 = vmatpush1.msra.mxu0 0.0
        %1019 = vmatprep.subr.mxu0 0.0
        %1020 = vmatpush1.msra.mxu0 0.0
        %1021 = vmatprep.subr.mxu0 0.0
        %1022 = vmatpush1.msra.mxu0 0.0
        %1023 = vmatprep.subr.mxu0 0.0
        %1024 = vmatpush1.msra.mxu0 0.0
        %1025 = vmatprep.subr.mxu0 0.0
        %1026 = vmatpush1.msra.mxu0 0.0
        %1027 = vmatprep.subr.mxu0 0.0
        %1028 = vmatpush1.msra.mxu0 0.0
        %1029 = vmatprep.subr.mxu0 0.0
        %1030 = vmatpush1.msra.mxu0 0.0
        %1031 = vmatprep.subr.mxu0 0.0
        %1032 = vmatpush1.msra.mxu0 0.0
        %1033 = vmatprep.subr.mxu0 0.0
        %1034 = vmatpush1.msra.mxu0 0.0
        %1035 = vmatprep.subr.mxu0 0.0
        %1036 = vmatpush1.msra.mxu0 0.0
        %1037 = vmatprep.subr.mxu0 0.0
        %1038 = vmatpush1.msra.mxu0 0.0
        %1039 = vmatprep.subr.mxu0 0.0
        %1040 = vmatpush1.msra.mxu0 0.0
        %1041 = vmatprep.subr.mxu0 0.0
        %1042 = vmatpush1.msra.mxu0 0.0
        %1043 = vmatprep.subr.mxu0 0.0
        %1044 = vmatpush1.msra.mxu0 0.0
        %1045 = vmatprep.subr.mxu0 0.0
        %1046 = vmatpush1.msra.mxu0 0.0
        %1047 = vmatprep.subr.mxu0 0.0
        %1048 = vmatpush1.msra.mxu0 0.0
        %1049 = vmatprep.subr.mxu0 0.0
        %1050 = vmatpush1.msra.mxu0 0.0
        %1051 = vmatprep.mubr.f32.mxu0 0.0
        %v1052 = vand.u32 %v187, 4294901760
        %1053 = vmatmul.mubr.f32.gmra.mrb[0].mxu0 %v1052
        %v1054 = vpop.f32.mrb[0].mxu0
        %v1055 = vadd.f32 %v918, %v1054
        %v1056 = vpop.f32.mrb[0].mxu0
        %v1057 = vadd.f32 %v920, %v1056
        %1058 = vmatprep.mubr.f32.mxu0 0.0
        %v1059 = vand.u32 %v190, 4294901760
        %1060 = vmatmul.mubr.f32.gmra.mrb[0].mxu0 %v1059
        %v1061 = vpop.f32.mrb[0].mxu0
        %v1062 = vadd.f32 %v925, %v1061
        %v1063 = vpop.f32.mrb[0].mxu0
        %v1064 = vadd.f32 %v927, %v1063
        %1065 = vmatprep.mubr.f32.mxu0 0.0
        %v1066 = vand.u32 %v193, 4294901760
        %1067 = vmatmul.mubr.f32.gmra.mrb[0].mxu0 %v1066
        %v1068 = vpop.f32.mrb[0].mxu0
        %v1069 = vadd.f32 %v932, %v1068
        %v1070 = vpop.f32.mrb[0].mxu0
        %v1071 = vadd.f32 %v934, %v1070
        %1072 = vmatprep.mubr.f32.mxu0 0.0
        %v1073 = vand.u32 %v196, 4294901760
        %1074 = vmatmul.mubr.f32.gmra.mrb[0].mxu0 %v1073
        %v1075 = vpop.f32.mrb[0].mxu0
        %v1076 = vadd.f32 %v939, %v1075
        %v1077 = vpop.f32.mrb[0].mxu0
        %v1078 = vadd.f32 %v941, %v1077
        %1079 = vmatprep.mubr.f32.mxu0 0.0
        %v1080 = vand.u32 %v199, 4294901760
        %1081 = vmatmul.mubr.f32.gmra.mrb[0].mxu0 %v1080
        %v1082 = vpop.f32.mrb[0].mxu0
        %v1083 = vadd.f32 %v946, %v1082
        %v1084 = vpop.f32.mrb[0].mxu0
        %v1085 = vadd.f32 %v948, %v1084
        %1086 = vmatprep.mubr.f32.mxu0 0.0
        %v1087 = vand.u32 %v202, 4294901760
        %1088 = vmatmul.mubr.f32.gmra.mrb[0].mxu0 %v1087
        %v1089 = vpop.f32.mrb[0].mxu0
        %v1090 = vadd.f32 %v953, %v1089
        %v1091 = vpop.f32.mrb[0].mxu0
        %v1092 = vadd.f32 %v955, %v1091
        %1093 = vmatprep.mubr.f32.mxu0 0.0
        %v1094 = vand.u32 %v205, 4294901760
        %1095 = vmatmul.mubr.f32.gmra.mrb[0].mxu0 %v1094
        %v1096 = vpop.f32.mrb[0].mxu0
        %v1097 = vadd.f32 %v960, %v1096
        %v1098 = vpop.f32.mrb[0].mxu0
        %v1099 = vadd.f32 %v962, %v1098
        %1100 = vmatprep.mubr.f32.mxu0 0.0
        %v1101 = vand.u32 %v208, 4294901760
        %1102 = vmatmul.mubr.f32.gmra.mrb[0].mxu0 %v1101
        %v1103 = vpop.f32.mrb[0].mxu0
        %v1104 = vadd.f32 %v967, %v1103
        %v1105 = vpop.f32.mrb[0].mxu0
        %v1106 = vadd.f32 %v969, %v1105
        %1107 = vmatprep.mubr.f32.mxu0 0.0
        %v1108 = vand.u32 %v211, 4294901760
        %1109 = vmatmul.mubr.f32.gmra.mrb[0].mxu0 %v1108
        %v1110 = vpop.f32.mrb[0].mxu0
        %v1111 = vadd.f32 %v974, %v1110
        %v1112 = vpop.f32.mrb[0].mxu0
        %v1113 = vadd.f32 %v976, %v1112
        %1114 = vmatprep.mubr.f32.mxu0 0.0
        %v1115 = vand.u32 %v214, 4294901760
        %1116 = vmatmul.mubr.f32.gmra.mrb[0].mxu0 %v1115
        %v1117 = vpop.f32.mrb[0].mxu0
        %v1118 = vadd.f32 %v981, %v1117
        %v1119 = vpop.f32.mrb[0].mxu0
        %v1120 = vadd.f32 %v983, %v1119
        %1121 = vdwg.mxu0
        %v1122 = vand.u32 %v184, 4294901760
        %1123 = vmatprep.subr.mxu0 %v1122
        %v1124 = vand.u32 %v183, 4294901760
        %1125 = vmatpush1.msra.mxu0 %v1124
        %1126 = vmatprep.subr.mxu0 0.0
        %1127 = vmatpush1.msra.mxu0 0.0
        %1128 = vmatprep.subr.mxu0 0.0
        %1129 = vmatpush1.msra.mxu0 0.0
        %1130 = vmatprep.subr.mxu0 0.0
        %1131 = vmatpush1.msra.mxu0 0.0
        %1132 = vmatprep.subr.mxu0 0.0
        %1133 = vmatpush1.msra.mxu0 0.0
        %1134 = vmatprep.subr.mxu0 0.0
        %1135 = vmatpush1.msra.mxu0 0.0
        %1136 = vmatprep.subr.mxu0 0.0
        %1137 = vmatpush1.msra.mxu0 0.0
        %1138 = vmatprep.subr.mxu0 0.0
        %1139 = vmatpush1.msra.mxu0 0.0
        %1140 = vmatprep.subr.mxu0 0.0
        %1141 = vmatpush1.msra.mxu0 0.0
        %1142 = vmatprep.subr.mxu0 0.0
        %1143 = vmatpush1.msra.mxu0 0.0
        %1144 = vmatprep.subr.mxu0 0.0
        %1145 = vmatpush1.msra.mxu0 0.0
        %1146 = vmatprep.subr.mxu0 0.0
        %1147 = vmatpush1.msra.mxu0 0.0
        %1148 = vmatprep.subr.mxu0 0.0
        %1149 = vmatpush1.msra.mxu0 0.0
        %1150 = vmatprep.subr.mxu0 0.0
        %1151 = vmatpush1.msra.mxu0 0.0
        %1152 = vmatprep.subr.mxu0 0.0
        %1153 = vmatpush1.msra.mxu0 0.0
        %1154 = vmatprep.subr.mxu0 0.0
        %1155 = vmatpush1.msra.mxu0 0.0
        %1156 = vmatprep.subr.mxu0 0.0
        %1157 = vmatpush1.msra.mxu0 0.0
        %1158 = vmatprep.subr.mxu0 0.0
        %1159 = vmatpush1.msra.mxu0 0.0
        %1160 = vmatprep.subr.mxu0 0.0
        %1161 = vmatpush1.msra.mxu0 0.0
        %1162 = vmatprep.subr.mxu0 0.0
        %1163 = vmatpush1.msra.mxu0 0.0
        %1164 = vmatprep.subr.mxu0 0.0
        %1165 = vmatpush1.msra.mxu0 0.0
        %1166 = vmatprep.subr.mxu0 0.0
        %1167 = vmatpush1.msra.mxu0 0.0
        %1168 = vmatprep.subr.mxu0 0.0
        %1169 = vmatpush1.msra.mxu0 0.0
        %1170 = vmatprep.subr.mxu0 0.0
        %1171 = vmatpush1.msra.mxu0 0.0
        %1172 = vmatprep.subr.mxu0 0.0
        %1173 = vmatpush1.msra.mxu0 0.0
        %1174 = vmatprep.subr.mxu0 0.0
        %1175 = vmatpush1.msra.mxu0 0.0
        %1176 = vmatprep.subr.mxu0 0.0
        %1177 = vmatpush1.msra.mxu0 0.0
        %1178 = vmatprep.subr.mxu0 0.0
        %1179 = vmatpush1.msra.mxu0 0.0
        %1180 = vmatprep.subr.mxu0 0.0
        %1181 = vmatpush1.msra.mxu0 0.0
        %1182 = vmatprep.subr.mxu0 0.0
        %1183 = vmatpush1.msra.mxu0 0.0
        %1184 = vmatprep.subr.mxu0 0.0
        %1185 = vmatpush1.msra.mxu0 0.0
        %1186 = vmatprep.subr.mxu0 0.0
        %1187 = vmatpush1.msra.mxu0 0.0
        %1188 = vmatprep.mubr.f32.mxu0 0.0
        %v1189 = vand.u32 %v187, 4294901760
        %v1190 = vsub.f32 %v187, %v1189
        %v1191 = vand.u32 %v1190, 4294901760
        %v1192 = vsub.f32 %v1190, %v1191
        %v1193 = vand.u32 %v1192, 4294901760
        %1194 = vmatmul.mubr.f32.gmra.mrb[0].mxu0 %v1193
        %v1195 = vpop.f32.mrb[0].mxu0
        %v1196 = vadd.f32 0.0, %v1195
        %v1197 = vpop.f32.mrb[0].mxu0
        %v1198 = vadd.f32 0.0, %v1197
        %1199 = vmatprep.mubr.f32.mxu0 0.0
        %v1200 = vand.u32 %v190, 4294901760
        %v1201 = vsub.f32 %v190, %v1200
        %v1202 = vand.u32 %v1201, 4294901760
        %v1203 = vsub.f32 %v1201, %v1202
        %v1204 = vand.u32 %v1203, 4294901760
        %1205 = vmatmul.mubr.f32.gmra.mrb[0].mxu0 %v1204
        %v1206 = vpop.f32.mrb[0].mxu0
        %v1207 = vadd.f32 0.0, %v1206
        %v1208 = vpop.f32.mrb[0].mxu0
        %v1209 = vadd.f32 0.0, %v1208
        %1210 = vmatprep.mubr.f32.mxu0 0.0
        %v1211 = vand.u32 %v193, 4294901760
        %v1212 = vsub.f32 %v193, %v1211
        %v1213 = vand.u32 %v1212, 4294901760
        %v1214 = vsub.f32 %v1212, %v1213
        %v1215 = vand.u32 %v1214, 4294901760
        %1216 = vmatmul.mubr.f32.gmra.mrb[0].mxu0 %v1215
        %v1217 = vpop.f32.mrb[0].mxu0
        %v1218 = vadd.f32 0.0, %v1217
        %v1219 = vpop.f32.mrb[0].mxu0
        %v1220 = vadd.f32 0.0, %v1219
        %1221 = vmatprep.mubr.f32.mxu0 0.0
        %v1222 = vand.u32 %v196, 4294901760
        %v1223 = vsub.f32 %v196, %v1222
        %v1224 = vand.u32 %v1223, 4294901760
        %v1225 = vsub.f32 %v1223, %v1224
        %v1226 = vand.u32 %v1225, 4294901760
        %1227 = vmatmul.mubr.f32.gmra.mrb[0].mxu0 %v1226
        %v1228 = vpop.f32.mrb[0].mxu0
        %v1229 = vadd.f32 0.0, %v1228
        %v1230 = vpop.f32.mrb[0].mxu0
        %v1231 = vadd.f32 0.0, %v1230
        %1232 = vmatprep.mubr.f32.mxu0 0.0
        %v1233 = vand.u32 %v199, 4294901760
        %v1234 = vsub.f32 %v199, %v1233
        %v1235 = vand.u32 %v1234, 4294901760
        %v1236 = vsub.f32 %v1234, %v1235
        %v1237 = vand.u32 %v1236, 4294901760
        %1238 = vmatmul.mubr.f32.gmra.mrb[0].mxu0 %v1237
        %v1239 = vpop.f32.mrb[0].mxu0
        %v1240 = vadd.f32 0.0, %v1239
        %v1241 = vpop.f32.mrb[0].mxu0
        %v1242 = vadd.f32 0.0, %v1241
        %1243 = vmatprep.mubr.f32.mxu0 0.0
        %v1244 = vand.u32 %v202, 4294901760
        %v1245 = vsub.f32 %v202, %v1244
        %v1246 = vand.u32 %v1245, 4294901760
        %v1247 = vsub.f32 %v1245, %v1246
        %v1248 = vand.u32 %v1247, 4294901760
        %1249 = vmatmul.mubr.f32.gmra.mrb[0].mxu0 %v1248
        %v1250 = vpop.f32.mrb[0].mxu0
        %v1251 = vadd.f32 0.0, %v1250
        %v1252 = vpop.f32.mrb[0].mxu0
        %v1253 = vadd.f32 0.0, %v1252
        %1254 = vmatprep.mubr.f32.mxu0 0.0
        %v1255 = vand.u32 %v205, 4294901760
        %v1256 = vsub.f32 %v205, %v1255
        %v1257 = vand.u32 %v1256, 4294901760
        %v1258 = vsub.f32 %v1256, %v1257
        %v1259 = vand.u32 %v1258, 4294901760
        %1260 = vmatmul.mubr.f32.gmra.mrb[0].mxu0 %v1259
        %v1261 = vpop.f32.mrb[0].mxu0
        %v1262 = vadd.f32 0.0, %v1261
        %v1263 = vpop.f32.mrb[0].mxu0
        %v1264 = vadd.f32 0.0, %v1263
        %1265 = vmatprep.mubr.f32.mxu0 0.0
        %v1266 = vand.u32 %v208, 4294901760
        %v1267 = vsub.f32 %v208, %v1266
        %v1268 = vand.u32 %v1267, 4294901760
        %v1269 = vsub.f32 %v1267, %v1268
        %v1270 = vand.u32 %v1269, 4294901760
        %1271 = vmatmul.mubr.f32.gmra.mrb[0].mxu0 %v1270
        %v1272 = vpop.f32.mrb[0].mxu0
        %v1273 = vadd.f32 0.0, %v1272
        %v1274 = vpop.f32.mrb[0].mxu0
        %v1275 = vadd.f32 0.0, %v1274
        %1276 = vmatprep.mubr.f32.mxu0 0.0
        %v1277 = vand.u32 %v211, 4294901760
        %v1278 = vsub.f32 %v211, %v1277
        %v1279 = vand.u32 %v1278, 4294901760
        %v1280 = vsub.f32 %v1278, %v1279
        %v1281 = vand.u32 %v1280, 4294901760
        %1282 = vmatmul.mubr.f32.gmra.mrb[0].mxu0 %v1281
        %v1283 = vpop.f32.mrb[0].mxu0
        %v1284 = vadd.f32 0.0, %v1283
        %v1285 = vpop.f32.mrb[0].mxu0
        %v1286 = vadd.f32 0.0, %v1285
        %1287 = vmatprep.mubr.f32.mxu0 0.0
        %v1288 = vand.u32 %v214, 4294901760
        %v1289 = vsub.f32 %v214, %v1288
        %v1290 = vand.u32 %v1289, 4294901760
        %v1291 = vsub.f32 %v1289, %v1290
        %v1292 = vand.u32 %v1291, 4294901760
        %1293 = vmatmul.mubr.f32.gmra.mrb[0].mxu0 %v1292
        %v1294 = vpop.f32.mrb[0].mxu0
        %v1295 = vadd.f32 0.0, %v1294
        %v1296 = vpop.f32.mrb[0].mxu0
        %v1297 = vadd.f32 0.0, %v1296
        %1298 = vdwg.mxu0
        %v1299 = vand.u32 %v184, 4294901760
        %v1300 = vsub.f32 %v184, %v1299
        %v1301 = vand.u32 %v1300, 4294901760
        %v1302 = vsub.f32 %v1300, %v1301
        %v1303 = vand.u32 %v1302, 4294901760
        %1304 = vmatprep.subr.mxu0 %v1303
        %v1305 = vand.u32 %v183, 4294901760
        %v1306 = vsub.f32 %v183, %v1305
        %v1307 = vand.u32 %v1306, 4294901760
        %v1308 = vsub.f32 %v1306, %v1307
        %v1309 = vand.u32 %v1308, 4294901760
        %1310 = vmatpush1.msra.mxu0 %v1309
        %1311 = vmatprep.subr.mxu0 0.0
        %1312 = vmatpush1.msra.mxu0 0.0
        %1313 = vmatprep.subr.mxu0 0.0
        %1314 = vmatpush1.msra.mxu0 0.0
        %1315 = vmatprep.subr.mxu0 0.0
        %1316 = vmatpush1.msra.mxu0 0.0
        %1317 = vmatprep.subr.mxu0 0.0
        %1318 = vmatpush1.msra.mxu0 0.0
        %1319 = vmatprep.subr.mxu0 0.0
        %1320 = vmatpush1.msra.mxu0 0.0
        %1321 = vmatprep.subr.mxu0 0.0
        %1322 = vmatpush1.msra.mxu0 0.0
        %1323 = vmatprep.subr.mxu0 0.0
        %1324 = vmatpush1.msra.mxu0 0.0
        %1325 = vmatprep.subr.mxu0 0.0
        %1326 = vmatpush1.msra.mxu0 0.0
        %1327 = vmatprep.subr.mxu0 0.0
        %1328 = vmatpush1.msra.mxu0 0.0
        %1329 = vmatprep.subr.mxu0 0.0
        %1330 = vmatpush1.msra.mxu0 0.0
        %1331 = vmatprep.subr.mxu0 0.0
        %1332 = vmatpush1.msra.mxu0 0.0
        %1333 = vmatprep.subr.mxu0 0.0
        %1334 = vmatpush1.msra.mxu0 0.0
        %1335 = vmatprep.subr.mxu0 0.0
        %1336 = vmatpush1.msra.mxu0 0.0
        %1337 = vmatprep.subr.mxu0 0.0
        %1338 = vmatpush1.msra.mxu0 0.0
        %1339 = vmatprep.subr.mxu0 0.0
        %1340 = vmatpush1.msra.mxu0 0.0
        %1341 = vmatprep.subr.mxu0 0.0
        %1342 = vmatpush1.msra.mxu0 0.0
        %1343 = vmatprep.subr.mxu0 0.0
        %1344 = vmatpush1.msra.mxu0 0.0
        %1345 = vmatprep.subr.mxu0 0.0
        %1346 = vmatpush1.msra.mxu0 0.0
        %1347 = vmatprep.subr.mxu0 0.0
        %1348 = vmatpush1.msra.mxu0 0.0
        %1349 = vmatprep.subr.mxu0 0.0
        %1350 = vmatpush1.msra.mxu0 0.0
        %1351 = vmatprep.subr.mxu0 0.0
        %1352 = vmatpush1.msra.mxu0 0.0
        %1353 = vmatprep.subr.mxu0 0.0
        %1354 = vmatpush1.msra.mxu0 0.0
        %1355 = vmatprep.subr.mxu0 0.0
        %1356 = vmatpush1.msra.mxu0 0.0
        %1357 = vmatprep.subr.mxu0 0.0
        %1358 = vmatpush1.msra.mxu0 0.0
        %1359 = vmatprep.subr.mxu0 0.0
        %1360 = vmatpush1.msra.mxu0 0.0
        %1361 = vmatprep.subr.mxu0 0.0
        %1362 = vmatpush1.msra.mxu0 0.0
        %1363 = vmatprep.subr.mxu0 0.0
        %1364 = vmatpush1.msra.mxu0 0.0
        %1365 = vmatprep.subr.mxu0 0.0
        %1366 = vmatpush1.msra.mxu0 0.0
        %1367 = vmatprep.subr.mxu0 0.0
        %1368 = vmatpush1.msra.mxu0 0.0
        %1369 = vmatprep.subr.mxu0 0.0
        %1370 = vmatpush1.msra.mxu0 0.0
        %1371 = vmatprep.subr.mxu0 0.0
        %1372 = vmatpush1.msra.mxu0 0.0
        %1373 = vmatprep.mubr.f32.mxu0 0.0
        %v1374 = vand.u32 %v187, 4294901760
        %1375 = vmatmul.mubr.f32.gmra.mrb[0].mxu0 %v1374
        %v1376 = vpop.f32.mrb[0].mxu0
        %v1377 = vadd.f32 %v1196, %v1376
        %v1378 = vpop.f32.mrb[0].mxu0
        %v1379 = vadd.f32 %v1198, %v1378
        %1380 = vmatprep.mubr.f32.mxu0 0.0
        %v1381 = vand.u32 %v190, 4294901760
        %1382 = vmatmul.mubr.f32.gmra.mrb[0].mxu0 %v1381
        %v1383 = vpop.f32.mrb[0].mxu0
        %v1384 = vadd.f32 %v1207, %v1383
        %v1385 = vpop.f32.mrb[0].mxu0
        %v1386 = vadd.f32 %v1209, %v1385
        %1387 = vmatprep.mubr.f32.mxu0 0.0
        %v1388 = vand.u32 %v193, 4294901760
        %1389 = vmatmul.mubr.f32.gmra.mrb[0].mxu0 %v1388
        %v1390 = vpop.f32.mrb[0].mxu0
        %v1391 = vadd.f32 %v1218, %v1390
        %v1392 = vpop.f32.mrb[0].mxu0
        %v1393 = vadd.f32 %v1220, %v1392
        %1394 = vmatprep.mubr.f32.mxu0 0.0
        %v1395 = vand.u32 %v196, 4294901760
        %1396 = vmatmul.mubr.f32.gmra.mrb[0].mxu0 %v1395
        %v1397 = vpop.f32.mrb[0].mxu0
        %v1398 = vadd.f32 %v1229, %v1397
        %v1399 = vpop.f32.mrb[0].mxu0
        %v1400 = vadd.f32 %v1231, %v1399
        %1401 = vmatprep.mubr.f32.mxu0 0.0
        %v1402 = vand.u32 %v199, 4294901760
        %1403 = vmatmul.mubr.f32.gmra.mrb[0].mxu0 %v1402
        %v1404 = vpop.f32.mrb[0].mxu0
        %v1405 = vadd.f32 %v1240, %v1404
        %v1406 = vpop.f32.mrb[0].mxu0
        %v1407 = vadd.f32 %v1242, %v1406
        %1408 = vmatprep.mubr.f32.mxu0 0.0
        %v1409 = vand.u32 %v202, 4294901760
        %1410 = vmatmul.mubr.f32.gmra.mrb[0].mxu0 %v1409
        %v1411 = vpop.f32.mrb[0].mxu0
        %v1412 = vadd.f32 %v1251, %v1411
        %v1413 = vpop.f32.mrb[0].mxu0
        %v1414 = vadd.f32 %v1253, %v1413
        %1415 = vmatprep.mubr.f32.mxu0 0.0
        %v1416 = vand.u32 %v205, 4294901760
        %1417 = vmatmul.mubr.f32.gmra.mrb[0].mxu0 %v1416
        %v1418 = vpop.f32.mrb[0].mxu0
        %v1419 = vadd.f32 %v1262, %v1418
        %v1420 = vpop.f32.mrb[0].mxu0
        %v1421 = vadd.f32 %v1264, %v1420
        %1422 = vmatprep.mubr.f32.mxu0 0.0
        %v1423 = vand.u32 %v208, 4294901760
        %1424 = vmatmul.mubr.f32.gmra.mrb[0].mxu0 %v1423
        %v1425 = vpop.f32.mrb[0].mxu0
        %v1426 = vadd.f32 %v1273, %v1425
        %v1427 = vpop.f32.mrb[0].mxu0
        %v1428 = vadd.f32 %v1275, %v1427
        %1429 = vmatprep.mubr.f32.mxu0 0.0
        %v1430 = vand.u32 %v211, 4294901760
        %1431 = vmatmul.mubr.f32.gmra.mrb[0].mxu0 %v1430
        %v1432 = vpop.f32.mrb[0].mxu0
        %v1433 = vadd.f32 %v1284, %v1432
        %v1434 = vpop.f32.mrb[0].mxu0
        %v1435 = vadd.f32 %v1286, %v1434
        %1436 = vmatprep.mubr.f32.mxu0 0.0
        %v1437 = vand.u32 %v214, 4294901760
        %1438 = vmatmul.mubr.f32.gmra.mrb[0].mxu0 %v1437
        %v1439 = vpop.f32.mrb[0].mxu0
        %v1440 = vadd.f32 %v1295, %v1439
        %v1441 = vpop.f32.mrb[0].mxu0
        %v1442 = vadd.f32 %v1297, %v1441
        %1443 = vdwg.mxu0
        %v1444 = vand.u32 %v184, 4294901760
        %v1445 = vsub.f32 %v184, %v1444
        %1446 = vmatprep.subr.mxu0 %v1445
        %v1447 = vand.u32 %v183, 4294901760
        %v1448 = vsub.f32 %v183, %v1447
        %1449 = vmatpush1.msra.mxu0 %v1448
        %1450 = vmatprep.subr.mxu0 0.0
        %1451 = vmatpush1.msra.mxu0 0.0
        %1452 = vmatprep.subr.mxu0 0.0
        %1453 = vmatpush1.msra.mxu0 0.0
        %1454 = vmatprep.subr.mxu0 0.0
        %1455 = vmatpush1.msra.mxu0 0.0
        %1456 = vmatprep.subr.mxu0 0.0
        %1457 = vmatpush1.msra.mxu0 0.0
        %1458 = vmatprep.subr.mxu0 0.0
        %1459 = vmatpush1.msra.mxu0 0.0
        %1460 = vmatprep.subr.mxu0 0.0
        %1461 = vmatpush1.msra.mxu0 0.0
        %1462 = vmatprep.subr.mxu0 0.0
        %1463 = vmatpush1.msra.mxu0 0.0
        %1464 = vmatprep.subr.mxu0 0.0
        %1465 = vmatpush1.msra.mxu0 0.0
        %1466 = vmatprep.subr.mxu0 0.0
        %1467 = vmatpush1.msra.mxu0 0.0
        %1468 = vmatprep.subr.mxu0 0.0
        %1469 = vmatpush1.msra.mxu0 0.0
        %1470 = vmatprep.subr.mxu0 0.0
        %1471 = vmatpush1.msra.mxu0 0.0
        %1472 = vmatprep.subr.mxu0 0.0
        %1473 = vmatpush1.msra.mxu0 0.0
        %1474 = vmatprep.subr.mxu0 0.0
        %1475 = vmatpush1.msra.mxu0 0.0
        %1476 = vmatprep.subr.mxu0 0.0
        %1477 = vmatpush1.msra.mxu0 0.0
        %1478 = vmatprep.subr.mxu0 0.0
        %1479 = vmatpush1.msra.mxu0 0.0
        %1480 = vmatprep.subr.mxu0 0.0
        %1481 = vmatpush1.msra.mxu0 0.0
        %1482 = vmatprep.subr.mxu0 0.0
        %1483 = vmatpush1.msra.mxu0 0.0
        %1484 = vmatprep.subr.mxu0 0.0
        %1485 = vmatpush1.msra.mxu0 0.0
        %1486 = vmatprep.subr.mxu0 0.0
        %1487 = vmatpush1.msra.mxu0 0.0
        %1488 = vmatprep.subr.mxu0 0.0
        %1489 = vmatpush1.msra.mxu0 0.0
        %1490 = vmatprep.subr.mxu0 0.0
        %1491 = vmatpush1.msra.mxu0 0.0
        %1492 = vmatprep.subr.mxu0 0.0
        %1493 = vmatpush1.msra.mxu0 0.0
        %1494 = vmatprep.subr.mxu0 0.0
        %1495 = vmatpush1.msra.mxu0 0.0
        %1496 = vmatprep.subr.mxu0 0.0
        %1497 = vmatpush1.msra.mxu0 0.0
        %1498 = vmatprep.subr.mxu0 0.0
        %1499 = vmatpush1.msra.mxu0 0.0
        %1500 = vmatprep.subr.mxu0 0.0
        %1501 = vmatpush1.msra.mxu0 0.0
        %1502 = vmatprep.subr.mxu0 0.0
        %1503 = vmatpush1.msra.mxu0 0.0
        %1504 = vmatprep.subr.mxu0 0.0
        %1505 = vmatpush1.msra.mxu0 0.0
        %1506 = vmatprep.subr.mxu0 0.0
        %1507 = vmatpush1.msra.mxu0 0.0
        %1508 = vmatprep.subr.mxu0 0.0
        %1509 = vmatpush1.msra.mxu0 0.0
        %1510 = vmatprep.subr.mxu0 0.0
        %1511 = vmatpush1.msra.mxu0 0.0
        %1512 = vmatprep.mubr.f32.mxu0 0.0
        %v1513 = vand.u32 %v187, 4294901760
        %v1514 = vsub.f32 %v187, %v1513
        %1515 = vmatmul.mubr.f32.gmra.mrb[0].mxu0 %v1514
        %v1516 = vpop.f32.mrb[0].mxu0
        %v1517 = vadd.f32 %v1377, %v1516
        %v1518 = vpop.f32.mrb[0].mxu0
        %v1519 = vadd.f32 %v1379, %v1518
        %1520 = vmatprep.mubr.f32.mxu0 0.0
        %v1521 = vand.u32 %v190, 4294901760
        %v1522 = vsub.f32 %v190, %v1521
        %1523 = vmatmul.mubr.f32.gmra.mrb[0].mxu0 %v1522
        %v1524 = vpop.f32.mrb[0].mxu0
        %v1525 = vadd.f32 %v1384, %v1524
        %v1526 = vpop.f32.mrb[0].mxu0
        %v1527 = vadd.f32 %v1386, %v1526
        %1528 = vmatprep.mubr.f32.mxu0 0.0
        %v1529 = vand.u32 %v193, 4294901760
        %v1530 = vsub.f32 %v193, %v1529
        %1531 = vmatmul.mubr.f32.gmra.mrb[0].mxu0 %v1530
        %v1532 = vpop.f32.mrb[0].mxu0
        %v1533 = vadd.f32 %v1391, %v1532
        %v1534 = vpop.f32.mrb[0].mxu0
        %v1535 = vadd.f32 %v1393, %v1534
        %1536 = vmatprep.mubr.f32.mxu0 0.0
        %v1537 = vand.u32 %v196, 4294901760
        %v1538 = vsub.f32 %v196, %v1537
        %1539 = vmatmul.mubr.f32.gmra.mrb[0].mxu0 %v1538
        %v1540 = vpop.f32.mrb[0].mxu0
        %v1541 = vadd.f32 %v1398, %v1540
        %v1542 = vpop.f32.mrb[0].mxu0
        %v1543 = vadd.f32 %v1400, %v1542
        %1544 = vmatprep.mubr.f32.mxu0 0.0
        %v1545 = vand.u32 %v199, 4294901760
        %v1546 = vsub.f32 %v199, %v1545
        %1547 = vmatmul.mubr.f32.gmra.mrb[0].mxu0 %v1546
        %v1548 = vpop.f32.mrb[0].mxu0
        %v1549 = vadd.f32 %v1405, %v1548
        %v1550 = vpop.f32.mrb[0].mxu0
        %v1551 = vadd.f32 %v1407, %v1550
        %1552 = vmatprep.mubr.f32.mxu0 0.0
        %v1553 = vand.u32 %v202, 4294901760
        %v1554 = vsub.f32 %v202, %v1553
        %1555 = vmatmul.mubr.f32.gmra.mrb[0].mxu0 %v1554
        %v1556 = vpop.f32.mrb[0].mxu0
        %v1557 = vadd.f32 %v1412, %v1556
        %v1558 = vpop.f32.mrb[0].mxu0
        %v1559 = vadd.f32 %v1414, %v1558
        %1560 = vmatprep.mubr.f32.mxu0 0.0
        %v1561 = vand.u32 %v205, 4294901760
        %v1562 = vsub.f32 %v205, %v1561
        %1563 = vmatmul.mubr.f32.gmra.mrb[0].mxu0 %v1562
        %v1564 = vpop.f32.mrb[0].mxu0
        %v1565 = vadd.f32 %v1419, %v1564
        %v1566 = vpop.f32.mrb[0].mxu0
        %v1567 = vadd.f32 %v1421, %v1566
        %1568 = vmatprep.mubr.f32.mxu0 0.0
        %v1569 = vand.u32 %v208, 4294901760
        %v1570 = vsub.f32 %v208, %v1569
        %1571 = vmatmul.mubr.f32.gmra.mrb[0].mxu0 %v1570
        %v1572 = vpop.f32.mrb[0].mxu0
        %v1573 = vadd.f32 %v1426, %v1572
        %v1574 = vpop.f32.mrb[0].mxu0
        %v1575 = vadd.f32 %v1428, %v1574
        %1576 = vmatprep.mubr.f32.mxu0 0.0
        %v1577 = vand.u32 %v211, 4294901760
        %v1578 = vsub.f32 %v211, %v1577
        %1579 = vmatmul.mubr.f32.gmra.mrb[0].mxu0 %v1578
        %v1580 = vpop.f32.mrb[0].mxu0
        %v1581 = vadd.f32 %v1433, %v1580
        %v1582 = vpop.f32.mrb[0].mxu0
        %v1583 = vadd.f32 %v1435, %v1582
        %1584 = vmatprep.mubr.f32.mxu0 0.0
        %v1585 = vand.u32 %v214, 4294901760
        %v1586 = vsub.f32 %v214, %v1585
        %1587 = vmatmul.mubr.f32.gmra.mrb[0].mxu0 %v1586
        %v1588 = vpop.f32.mrb[0].mxu0
        %v1589 = vadd.f32 %v1440, %v1588
        %v1590 = vpop.f32.mrb[0].mxu0
        %v1591 = vadd.f32 %v1442, %v1590
        %1592 = vdwg.mxu0
        %v1593 = vand.u32 %v184, 4294901760
        %1594 = vmatprep.subr.mxu0 %v1593
        %v1595 = vand.u32 %v183, 4294901760
        %1596 = vmatpush1.msra.mxu0 %v1595
        %1597 = vmatprep.subr.mxu0 0.0
        %1598 = vmatpush1.msra.mxu0 0.0
        %1599 = vmatprep.subr.mxu0 0.0
        %1600 = vmatpush1.msra.mxu0 0.0
        %1601 = vmatprep.subr.mxu0 0.0
        %1602 = vmatpush1.msra.mxu0 0.0
        %1603 = vmatprep.subr.mxu0 0.0
        %1604 = vmatpush1.msra.mxu0 0.0
        %1605 = vmatprep.subr.mxu0 0.0
        %1606 = vmatpush1.msra.mxu0 0.0
        %1607 = vmatprep.subr.mxu0 0.0
        %1608 = vmatpush1.msra.mxu0 0.0
        %1609 = vmatprep.subr.mxu0 0.0
        %1610 = vmatpush1.msra.mxu0 0.0
        %1611 = vmatprep.subr.mxu0 0.0
        %1612 = vmatpush1.msra.mxu0 0.0
        %1613 = vmatprep.subr.mxu0 0.0
        %1614 = vmatpush1.msra.mxu0 0.0
        %1615 = vmatprep.subr.mxu0 0.0
        %1616 = vmatpush1.msra.mxu0 0.0
        %1617 = vmatprep.subr.mxu0 0.0
        %1618 = vmatpush1.msra.mxu0 0.0
        %1619 = vmatprep.subr.mxu0 0.0
        %1620 = vmatpush1.msra.mxu0 0.0
        %1621 = vmatprep.subr.mxu0 0.0
        %1622 = vmatpush1.msra.mxu0 0.0
        %1623 = vmatprep.subr.mxu0 0.0
        %1624 = vmatpush1.msra.mxu0 0.0
        %1625 = vmatprep.subr.mxu0 0.0
        %1626 = vmatpush1.msra.mxu0 0.0
        %1627 = vmatprep.subr.mxu0 0.0
        %1628 = vmatpush1.msra.mxu0 0.0
        %1629 = vmatprep.subr.mxu0 0.0
        %1630 = vmatpush1.msra.mxu0 0.0
        %1631 = vmatprep.subr.mxu0 0.0
        %1632 = vmatpush1.msra.mxu0 0.0
        %1633 = vmatprep.subr.mxu0 0.0
        %1634 = vmatpush1.msra.mxu0 0.0
        %1635 = vmatprep.subr.mxu0 0.0
        %1636 = vmatpush1.msra.mxu0 0.0
        %1637 = vmatprep.subr.mxu0 0.0
        %1638 = vmatpush1.msra.mxu0 0.0
        %1639 = vmatprep.subr.mxu0 0.0
        %1640 = vmatpush1.msra.mxu0 0.0
        %1641 = vmatprep.subr.mxu0 0.0
        %1642 = vmatpush1.msra.mxu0 0.0
        %1643 = vmatprep.subr.mxu0 0.0
        %1644 = vmatpush1.msra.mxu0 0.0
        %1645 = vmatprep.subr.mxu0 0.0
        %1646 = vmatpush1.msra.mxu0 0.0
        %1647 = vmatprep.subr.mxu0 0.0
        %1648 = vmatpush1.msra.mxu0 0.0
        %1649 = vmatprep.subr.mxu0 0.0
        %1650 = vmatpush1.msra.mxu0 0.0
        %1651 = vmatprep.subr.mxu0 0.0
        %1652 = vmatpush1.msra.mxu0 0.0
        %1653 = vmatprep.subr.mxu0 0.0
        %1654 = vmatpush1.msra.mxu0 0.0
        %1655 = vmatprep.subr.mxu0 0.0
        %1656 = vmatpush1.msra.mxu0 0.0
        %1657 = vmatprep.subr.mxu0 0.0
        %1658 = vmatpush1.msra.mxu0 0.0
        %1659 = vmatprep.mubr.f32.mxu0 0.0
        %v1660 = vand.u32 %v187, 4294901760
        %v1661 = vsub.f32 %v187, %v1660
        %v1662 = vand.u32 %v1661, 4294901760
        %1663 = vmatmul.mubr.f32.gmra.mrb[0].mxu0 %v1662
        %v1664 = vpop.f32.mrb[0].mxu0
        %v1665 = vadd.f32 %v1517, %v1664
        %v1666 = vpop.f32.mrb[0].mxu0
        %v1667 = vadd.f32 %v1519, %v1666
        %1668 = vmatprep.mubr.f32.mxu0 0.0
        %v1669 = vand.u32 %v190, 4294901760
        %v1670 = vsub.f32 %v190, %v1669
        %v1671 = vand.u32 %v1670, 4294901760
        %1672 = vmatmul.mubr.f32.gmra.mrb[0].mxu0 %v1671
        %v1673 = vpop.f32.mrb[0].mxu0
        %v1674 = vadd.f32 %v1525, %v1673
        %v1675 = vpop.f32.mrb[0].mxu0
        %v1676 = vadd.f32 %v1527, %v1675
        %1677 = vmatprep.mubr.f32.mxu0 0.0
        %v1678 = vand.u32 %v193, 4294901760
        %v1679 = vsub.f32 %v193, %v1678
        %v1680 = vand.u32 %v1679, 4294901760
        %1681 = vmatmul.mubr.f32.gmra.mrb[0].mxu0 %v1680
        %v1682 = vpop.f32.mrb[0].mxu0
        %v1683 = vadd.f32 %v1533, %v1682
        %v1684 = vpop.f32.mrb[0].mxu0
        %v1685 = vadd.f32 %v1535, %v1684
        %1686 = vmatprep.mubr.f32.mxu0 0.0
        %v1687 = vand.u32 %v196, 4294901760
        %v1688 = vsub.f32 %v196, %v1687
        %v1689 = vand.u32 %v1688, 4294901760
        %1690 = vmatmul.mubr.f32.gmra.mrb[0].mxu0 %v1689
        %v1691 = vpop.f32.mrb[0].mxu0
        %v1692 = vadd.f32 %v1541, %v1691
        %v1693 = vpop.f32.mrb[0].mxu0
        %v1694 = vadd.f32 %v1543, %v1693
        %1695 = vmatprep.mubr.f32.mxu0 0.0
        %v1696 = vand.u32 %v199, 4294901760
        %v1697 = vsub.f32 %v199, %v1696
        %v1698 = vand.u32 %v1697, 4294901760
        %1699 = vmatmul.mubr.f32.gmra.mrb[0].mxu0 %v1698
        %v1700 = vpop.f32.mrb[0].mxu0
        %v1701 = vadd.f32 %v1549, %v1700
        %v1702 = vpop.f32.mrb[0].mxu0
        %v1703 = vadd.f32 %v1551, %v1702
        %1704 = vmatprep.mubr.f32.mxu0 0.0
        %v1705 = vand.u32 %v202, 4294901760
        %v1706 = vsub.f32 %v202, %v1705
        %v1707 = vand.u32 %v1706, 4294901760
        %1708 = vmatmul.mubr.f32.gmra.mrb[0].mxu0 %v1707
        %v1709 = vpop.f32.mrb[0].mxu0
        %v1710 = vadd.f32 %v1557, %v1709
        %v1711 = vpop.f32.mrb[0].mxu0
        %v1712 = vadd.f32 %v1559, %v1711
        %1713 = vmatprep.mubr.f32.mxu0 0.0
        %v1714 = vand.u32 %v205, 4294901760
        %v1715 = vsub.f32 %v205, %v1714
        %v1716 = vand.u32 %v1715, 4294901760
        %1717 = vmatmul.mubr.f32.gmra.mrb[0].mxu0 %v1716
        %v1718 = vpop.f32.mrb[0].mxu0
        %v1719 = vadd.f32 %v1565, %v1718
        %v1720 = vpop.f32.mrb[0].mxu0
        %v1721 = vadd.f32 %v1567, %v1720
        %1722 = vmatprep.mubr.f32.mxu0 0.0
        %v1723 = vand.u32 %v208, 4294901760
        %v1724 = vsub.f32 %v208, %v1723
        %v1725 = vand.u32 %v1724, 4294901760
        %1726 = vmatmul.mubr.f32.gmra.mrb[0].mxu0 %v1725
        %v1727 = vpop.f32.mrb[0].mxu0
        %v1728 = vadd.f32 %v1573, %v1727
        %v1729 = vpop.f32.mrb[0].mxu0
        %v1730 = vadd.f32 %v1575, %v1729
        %1731 = vmatprep.mubr.f32.mxu0 0.0
        %v1732 = vand.u32 %v211, 4294901760
        %v1733 = vsub.f32 %v211, %v1732
        %v1734 = vand.u32 %v1733, 4294901760
        %1735 = vmatmul.mubr.f32.gmra.mrb[0].mxu0 %v1734
        %v1736 = vpop.f32.mrb[0].mxu0
        %v1737 = vadd.f32 %v1581, %v1736
        %v1738 = vpop.f32.mrb[0].mxu0
        %v1739 = vadd.f32 %v1583, %v1738
        %1740 = vmatprep.mubr.f32.mxu0 0.0
        %v1741 = vand.u32 %v214, 4294901760
        %v1742 = vsub.f32 %v214, %v1741
        %v1743 = vand.u32 %v1742, 4294901760
        %1744 = vmatmul.mubr.f32.gmra.mrb[0].mxu0 %v1743
        %v1745 = vpop.f32.mrb[0].mxu0
        %v1746 = vadd.f32 %v1589, %v1745
        %v1747 = vpop.f32.mrb[0].mxu0
        %v1748 = vadd.f32 %v1591, %v1747
        %1749 = vdwg.mxu0
        %v1750 = vand.u32 %v184, 4294901760
        %v1751 = vsub.f32 %v184, %v1750
        %v1752 = vand.u32 %v1751, 4294901760
        %1753 = vmatprep.subr.mxu0 %v1752
        %v1754 = vand.u32 %v183, 4294901760
        %v1755 = vsub.f32 %v183, %v1754
        %v1756 = vand.u32 %v1755, 4294901760
        %1757 = vmatpush1.msra.mxu0 %v1756
        %1758 = vmatprep.subr.mxu0 0.0
        %1759 = vmatpush1.msra.mxu0 0.0
        %1760 = vmatprep.subr.mxu0 0.0
        %1761 = vmatpush1.msra.mxu0 0.0
        %1762 = vmatprep.subr.mxu0 0.0
        %1763 = vmatpush1.msra.mxu0 0.0
        %1764 = vmatprep.subr.mxu0 0.0
        %1765 = vmatpush1.msra.mxu0 0.0
        %1766 = vmatprep.subr.mxu0 0.0
        %1767 = vmatpush1.msra.mxu0 0.0
        %1768 = vmatprep.subr.mxu0 0.0
        %1769 = vmatpush1.msra.mxu0 0.0
        %1770 = vmatprep.subr.mxu0 0.0
        %1771 = vmatpush1.msra.mxu0 0.0
        %1772 = vmatprep.subr.mxu0 0.0
        %1773 = vmatpush1.msra.mxu0 0.0
        %1774 = vmatprep.subr.mxu0 0.0
        %1775 = vmatpush1.msra.mxu0 0.0
        %1776 = vmatprep.subr.mxu0 0.0
        %1777 = vmatpush1.msra.mxu0 0.0
        %1778 = vmatprep.subr.mxu0 0.0
        %1779 = vmatpush1.msra.mxu0 0.0
        %1780 = vmatprep.subr.mxu0 0.0
        %1781 = vmatpush1.msra.mxu0 0.0
        %1782 = vmatprep.subr.mxu0 0.0
        %1783 = vmatpush1.msra.mxu0 0.0
        %1784 = vmatprep.subr.mxu0 0.0
        %1785 = vmatpush1.msra.mxu0 0.0
        %1786 = vmatprep.subr.mxu0 0.0
        %1787 = vmatpush1.msra.mxu0 0.0
        %1788 = vmatprep.subr.mxu0 0.0
        %1789 = vmatpush1.msra.mxu0 0.0
        %1790 = vmatprep.subr.mxu0 0.0
        %1791 = vmatpush1.msra.mxu0 0.0
        %1792 = vmatprep.subr.mxu0 0.0
        %1793 = vmatpush1.msra.mxu0 0.0
        %1794 = vmatprep.subr.mxu0 0.0
        %1795 = vmatpush1.msra.mxu0 0.0
        %1796 = vmatprep.subr.mxu0 0.0
        %1797 = vmatpush1.msra.mxu0 0.0
        %1798 = vmatprep.subr.mxu0 0.0
        %1799 = vmatpush1.msra.mxu0 0.0
        %1800 = vmatprep.subr.mxu0 0.0
        %1801 = vmatpush1.msra.mxu0 0.0
        %1802 = vmatprep.subr.mxu0 0.0
        %1803 = vmatpush1.msra.mxu0 0.0
        %1804 = vmatprep.subr.mxu0 0.0
        %1805 = vmatpush1.msra.mxu0 0.0
        %1806 = vmatprep.subr.mxu0 0.0
        %1807 = vmatpush1.msra.mxu0 0.0
        %1808 = vmatprep.subr.mxu0 0.0
        %1809 = vmatpush1.msra.mxu0 0.0
        %1810 = vmatprep.subr.mxu0 0.0
        %1811 = vmatpush1.msra.mxu0 0.0
        %1812 = vmatprep.subr.mxu0 0.0
        %1813 = vmatpush1.msra.mxu0 0.0
        %1814 = vmatprep.subr.mxu0 0.0
        %1815 = vmatpush1.msra.mxu0 0.0
        %1816 = vmatprep.subr.mxu0 0.0
        %1817 = vmatpush1.msra.mxu0 0.0
        %1818 = vmatprep.subr.mxu0 0.0
        %1819 = vmatpush1.msra.mxu0 0.0
        %1820 = vmatprep.mubr.f32.mxu0 0.0
        %v1821 = vand.u32 %v187, 4294901760
        %1822 = vmatmul.mubr.f32.gmra.mrb[0].mxu0 %v1821
        %v1823 = vpop.f32.mrb[0].mxu0
        %v1824 = vadd.f32 %v1665, %v1823
        %v1825 = vpop.f32.mrb[0].mxu0
        %v1826 = vadd.f32 %v1667, %v1825
        %1827 = vmatprep.mubr.f32.mxu0 0.0
        %v1828 = vand.u32 %v190, 4294901760
        %1829 = vmatmul.mubr.f32.gmra.mrb[0].mxu0 %v1828
        %v1830 = vpop.f32.mrb[0].mxu0
        %v1831 = vadd.f32 %v1674, %v1830
        %v1832 = vpop.f32.mrb[0].mxu0
        %v1833 = vadd.f32 %v1676, %v1832
        %1834 = vmatprep.mubr.f32.mxu0 0.0
        %v1835 = vand.u32 %v193, 4294901760
        %1836 = vmatmul.mubr.f32.gmra.mrb[0].mxu0 %v1835
        %v1837 = vpop.f32.mrb[0].mxu0
        %v1838 = vadd.f32 %v1683, %v1837
        %v1839 = vpop.f32.mrb[0].mxu0
        %v1840 = vadd.f32 %v1685, %v1839
        %1841 = vmatprep.mubr.f32.mxu0 0.0
        %v1842 = vand.u32 %v196, 4294901760
        %1843 = vmatmul.mubr.f32.gmra.mrb[0].mxu0 %v1842
        %v1844 = vpop.f32.mrb[0].mxu0
        %v1845 = vadd.f32 %v1692, %v1844
        %v1846 = vpop.f32.mrb[0].mxu0
        %v1847 = vadd.f32 %v1694, %v1846
        %1848 = vmatprep.mubr.f32.mxu0 0.0
        %v1849 = vand.u32 %v199, 4294901760
        %1850 = vmatmul.mubr.f32.gmra.mrb[0].mxu0 %v1849
        %v1851 = vpop.f32.mrb[0].mxu0
        %v1852 = vadd.f32 %v1701, %v1851
        %v1853 = vpop.f32.mrb[0].mxu0
        %v1854 = vadd.f32 %v1703, %v1853
        %1855 = vmatprep.mubr.f32.mxu0 0.0
        %v1856 = vand.u32 %v202, 4294901760
        %1857 = vmatmul.mubr.f32.gmra.mrb[0].mxu0 %v1856
        %v1858 = vpop.f32.mrb[0].mxu0
        %v1859 = vadd.f32 %v1710, %v1858
        %v1860 = vpop.f32.mrb[0].mxu0
        %v1861 = vadd.f32 %v1712, %v1860
        %1862 = vmatprep.mubr.f32.mxu0 0.0
        %v1863 = vand.u32 %v205, 4294901760
        %1864 = vmatmul.mubr.f32.gmra.mrb[0].mxu0 %v1863
        %v1865 = vpop.f32.mrb[0].mxu0
        %v1866 = vadd.f32 %v1719, %v1865
        %v1867 = vpop.f32.mrb[0].mxu0
        %v1868 = vadd.f32 %v1721, %v1867
        %1869 = vmatprep.mubr.f32.mxu0 0.0
        %v1870 = vand.u32 %v208, 4294901760
        %1871 = vmatmul.mubr.f32.gmra.mrb[0].mxu0 %v1870
        %v1872 = vpop.f32.mrb[0].mxu0
        %v1873 = vadd.f32 %v1728, %v1872
        %v1874 = vpop.f32.mrb[0].mxu0
        %v1875 = vadd.f32 %v1730, %v1874
        %1876 = vmatprep.mubr.f32.mxu0 0.0
        %v1877 = vand.u32 %v211, 4294901760
        %1878 = vmatmul.mubr.f32.gmra.mrb[0].mxu0 %v1877
        %v1879 = vpop.f32.mrb[0].mxu0
        %v1880 = vadd.f32 %v1737, %v1879
        %v1881 = vpop.f32.mrb[0].mxu0
        %v1882 = vadd.f32 %v1739, %v1881
        %1883 = vmatprep.mubr.f32.mxu0 0.0
        %v1884 = vand.u32 %v214, 4294901760
        %1885 = vmatmul.mubr.f32.gmra.mrb[0].mxu0 %v1884
        %v1886 = vpop.f32.mrb[0].mxu0
        %v1887 = vadd.f32 %v1746, %v1886
        %v1888 = vpop.f32.mrb[0].mxu0
        %v1889 = vadd.f32 %v1748, %v1888
        %1890 = vdwg.mxu0
        %v1891 = vand.u32 %v184, 4294901760
        %1892 = vmatprep.subr.mxu0 %v1891
        %v1893 = vand.u32 %v183, 4294901760
        %1894 = vmatpush1.msra.mxu0 %v1893
        %1895 = vmatprep.subr.mxu0 0.0
        %1896 = vmatpush1.msra.mxu0 0.0
        %1897 = vmatprep.subr.mxu0 0.0
        %1898 = vmatpush1.msra.mxu0 0.0
        %1899 = vmatprep.subr.mxu0 0.0
        %1900 = vmatpush1.msra.mxu0 0.0
        %1901 = vmatprep.subr.mxu0 0.0
        %1902 = vmatpush1.msra.mxu0 0.0
        %1903 = vmatprep.subr.mxu0 0.0
        %1904 = vmatpush1.msra.mxu0 0.0
        %1905 = vmatprep.subr.mxu0 0.0
        %1906 = vmatpush1.msra.mxu0 0.0
        %1907 = vmatprep.subr.mxu0 0.0
        %1908 = vmatpush1.msra.mxu0 0.0
        %1909 = vmatprep.subr.mxu0 0.0
        %1910 = vmatpush1.msra.mxu0 0.0
        %1911 = vmatprep.subr.mxu0 0.0
        %1912 = vmatpush1.msra.mxu0 0.0
        %1913 = vmatprep.subr.mxu0 0.0
        %1914 = vmatpush1.msra.mxu0 0.0
        %1915 = vmatprep.subr.mxu0 0.0
        %1916 = vmatpush1.msra.mxu0 0.0
        %1917 = vmatprep.subr.mxu0 0.0
        %1918 = vmatpush1.msra.mxu0 0.0
        %1919 = vmatprep.subr.mxu0 0.0
        %1920 = vmatpush1.msra.mxu0 0.0
        %1921 = vmatprep.subr.mxu0 0.0
        %1922 = vmatpush1.msra.mxu0 0.0
        %1923 = vmatprep.subr.mxu0 0.0
        %1924 = vmatpush1.msra.mxu0 0.0
        %1925 = vmatprep.subr.mxu0 0.0
        %1926 = vmatpush1.msra.mxu0 0.0
        %1927 = vmatprep.subr.mxu0 0.0
        %1928 = vmatpush1.msra.mxu0 0.0
        %1929 = vmatprep.subr.mxu0 0.0
        %1930 = vmatpush1.msra.mxu0 0.0
        %1931 = vmatprep.subr.mxu0 0.0
        %1932 = vmatpush1.msra.mxu0 0.0
        %1933 = vmatprep.subr.mxu0 0.0
        %1934 = vmatpush1.msra.mxu0 0.0
        %1935 = vmatprep.subr.mxu0 0.0
        %1936 = vmatpush1.msra.mxu0 0.0
        %1937 = vmatprep.subr.mxu0 0.0
        %1938 = vmatpush1.msra.mxu0 0.0
        %1939 = vmatprep.subr.mxu0 0.0
        %1940 = vmatpush1.msra.mxu0 0.0
        %1941 = vmatprep.subr.mxu0 0.0
        %1942 = vmatpush1.msra.mxu0 0.0
        %1943 = vmatprep.subr.mxu0 0.0
        %1944 = vmatpush1.msra.mxu0 0.0
        %1945 = vmatprep.subr.mxu0 0.0
        %1946 = vmatpush1.msra.mxu0 0.0
        %1947 = vmatprep.subr.mxu0 0.0
        %1948 = vmatpush1.msra.mxu0 0.0
        %1949 = vmatprep.subr.mxu0 0.0
        %1950 = vmatpush1.msra.mxu0 0.0
        %1951 = vmatprep.subr.mxu0 0.0
        %1952 = vmatpush1.msra.mxu0 0.0
        %1953 = vmatprep.subr.mxu0 0.0
        %1954 = vmatpush1.msra.mxu0 0.0
        %1955 = vmatprep.subr.mxu0 0.0
        %1956 = vmatpush1.msra.mxu0 0.0
        %1957 = vmatprep.mubr.f32.mxu0 0.0
        %v1958 = vand.u32 %v187, 4294901760
        %1959 = vmatmul.mubr.f32.gmra.mrb[0].mxu0 %v1958
        %v1960 = vpop.f32.mrb[0].mxu0
        %v1961 = vadd.f32 %v1824, %v1960
        %v1962 = vpop.f32.mrb[0].mxu0
        %v1963 = vadd.f32 %v1826, %v1962
        %1964 = vmatprep.mubr.f32.mxu0 0.0
        %v1965 = vand.u32 %v190, 4294901760
        %1966 = vmatmul.mubr.f32.gmra.mrb[0].mxu0 %v1965
        %v1967 = vpop.f32.mrb[0].mxu0
        %v1968 = vadd.f32 %v1831, %v1967
        %v1969 = vpop.f32.mrb[0].mxu0
        %v1970 = vadd.f32 %v1833, %v1969
        %1971 = vmatprep.mubr.f32.mxu0 0.0
        %v1972 = vand.u32 %v193, 4294901760
        %1973 = vmatmul.mubr.f32.gmra.mrb[0].mxu0 %v1972
        %v1974 = vpop.f32.mrb[0].mxu0
        %v1975 = vadd.f32 %v1838, %v1974
        %v1976 = vpop.f32.mrb[0].mxu0
        %v1977 = vadd.f32 %v1840, %v1976
        %1978 = vmatprep.mubr.f32.mxu0 0.0
        %v1979 = vand.u32 %v196, 4294901760
        %1980 = vmatmul.mubr.f32.gmra.mrb[0].mxu0 %v1979
        %v1981 = vpop.f32.mrb[0].mxu0
        %v1982 = vadd.f32 %v1845, %v1981
        %v1983 = vpop.f32.mrb[0].mxu0
        %v1984 = vadd.f32 %v1847, %v1983
        %1985 = vmatprep.mubr.f32.mxu0 0.0
        %v1986 = vand.u32 %v199, 4294901760
        %1987 = vmatmul.mubr.f32.gmra.mrb[0].mxu0 %v1986
        %v1988 = vpop.f32.mrb[0].mxu0
        %v1989 = vadd.f32 %v1852, %v1988
        %v1990 = vpop.f32.mrb[0].mxu0
        %v1991 = vadd.f32 %v1854, %v1990
        %1992 = vmatprep.mubr.f32.mxu0 0.0
        %v1993 = vand.u32 %v202, 4294901760
        %1994 = vmatmul.mubr.f32.gmra.mrb[0].mxu0 %v1993
        %v1995 = vpop.f32.mrb[0].mxu0
        %v1996 = vadd.f32 %v1859, %v1995
        %v1997 = vpop.f32.mrb[0].mxu0
        %v1998 = vadd.f32 %v1861, %v1997
        %1999 = vmatprep.mubr.f32.mxu0 0.0
        %v2000 = vand.u32 %v205, 4294901760
        %2001 = vmatmul.mubr.f32.gmra.mrb[0].mxu0 %v2000
        %v2002 = vpop.f32.mrb[0].mxu0
        %v2003 = vadd.f32 %v1866, %v2002
        %v2004 = vpop.f32.mrb[0].mxu0
        %v2005 = vadd.f32 %v1868, %v2004
        %2006 = vmatprep.mubr.f32.mxu0 0.0
        %v2007 = vand.u32 %v208, 4294901760
        %2008 = vmatmul.mubr.f32.gmra.mrb[0].mxu0 %v2007
        %v2009 = vpop.f32.mrb[0].mxu0
        %v2010 = vadd.f32 %v1873, %v2009
        %v2011 = vpop.f32.mrb[0].mxu0
        %v2012 = vadd.f32 %v1875, %v2011
        %2013 = vmatprep.mubr.f32.mxu0 0.0
        %v2014 = vand.u32 %v211, 4294901760
        %2015 = vmatmul.mubr.f32.gmra.mrb[0].mxu0 %v2014
        %v2016 = vpop.f32.mrb[0].mxu0
        %v2017 = vadd.f32 %v1880, %v2016
        %v2018 = vpop.f32.mrb[0].mxu0
        %v2019 = vadd.f32 %v1882, %v2018
        %2020 = vmatprep.mubr.f32.mxu0 0.0
        %v2021 = vand.u32 %v214, 4294901760
        %2022 = vmatmul.mubr.f32.gmra.mrb[0].mxu0 %v2021
        %v2023 = vpop.f32.mrb[0].mxu0
        %v2024 = vadd.f32 %v1887, %v2023
        %v2025 = vpop.f32.mrb[0].mxu0
        %v2026 = vadd.f32 %v1889, %v2025
        %2027 = vdwg.mxu0
        %vm2028 = vcmp.ge.f32.partialorder %v1055, 0.0
        %vm2029 = vcmp.ge.f32.partialorder %v1062, 0.0
        %vm2030 = vcmp.ge.f32.partialorder %v1069, 0.0
        %vm2031 = vcmp.ge.f32.partialorder %v1076, 0.0
        %vm2032 = vcmp.ge.f32.partialorder %v1083, 0.0
        %vm2033 = vcmp.ge.f32.partialorder %v1090, 0.0
        %vm2034 = vcmp.ge.f32.partialorder %v1097, 0.0
        %vm2035 = vcmp.ge.f32.partialorder %v1104, 0.0
        %vm2036 = vcmp.ge.f32.partialorder %v1111, 0.0
        %vm2037 = vcmp.ge.f32.partialorder %v1118, 0.0
        %vm2038 = vcmp.ge.f32.partialorder %v1057, 0.0
        %vm2039 = vcmp.ge.f32.partialorder %v1064, 0.0
        %vm2040 = vcmp.ge.f32.partialorder %v1071, 0.0
        %vm2041 = vcmp.ge.f32.partialorder %v1078, 0.0
        %vm2042 = vcmp.ge.f32.partialorder %v1085, 0.0
        %vm2043 = vcmp.ge.f32.partialorder %v1092, 0.0
        %vm2044 = vcmp.ge.f32.partialorder %v1099, 0.0
        %vm2045 = vcmp.ge.f32.partialorder %v1106, 0.0
        %vm2046 = vcmp.ge.f32.partialorder %v1113, 0.0
        %vm2047 = vcmp.ge.f32.partialorder %v1120, 0.0
        %vm2048 = vmand %vm2028, %vm2038
        %vm2049 = vmand %vm2029, %vm2039
        %vm2050 = vmand %vm2030, %vm2040
        %vm2051 = vmand %vm2031, %vm2041
        %vm2052 = vmand %vm2032, %vm2042
        %vm2053 = vmand %vm2033, %vm2043
        %vm2054 = vmand %vm2034, %vm2044
        %vm2055 = vmand %vm2035, %vm2045
        %vm2056 = vmand %vm2036, %vm2046
        %vm2057 = vmand %vm2037, %vm2047
        %vm2058 = vcmp.ge.f32.partialorder %v1961, 0.0
        %vm2059 = vcmp.ge.f32.partialorder %v1968, 0.0
        %vm2060 = vcmp.ge.f32.partialorder %v1975, 0.0
        %vm2061 = vcmp.ge.f32.partialorder %v1982, 0.0
        %vm2062 = vcmp.ge.f32.partialorder %v1989, 0.0
        %vm2063 = vcmp.ge.f32.partialorder %v1996, 0.0
        %vm2064 = vcmp.ge.f32.partialorder %v2003, 0.0
        %vm2065 = vcmp.ge.f32.partialorder %v2010, 0.0
        %vm2066 = vcmp.ge.f32.partialorder %v2017, 0.0
        %vm2067 = vcmp.ge.f32.partialorder %v2024, 0.0
        %vm2068 = vmand %vm2048, %vm2058
        %vm2069 = vmand %vm2049, %vm2059
        %vm2070 = vmand %vm2050, %vm2060
        %vm2071 = vmand %vm2051, %vm2061
        %vm2072 = vmand %vm2052, %vm2062
        %vm2073 = vmand %vm2053, %vm2063
        %vm2074 = vmand %vm2054, %vm2064
        %vm2075 = vmand %vm2055, %vm2065
        %vm2076 = vmand %vm2056, %vm2066
        %vm2077 = vmand %vm2057, %vm2067
        %v2078 = vld [vmem:[%s2] sm:$0x1]
        %v2080 = vlaneseq
        %v2081 = vshrl.u32 %v2080, 7
        %v2082 = vsub.s32 0, %v2081
        %v2083 = vrot.slane %v2078, %v2082
        %v2085 = vsel %vm2068, %v2083, 0.0
        %v2086 = vsel %vm2069, %v2083, 0.0
        %v2087 = vsel %vm2070, %v2083, 0.0
        %v2088 = vsel %vm2071, %v2083, 0.0
        %v2089 = vsel %vm2072, %v2083, 0.0
        %v2090 = vsel %vm2073, %v2083, 0.0
        %v2091 = vsel %vm2074, %v2083, 0.0
        %v2092 = vsel %vm2075, %v2083, 0.0
        %v2093 = vsel %vm2076, %v2083, 0.0
        %v2094 = vsel %vm2077, %v2083, 0.0
        %2095 = vmin.xlane.f32.xlu0 %v1963
        %v2096 = vpop.xlane.xlu0 %2095
        %2097 = vmin.xlane.f32.xlu0 %v1970
        %v2098 = vpop.xlane.xlu0 %2097
        %2099 = vmin.xlane.f32.xlu0 %v1977
        %v2100 = vpop.xlane.xlu0 %2099
        %2101 = vmin.xlane.f32.xlu0 %v1984
        %v2102 = vpop.xlane.xlu0 %2101
        %2103 = vmin.xlane.f32.xlu0 %v1991
        %v2104 = vpop.xlane.xlu0 %2103
        %2105 = vmin.xlane.f32.xlu0 %v1998
        %v2106 = vpop.xlane.xlu0 %2105
        %2107 = vmin.xlane.f32.xlu0 %v2005
        %v2108 = vpop.xlane.xlu0 %2107
        %2109 = vmin.xlane.f32.xlu0 %v2012
        %v2110 = vpop.xlane.xlu0 %2109
        %2111 = vmin.xlane.f32.xlu0 %v2019
        %v2112 = vpop.xlane.xlu0 %2111
        %2113 = vmin.xlane.f32.xlu0 %v2026
        %v2114 = vpop.xlane.xlu0 %2113
        %vm2115 = vcmp.le.f32.partialorder %v1963, %v2096
        %vm2116 = vcmp.le.f32.partialorder %v1970, %v2098
        %vm2117 = vcmp.le.f32.partialorder %v1977, %v2100
        %vm2118 = vcmp.le.f32.partialorder %v1984, %v2102
        %vm2119 = vcmp.le.f32.partialorder %v1991, %v2104
        %vm2120 = vcmp.le.f32.partialorder %v1998, %v2106
        %vm2121 = vcmp.le.f32.partialorder %v2005, %v2108
        %vm2122 = vcmp.le.f32.partialorder %v2012, %v2110
        %vm2123 = vcmp.le.f32.partialorder %v2019, %v2112
        %vm2124 = vcmp.le.f32.partialorder %v2026, %v2114
        %v2125 = vsel %vm2115, inf, %v1963
        %v2126 = vsel %vm2116, inf, %v1970
        %v2127 = vsel %vm2117, inf, %v1977
        %v2128 = vsel %vm2118, inf, %v1984
        %v2129 = vsel %vm2119, inf, %v1991
        %v2130 = vsel %vm2120, inf, %v1998
        %v2131 = vsel %vm2121, inf, %v2005
        %v2132 = vsel %vm2122, inf, %v2012
        %v2133 = vsel %vm2123, inf, %v2019
        %v2134 = vsel %vm2124, inf, %v2026
        %2135 = vmin.xlane.f32.xlu0 %v2125
        %v2136 = vpop.xlane.xlu0 %2135
        %2137 = vmin.xlane.f32.xlu0 %v2126
        %v2138 = vpop.xlane.xlu0 %2137
        %2139 = vmin.xlane.f32.xlu0 %v2127
        %v2140 = vpop.xlane.xlu0 %2139
        %2141 = vmin.xlane.f32.xlu0 %v2128
        %v2142 = vpop.xlane.xlu0 %2141
        %2143 = vmin.xlane.f32.xlu0 %v2129
        %v2144 = vpop.xlane.xlu0 %2143
        %2145 = vmin.xlane.f32.xlu0 %v2130
        %v2146 = vpop.xlane.xlu0 %2145
        %2147 = vmin.xlane.f32.xlu0 %v2131
        %v2148 = vpop.xlane.xlu0 %2147
        %2149 = vmin.xlane.f32.xlu0 %v2132
        %v2150 = vpop.xlane.xlu0 %2149
        %2151 = vmin.xlane.f32.xlu0 %v2133
        %v2152 = vpop.xlane.xlu0 %2151
        %2153 = vmin.xlane.f32.xlu0 %v2134
        %v2154 = vpop.xlane.xlu0 %2153
        %vm2155 = vcmp.le.f32.partialorder %v2125, %v2136
        %vm2156 = vcmp.le.f32.partialorder %v2126, %v2138
        %vm2157 = vcmp.le.f32.partialorder %v2127, %v2140
        %vm2158 = vcmp.le.f32.partialorder %v2128, %v2142
        %vm2159 = vcmp.le.f32.partialorder %v2129, %v2144
        %vm2160 = vcmp.le.f32.partialorder %v2130, %v2146
        %vm2161 = vcmp.le.f32.partialorder %v2131, %v2148
        %vm2162 = vcmp.le.f32.partialorder %v2132, %v2150
        %vm2163 = vcmp.le.f32.partialorder %v2133, %v2152
        %vm2164 = vcmp.le.f32.partialorder %v2134, %v2154
        %v2165 = vsel %vm2155, inf, %v2125
        %v2166 = vsel %vm2156, inf, %v2126
        %v2167 = vsel %vm2157, inf, %v2127
        %v2168 = vsel %vm2158, inf, %v2128
        %v2169 = vsel %vm2159, inf, %v2129
        %v2170 = vsel %vm2160, inf, %v2130
        %v2171 = vsel %vm2161, inf, %v2131
        %v2172 = vsel %vm2162, inf, %v2132
        %v2173 = vsel %vm2163, inf, %v2133
        %v2174 = vsel %vm2164, inf, %v2134
        %2175 = vmin.xlane.f32.xlu0 %v2165
        %v2176 = vpop.xlane.xlu0 %2175
        %2177 = vmin.xlane.f32.xlu0 %v2166
        %v2178 = vpop.xlane.xlu0 %2177
        %2179 = vmin.xlane.f32.xlu0 %v2167
        %v2180 = vpop.xlane.xlu0 %2179
        %2181 = vmin.xlane.f32.xlu0 %v2168
        %v2182 = vpop.xlane.xlu0 %2181
        %2183 = vmin.xlane.f32.xlu0 %v2169
        %v2184 = vpop.xlane.xlu0 %2183
        %2185 = vmin.xlane.f32.xlu0 %v2170
        %v2186 = vpop.xlane.xlu0 %2185
        %2187 = vmin.xlane.f32.xlu0 %v2171
        %v2188 = vpop.xlane.xlu0 %2187
        %2189 = vmin.xlane.f32.xlu0 %v2172
        %v2190 = vpop.xlane.xlu0 %2189
        %2191 = vmin.xlane.f32.xlu0 %v2173
        %v2192 = vpop.xlane.xlu0 %2191
        %2193 = vmin.xlane.f32.xlu0 %v2174
        %v2194 = vpop.xlane.xlu0 %2193
        %vm2195 = vcmp.le.f32.partialorder %v2165, %v2176
        %vm2196 = vcmp.le.f32.partialorder %v2166, %v2178
        %vm2197 = vcmp.le.f32.partialorder %v2167, %v2180
        %vm2198 = vcmp.le.f32.partialorder %v2168, %v2182
        %vm2199 = vcmp.le.f32.partialorder %v2169, %v2184
        %vm2200 = vcmp.le.f32.partialorder %v2170, %v2186
        %vm2201 = vcmp.le.f32.partialorder %v2171, %v2188
        %vm2202 = vcmp.le.f32.partialorder %v2172, %v2190
        %vm2203 = vcmp.le.f32.partialorder %v2173, %v2192
        %vm2204 = vcmp.le.f32.partialorder %v2174, %v2194
        %v2205 = vsel %vm2195, inf, %v2165
        %v2206 = vsel %vm2196, inf, %v2166
        %v2207 = vsel %vm2197, inf, %v2167
        %v2208 = vsel %vm2198, inf, %v2168
        %v2209 = vsel %vm2199, inf, %v2169
        %v2210 = vsel %vm2200, inf, %v2170
        %v2211 = vsel %vm2201, inf, %v2171
        %v2212 = vsel %vm2202, inf, %v2172
        %v2213 = vsel %vm2203, inf, %v2173
        %v2214 = vsel %vm2204, inf, %v2174
        %2215 = vmin.xlane.f32.xlu0 %v2205
        %v2216 = vpop.xlane.xlu0 %2215
        %2217 = vmin.xlane.f32.xlu0 %v2206
        %v2218 = vpop.xlane.xlu0 %2217
        %2219 = vmin.xlane.f32.xlu0 %v2207
        %v2220 = vpop.xlane.xlu0 %2219
        %2221 = vmin.xlane.f32.xlu0 %v2208
        %v2222 = vpop.xlane.xlu0 %2221
        %2223 = vmin.xlane.f32.xlu0 %v2209
        %v2224 = vpop.xlane.xlu0 %2223
        %2225 = vmin.xlane.f32.xlu0 %v2210
        %v2226 = vpop.xlane.xlu0 %2225
        %2227 = vmin.xlane.f32.xlu0 %v2211
        %v2228 = vpop.xlane.xlu0 %2227
        %2229 = vmin.xlane.f32.xlu0 %v2212
        %v2230 = vpop.xlane.xlu0 %2229
        %2231 = vmin.xlane.f32.xlu0 %v2213
        %v2232 = vpop.xlane.xlu0 %2231
        %2233 = vmin.xlane.f32.xlu0 %v2214
        %v2234 = vpop.xlane.xlu0 %2233
        %vm2235 = vcmp.le.f32.partialorder %v2205, %v2216
        %vm2236 = vcmp.le.f32.partialorder %v2206, %v2218
        %vm2237 = vcmp.le.f32.partialorder %v2207, %v2220
        %vm2238 = vcmp.le.f32.partialorder %v2208, %v2222
        %vm2239 = vcmp.le.f32.partialorder %v2209, %v2224
        %vm2240 = vcmp.le.f32.partialorder %v2210, %v2226
        %vm2241 = vcmp.le.f32.partialorder %v2211, %v2228
        %vm2242 = vcmp.le.f32.partialorder %v2212, %v2230
        %vm2243 = vcmp.le.f32.partialorder %v2213, %v2232
        %vm2244 = vcmp.le.f32.partialorder %v2214, %v2234
        %v2245 = vsel %vm2235, inf, %v2205
        %v2246 = vsel %vm2236, inf, %v2206
        %v2247 = vsel %vm2237, inf, %v2207
        %v2248 = vsel %vm2238, inf, %v2208
        %v2249 = vsel %vm2239, inf, %v2209
        %v2250 = vsel %vm2240, inf, %v2210
        %v2251 = vsel %vm2241, inf, %v2211
        %v2252 = vsel %vm2242, inf, %v2212
        %v2253 = vsel %vm2243, inf, %v2213
        %v2254 = vsel %vm2244, inf, %v2214
        %2255 = vmin.xlane.f32.xlu0 %v2245
        %v2256 = vpop.xlane.xlu0 %2255
        %2257 = vmin.xlane.f32.xlu0 %v2246
        %v2258 = vpop.xlane.xlu0 %2257
        %2259 = vmin.xlane.f32.xlu0 %v2247
        %v2260 = vpop.xlane.xlu0 %2259
        %2261 = vmin.xlane.f32.xlu0 %v2248
        %v2262 = vpop.xlane.xlu0 %2261
        %2263 = vmin.xlane.f32.xlu0 %v2249
        %v2264 = vpop.xlane.xlu0 %2263
        %2265 = vmin.xlane.f32.xlu0 %v2250
        %v2266 = vpop.xlane.xlu0 %2265
        %2267 = vmin.xlane.f32.xlu0 %v2251
        %v2268 = vpop.xlane.xlu0 %2267
        %2269 = vmin.xlane.f32.xlu0 %v2252
        %v2270 = vpop.xlane.xlu0 %2269
        %2271 = vmin.xlane.f32.xlu0 %v2253
        %v2272 = vpop.xlane.xlu0 %2271
        %2273 = vmin.xlane.f32.xlu0 %v2254
        %v2274 = vpop.xlane.xlu0 %2273
        %vm2275 = vcmp.le.f32.partialorder %v1963, %v2256
        %vm2276 = vcmp.le.f32.partialorder %v1970, %v2258
        %vm2277 = vcmp.le.f32.partialorder %v1977, %v2260
        %vm2278 = vcmp.le.f32.partialorder %v1984, %v2262
        %vm2279 = vcmp.le.f32.partialorder %v1991, %v2264
        %vm2280 = vcmp.le.f32.partialorder %v1998, %v2266
        %vm2281 = vcmp.le.f32.partialorder %v2005, %v2268
        %vm2282 = vcmp.le.f32.partialorder %v2012, %v2270
        %vm2283 = vcmp.le.f32.partialorder %v2019, %v2272
        %vm2284 = vcmp.le.f32.partialorder %v2026, %v2274
        %v2285 = vsel %vm2275, %v2085, 0.0
        %v2286 = vsel %vm2276, %v2086, 0.0
        %v2287 = vsel %vm2277, %v2087, 0.0
        %v2288 = vsel %vm2278, %v2088, 0.0
        %v2289 = vsel %vm2279, %v2089, 0.0
        %v2290 = vsel %vm2280, %v2090, 0.0
        %v2291 = vsel %vm2281, %v2091, 0.0
        %v2292 = vsel %vm2282, %v2092, 0.0
        %v2293 = vsel %vm2283, %v2093, 0.0
        %v2294 = vsel %vm2284, %v2094, 0.0
        %2295 = vadd.xlane.f32.xlu0 %v2285
        %v2296 = vpop.xlane.xlu0 %2295
        %2297 = vadd.xlane.f32.xlu0 %v2286
        %v2298 = vpop.xlane.xlu0 %2297
        %2299 = vadd.xlane.f32.xlu0 %v2287
        %v2300 = vpop.xlane.xlu0 %2299
        %2301 = vadd.xlane.f32.xlu0 %v2288
        %v2302 = vpop.xlane.xlu0 %2301
        %2303 = vadd.xlane.f32.xlu0 %v2289
        %v2304 = vpop.xlane.xlu0 %2303
        %2305 = vadd.xlane.f32.xlu0 %v2290
        %v2306 = vpop.xlane.xlu0 %2305
        %2307 = vadd.xlane.f32.xlu0 %v2291
        %v2308 = vpop.xlane.xlu0 %2307
        %2309 = vadd.xlane.f32.xlu0 %v2292
        %v2310 = vpop.xlane.xlu0 %2309
        %2311 = vadd.xlane.f32.xlu0 %v2293
        %v2312 = vpop.xlane.xlu0 %2311
        %2313 = vadd.xlane.f32.xlu0 %v2294
        %v2314 = vpop.xlane.xlu0 %2313
        %v2315 = vmul.f32 %v2296, %v171
        %v2316 = vmul.f32 %v2298, %v172
        %v2317 = vmul.f32 %v2300, %v173
        %v2318 = vmul.f32 %v2302, %v174
        %v2319 = vmul.f32 %v2304, %v175
        %v2320 = vmul.f32 %v2306, %v176
        %v2321 = vmul.f32 %v2308, %v177
        %v2322 = vmul.f32 %v2310, %v178
        %v2323 = vmul.f32 %v2312, %v179
        %v2324 = vmul.f32 %v2314, %v180
        %2335 = vrot.lane.b32.xlu0 %v2315, 125
        %v2336 = vpop.permute.xlu0 %2335
        %2337 = vrot.lane.b32.xlu0 %v2316, 125
        %v2338 = vpop.permute.xlu0 %2337
        %2339 = vrot.lane.b32.xlu0 %v2317, 125
        %v2340 = vpop.permute.xlu0 %2339
        %2341 = vrot.lane.b32.xlu0 %v2318, 125
        %v2342 = vpop.permute.xlu0 %2341
        %2343 = vrot.lane.b32.xlu0 %v2319, 125
        %v2344 = vpop.permute.xlu0 %2343
        %2345 = vrot.lane.b32.xlu0 %v2320, 125
        %v2346 = vpop.permute.xlu0 %2345
        %2347 = vrot.lane.b32.xlu0 %v2321, 125
        %v2348 = vpop.permute.xlu0 %2347
        %2349 = vrot.lane.b32.xlu0 %v2322, 125
        %v2350 = vpop.permute.xlu0 %2349
        %2351 = vrot.lane.b32.xlu0 %v2323, 125
        %v2352 = vpop.permute.xlu0 %2351
        %2353 = vrot.lane.b32.xlu0 %v2324, 125
        %v2354 = vpop.permute.xlu0 %2353
        %vm2365 = vcmask 7168
        %v2366 = vsel %vm2365, %v2336, 0.0
        %v2367 = vsel %vm2365, %v2338, 0.0
        %v2368 = vadd.f32 %v2366, %v2367
        %v2369 = vsel %vm2365, %v2340, 0.0
        %v2370 = vadd.f32 %v2368, %v2369
        %v2371 = vsel %vm2365, %v2342, 0.0
        %v2372 = vadd.f32 %v2370, %v2371
        %v2373 = vsel %vm2365, %v2344, 0.0
        %v2374 = vadd.f32 %v2372, %v2373
        %v2375 = vsel %vm2365, %v2346, 0.0
        %v2376 = vadd.f32 %v2374, %v2375
        %v2377 = vsel %vm2365, %v2348, 0.0
        %v2378 = vadd.f32 %v2376, %v2377
        %v2379 = vsel %vm2365, %v2350, 0.0
        %v2380 = vadd.f32 %v2378, %v2379
        %v2381 = vsel %vm2365, %v2352, 0.0
        %v2382 = vadd.f32 %v2380, %v2381
        %v2383 = vsel %vm2365, %v2354, 0.0
        %v2384 = vadd.f32 %v2382, %v2383
        %2385 = vadd.xlane.f32.xlu0 %v2384
        %v2386 = vpop.xlane.xlu0 %2385
        %v2387 = vrot.slane %v2386, 4
        %v2388 = vadd.f32 %v2386, %v2387
        %v2389 = vrot.slane %v2388, 2
        %v2390 = vadd.f32 %v2388, %v2389
        %v2391 = vrot.slane %v2390, 1
        %v2392 = vadd.f32 %v2390, %v2391
        %s2393 = vtos %v2392
        %v2394 = vstv %s2393
        %2395 = vst [vmem:[%s164] sm:$0xff] %v2394
        %s2396 = sand.u32 %s93, 1
        %s2397 = scalar_lea.sflag [#allocation3], %s2396
        %s2398 = sand.u32 %s93, 1
        %s2399 = smul.addr %s2398, 8
        %s2400 = scalar_lea.vmem [#allocation2], %s2399
        // Predicated region
        $region33: #{tpu_custom_call.1} parent=31 // pred_check
          %p2401 = pneg %p103
        $region34: #{tpu_custom_call.1} parent=31 // pred_check_branch
          %2403 = sbr.rel (%p2401) target = $region36
        $region35: #{tpu_custom_call.1} parent=31 // pred_region
          %s2405 = ssub.s32 128, 128
          %2406 = vsyncadd %s2397, %s2405
          %s2407 = smul.addr %s17, 128
          %s2408 = scalar_lea.hbm %s3, %s2407
          %s2410 = sshll.u32 %s2400, 4
          %s2411 = int_to_ptr.vmem [resolvable:$true] %s2410
          %2413 = dma.vmem_to_hbm [thread:$0]  %s2411, 128, %s2408, %s2397
        $region36: #{tpu_custom_call.1} parent=31 // pred_fallthru
          _
      $region32: #{tpu_custom_call.1} parent=5 // pred_fallthru
        _
      %p2414 = scmp.le.s32.totalorder 2, %s12
      // Predicated region
      $region37: #{tpu_custom_call.1} parent=5 // pred_check
        %p2415 = pneg %p2414
      $region38: #{tpu_custom_call.1} parent=5 // pred_check_branch
        %2417 = sbr.rel (%p2415) target = $region40
      $region39: #{tpu_custom_call.1} parent=5 // pred_region
        %s2418 = ssub.s32 %s12, 2
        // Predicated region
        $region41: #{tpu_custom_call.1} parent=39 // pred_check
          %p2419 = pneg %p109
        $region42: #{tpu_custom_call.1} parent=39 // pred_check_branch
          %2421 = sbr.rel (%p2419) target = $region44
        $region43: #{tpu_custom_call.1} parent=39 // pred_region
          %s2422 = sand.u32 %s94, 1
          %s2423 = scalar_lea.sflag [#allocation3], %s2422
          %s2424 = sand.u32 %s94, 1
          %s2425 = smul.addr %s2424, 8
          %s2426 = scalar_lea.vmem [#allocation2], %s2425
          %2427 = dma.done %s2423, 128
        $region44: #{tpu_custom_call.1} parent=39 // pred_fallthru
          _
      $region40: #{tpu_custom_call.1} parent=5 // pred_fallthru
        _
    $region6: #{tpu_custom_call.1} parent=1 // loop_footer
      %s16 = sadd.s32 1, %s12
    $region7: #{tpu_custom_call.1} parent=1 // loop_footer_branch
      %11 = sbr.rel target = $region3
    $region8: #{tpu_custom_call.1} parent=1 // loop_exit
      _
    %2428 = vsyncpa [#allocation3], 1
    %s2429 = scalar_lea.sflag [#allocation3], 1
    %2430 = vsyncpa %s2429, 1

// kernel: tpu_custom_call.1
$region0: #{tpu_custom_call.1}
  #allocation0 [shape = 'u32[]', space=smem, size = 0x4, offset = 0x4, fixed_abs, tag = 'smem constant byte address 0x4 - core index']
  #allocation1 [shape = 'u32[144,128]{1,0:T(1,128)}', space=vmem, size = 0x12000, scoped, tag = 'internal scratch']
  %s0 = inlined_call_operand.vmem [shape: f32[160,8], index: 0, kind: input, shape index: {}]
  %s1 = inlined_call_operand.vmem [shape: f32[8,512], index: 1, kind: input, shape index: {}]
  %s2 = inlined_call_operand.vmem [shape: f32[1,128], index: 2, kind: input, shape index: {}]
  %s3 = inlined_call_operand.hbm [shape: f32[2,8,128], index: 3, kind: output, shape index: {}]
  %s4 = sld [smem:[#allocation0]]
  $region45: #{tpu_custom_call.1} parent=0
    _
  %s6 = ssub.s32 1, %s4
  %s7 = scalar_select 0, %s6, %s4
  $region1: #{tpu_custom_call.1} parent=0
    #allocation2 [shape = 'u8[8192]{0}', space=vmem, size = 0x2000, scoped, tag = 'output window, operand 0']
    #allocation3 [shape = 's32[2]{0}', space=sflag, size = 0x8, scoped, tag = 'scoped memory for tpu_custom_call.1']
    %8 = vsyncpa [#allocation3], 0
    %s9 = scalar_lea.sflag [#allocation3], 1
    %10 = vsyncpa %s9, 0
    loop: start=0, step=1, limit=4
    $region2: #{tpu_custom_call.1} parent=1 // loop_pre_header
      _
    $region3: #{tpu_custom_call.1} parent=1 // loop_header
      %s12 = sphi 0, %s16
      %p13 = scmp.ge.s32.totalorder %s12, 4
      %s22 = sphi 0, %s24
      %s25 = sphi 0, %s22
      %s26 = sphi 0, %s25
      %s42 = sphi 0, %s26
      %s46 = sphi 0, %s46
      %s48 = sphi 0, %s46
      %s49 = sphi 0, %s48
      %s63 = sphi 0, %s49
      %s67 = sphi 0, %s67
      %s69 = sphi 0, %s67
      %s70 = sphi 0, %s69
      %s84 = sphi 0, %s70
      %s90 = sphi 0, %s92
      %s93 = sphi 0, %s90
      %s94 = sphi 0, %s93
      %s110 = sphi 0, %s94
    $region4: #{tpu_custom_call.1} parent=1 // loop_header_branch
      %15 = sbr.rel (%p13) target = $region8
    $region5: #{tpu_custom_call.1} parent=1 // loop_body
      %s17 = ssub.s32 %s12, 1
      %s18 = ssub.s32 %s12, 2
      %s19 = sadd.s32 %s12, 1
      %s20 = ssub.s32 %s12, %s19
      %p21 = scmp.eq.s32.totalorder %s20, 0
      %s23 = sadd.s32 %s22, 1
      %s24 = scalar_select %p21, %s22, %s23
      %p27 = pneg %p21
      %p28 = scmp.eq.s32.totalorder %s12, 1
      %p29 = por %p27, %p28
      %p30 = scmp.ne.s32.totalorder %s22, %s25
      %p31 = scmp.eq.s32.totalorder %s12, 0
      %p32 = por %p30, %p31
      %p33 = scmp.ne.s32.totalorder %s22, %s25
      %p34 = scmp.eq.s32.totalorder %s17, 1
      %p35 = por %p33, %p34
      %p36 = scmp.ne.s32.totalorder %s25, %s26
      %p37 = scmp.eq.s32.totalorder %s17, 0
      %p38 = por %p36, %p37
      %p39 = scmp.ne.s32.totalorder %s25, %s26
      %p40 = scmp.eq.s32.totalorder %s18, 1
      %p41 = por %p39, %p40
      %p43 = scmp.ne.s32.totalorder %s26, %s42
      %p44 = scmp.eq.s32.totalorder %s18, 0
      %p45 = por %p43, %p44
      %s47 = sadd.s32 %s46, 1
      %p50 = scmp.eq.s32.totalorder %s12, 1
      %p51 = scmp.ne.s32.totalorder %s46, %s48
      %p52 = scmp.eq.s32.totalorder %s12, 0
      %p53 = por %p51, %p52
      %p54 = scmp.ne.s32.totalorder %s46, %s48
      %p55 = scmp.eq.s32.totalorder %s17, 1
      %p56 = por %p54, %p55
      %p57 = scmp.ne.s32.totalorder %s48, %s49
      %p58 = scmp.eq.s32.totalorder %s17, 0
      %p59 = por %p57, %p58
      %p60 = scmp.ne.s32.totalorder %s48, %s49
      %p61 = scmp.eq.s32.totalorder %s18, 1
      %p62 = por %p60, %p61
      %p64 = scmp.ne.s32.totalorder %s49, %s63
      %p65 = scmp.eq.s32.totalorder %s18, 0
      %p66 = por %p64, %p65
      %s68 = sadd.s32 %s67, 1
      %p71 = scmp.eq.s32.totalorder %s12, 1
      %p72 = scmp.ne.s32.totalorder %s67, %s69
      %p73 = scmp.eq.s32.totalorder %s12, 0
      %p74 = por %p72, %p73
      %p75 = scmp.ne.s32.totalorder %s67, %s69
      %p76 = scmp.eq.s32.totalorder %s17, 1
      %p77 = por %p75, %p76
      %p78 = scmp.ne.s32.totalorder %s69, %s70
      %p79 = scmp.eq.s32.totalorder %s17, 0
      %p80 = por %p78, %p79
      %p81 = scmp.ne.s32.totalorder %s69, %s70
      %p82 = scmp.eq.s32.totalorder %s18, 1
      %p83 = por %p81, %p82
      %p85 = scmp.ne.s32.totalorder %s70, %s84
      %p86 = scmp.eq.s32.totalorder %s18, 0
      %p87 = por %p85, %p86
      %s88 = ssub.s32 %s12, %s19
      %p89 = scmp.eq.s32.totalorder %s88, 0
      %s91 = sadd.s32 %s90, 1
      %s92 = scalar_select %p89, %s90, %s91
      %p95 = pneg %p89
      %p96 = scmp.eq.s32.totalorder %s12, 1
      %p97 = por %p95, %p96
      %p98 = scmp.ne.s32.totalorder %s90, %s93
      %p99 = scmp.eq.s32.totalorder %s12, 0
      %p100 = por %p98, %p99
      %p101 = scmp.ne.s32.totalorder %s90, %s93
      %p102 = scmp.eq.s32.totalorder %s17, 1
      %p103 = por %p101, %p102
      %p104 = scmp.ne.s32.totalorder %s93, %s94
      %p105 = scmp.eq.s32.totalorder %s17, 0
      %p106 = por %p104, %p105
      %p107 = scmp.ne.s32.totalorder %s93, %s94
      %p108 = scmp.eq.s32.totalorder %s18, 1
      %p109 = por %p107, %p108
      %p111 = scmp.ne.s32.totalorder %s94, %s110
      %p112 = scmp.eq.s32.totalorder %s18, 0
      %p113 = por %p111, %p112
      %p114 = scmp.le.s32.totalorder 1, %s12
      %p115 = scmp.lt.s32.totalorder %s12, 3
      %p116 = pnand %p114, %p115
      %p117 = pneg %p116
      // Predicated region
      $region9: #{tpu_custom_call.1} parent=5 // pred_check
        _
      $region10: #{tpu_custom_call.1} parent=5 // pred_check_branch
        %119 = sbr.rel (%p116) target = $region12
      $region11: #{tpu_custom_call.1} parent=5 // pred_region
        %s120 = ssub.s32 %s12, 1
        // Predicated region
        $region13: #{tpu_custom_call.1} parent=11 // pred_check
          %p121 = pneg %p59
        $region14: #{tpu_custom_call.1} parent=11 // pred_check_branch
          %123 = sbr.rel (%p121) target = $region16
        $region15: #{tpu_custom_call.1} parent=11 // pred_region
          _
        $region16: #{tpu_custom_call.1} parent=11 // pred_fallthru
          _
        // Predicated region
        $region17: #{tpu_custom_call.1} parent=11 // pred_check
          %p124 = pneg %p80
        $region18: #{tpu_custom_call.1} parent=11 // pred_check_branch
          %126 = sbr.rel (%p124) target = $region20
        $region19: #{tpu_custom_call.1} parent=11 // pred_region
          _
        $region20: #{tpu_custom_call.1} parent=11 // pred_fallthru
          _
      $region12: #{tpu_custom_call.1} parent=5 // pred_fallthru
        _
      %p127 = scmp.lt.s32.totalorder %s12, 2
      // Predicated region
      $region21: #{tpu_custom_call.1} parent=5 // pred_check
        %p128 = pneg %p127
      $region22: #{tpu_custom_call.1} parent=5 // pred_check_branch
        %130 = sbr.rel (%p128) target = $region24
      $region23: #{tpu_custom_call.1} parent=5 // pred_region
        // Predicated region
        $region25: #{tpu_custom_call.1} parent=23 // pred_check
          %p131 = pneg %p32
        $region26: #{tpu_custom_call.1} parent=23 // pred_check_branch
          %133 = sbr.rel (%p131) target = $region28
        $region27: #{tpu_custom_call.1} parent=23 // pred_region
          %s134 = smul.u32 10, %s12
          %p135 = scmp.lt.s32.totalorder %s134, 19
          %s136 = scalar_select %p135, %s134, 19
          %s137 = smul.addr %s136, 8
          %s138 = scalar_lea.vmem %s0, %s137
          %s139 = smul.u32 10, %s12
        $region28: #{tpu_custom_call.1} parent=23 // pred_fallthru
          _
      $region24: #{tpu_custom_call.1} parent=5 // pred_fallthru
        _
      %p140 = scmp.le.s32.totalorder 1, %s12
      %p141 = scmp.lt.s32.totalorder %s12, 3
      %p142 = pnand %p140, %p141
      %p143 = pneg %p142
      // Predicated region
      $region29: #{tpu_custom_call.1} parent=5 // pred_check
        _
      $region30: #{tpu_custom_call.1} parent=5 // pred_check_branch
        %145 = sbr.rel (%p142) target = $region32
      $region31: #{tpu_custom_call.1} parent=5 // pred_region
        %s146 = ssub.s32 %s12, 1
        %s147 = smul.u32 10, %s17
        %p148 = scmp.lt.s32.totalorder %s147, 19
        %s149 = scalar_select %p148, %s147, 19
        %s150 = smul.addr %s149, 8
        %s151 = scalar_lea.vmem %s0, %s150
        %p152 = pneg %p38
        %p153 = pneg %p35
        %p154 = pneg %p59
        %p155 = pneg %p56
        %p156 = pneg %p80
        %p157 = pneg %p77
        %p158 = pneg %p106
        %p159 = pneg %p103
        %s160 = sand.u32 %s93, 1
        %s161 = scalar_lea.sflag [#allocation3], %s160
        %s162 = sand.u32 %s93, 1
        %s163 = smul.addr %s162, 8
        %s164 = scalar_lea.vmem [#allocation2], %s163
        %s165 = smul.u32 10, %s17
        %p166 = scmp.lt.s32.totalorder %s165, 19
        %s167 = scalar_select %p166, %s165, 19
        %s168 = smul.addr %s167, 8
        %s169 = scalar_lea.vmem %s0, %s168
        %s170 = smul.u32 10, %s17
        %v171 = vld [vmem:[%s169] sm:$0xff]
        %v172 = vld [vmem:[%s169 + $0x8] sm:$0xff]
        %v173 = vld [vmem:[%s169 + $0x10] sm:$0xff]
        %v174 = vld [vmem:[%s169 + $0x18] sm:$0xff]
        %v175 = vld [vmem:[%s169 + $0x20] sm:$0xff]
        %v176 = vld [vmem:[%s169 + $0x28] sm:$0xff]
        %v177 = vld [vmem:[%s169 + $0x30] sm:$0xff]
        %v178 = vld [vmem:[%s169 + $0x38] sm:$0xff]
        %v179 = vld [vmem:[%s169 + $0x40] sm:$0xff]
        %v180 = vld [vmem:[%s169 + $0x48] sm:$0xff]
        %v181 = vld [vmem:[%s1] sm:$0xff]
        %v182 = vld [vmem:[%s1 + $0x8] sm:$0xff]
        %v183 = vld [vmem:[%s1 + $0x10] sm:$0xff]
        %v184 = vld [vmem:[%s1 + $0x18] sm:$0xff]
        %vm185 = vcmask 64512
        %v187 = vsel %vm185, %v171, 0
        %v190 = vsel %vm185, %v172, 0
        %v193 = vsel %vm185, %v173, 0
        %v196 = vsel %vm185, %v174, 0
        %v199 = vsel %vm185, %v175, 0
        %v202 = vsel %vm185, %v176, 0
        %v205 = vsel %vm185, %v177, 0
        %v208 = vsel %vm185, %v178, 0
        %v211 = vsel %vm185, %v179, 0
        %v214 = vsel %vm185, %v180, 0
        %v216 = vand.u32 %v182, 4294901760
        %217 = vmatprep.subr.mxu0 %v216
        %v218 = vand.u32 %v181, 4294901760
        %219 = vmatpush1.msra.mxu0 %v218
        %220 = vmatprep.subr.mxu0 0.0
        %221 = vmatpush1.msra.mxu0 0.0
        %222 = vmatprep.subr.mxu0 0.0
        %223 = vmatpush1.msra.mxu0 0.0
        %224 = vmatprep.subr.mxu0 0.0
        %225 = vmatpush1.msra.mxu0 0.0
        %226 = vmatprep.subr.mxu0 0.0
        %227 = vmatpush1.msra.mxu0 0.0
        %228 = vmatprep.subr.mxu0 0.0
        %229 = vmatpush1.msra.mxu0 0.0
        %230 = vmatprep.subr.mxu0 0.0
        %231 = vmatpush1.msra.mxu0 0.0
        %232 = vmatprep.subr.mxu0 0.0
        %233 = vmatpush1.msra.mxu0 0.0
        %234 = vmatprep.subr.mxu0 0.0
        %235 = vmatpush1.msra.mxu0 0.0
        %236 = vmatprep.subr.mxu0 0.0
        %237 = vmatpush1.msra.mxu0 0.0
        %238 = vmatprep.subr.mxu0 0.0
        %239 = vmatpush1.msra.mxu0 0.0
        %240 = vmatprep.subr.mxu0 0.0
        %241 = vmatpush1.msra.mxu0 0.0
        %242 = vmatprep.subr.mxu0 0.0
        %243 = vmatpush1.msra.mxu0 0.0
        %244 = vmatprep.subr.mxu0 0.0
        %245 = vmatpush1.msra.mxu0 0.0
        %246 = vmatprep.subr.mxu0 0.0
        %247 = vmatpush1.msra.mxu0 0.0
        %248 = vmatprep.subr.mxu0 0.0
        %249 = vmatpush1.msra.mxu0 0.0
        %250 = vmatprep.subr.mxu0 0.0
        %251 = vmatpush1.msra.mxu0 0.0
        %252 = vmatprep.subr.mxu0 0.0
        %253 = vmatpush1.msra.mxu0 0.0
        %254 = vmatprep.subr.mxu0 0.0
        %255 = vmatpush1.msra.mxu0 0.0
        %256 = vmatprep.subr.mxu0 0.0
        %257 = vmatpush1.msra.mxu0 0.0
        %258 = vmatprep.subr.mxu0 0.0
        %259 = vmatpush1.msra.mxu0 0.0
        %260 = vmatprep.subr.mxu0 0.0
        %261 = vmatpush1.msra.mxu0 0.0
        %262 = vmatprep.subr.mxu0 0.0
        %263 = vmatpush1.msra.mxu0 0.0
        %264 = vmatprep.subr.mxu0 0.0
        %265 = vmatpush1.msra.mxu0 0.0
        %266 = vmatprep.subr.mxu0 0.0
        %267 = vmatpush1.msra.mxu0 0.0
        %268 = vmatprep.subr.mxu0 0.0
        %269 = vmatpush1.msra.mxu0 0.0
        %270 = vmatprep.subr.mxu0 0.0
        %271 = vmatpush1.msra.mxu0 0.0
        %272 = vmatprep.subr.mxu0 0.0
        %273 = vmatpush1.msra.mxu0 0.0
        %274 = vmatprep.subr.mxu0 0.0
        %275 = vmatpush1.msra.mxu0 0.0
        %276 = vmatprep.subr.mxu0 0.0
        %277 = vmatpush1.msra.mxu0 0.0
        %278 = vmatprep.subr.mxu0 0.0
        %279 = vmatpush1.msra.mxu0 0.0
        %280 = vmatprep.subr.mxu0 0.0
        %281 = vmatpush1.msra.mxu0 0.0
        %282 = vmatprep.mubr.f32.mxu0 0.0
        %v283 = vand.u32 %v187, 4294901760
        %v284 = vsub.f32 %v187, %v283
        %v285 = vand.u32 %v284, 4294901760
        %v286 = vsub.f32 %v284, %v285
        %v287 = vand.u32 %v286, 4294901760
        %288 = vmatmul.mubr.f32.gmra.mrb[0].mxu0 %v287
        %v289 = vpop.f32.mrb[0].mxu0
        %v290 = vadd.f32 0.0, %v289
        %v291 = vpop.f32.mrb[0].mxu0
        %v292 = vadd.f32 0.0, %v291
        %293 = vmatprep.mubr.f32.mxu0 0.0
        %v294 = vand.u32 %v190, 4294901760
        %v295 = vsub.f32 %v190, %v294
        %v296 = vand.u32 %v295, 4294901760
        %v297 = vsub.f32 %v295, %v296
        %v298 = vand.u32 %v297, 4294901760
        %299 = vmatmul.mubr.f32.gmra.mrb[0].mxu0 %v298
        %v300 = vpop.f32.mrb[0].mxu0
        %v301 = vadd.f32 0.0, %v300
        %v302 = vpop.f32.mrb[0].mxu0
        %v303 = vadd.f32 0.0, %v302
        %304 = vmatprep.mubr.f32.mxu0 0.0
        %v305 = vand.u32 %v193, 4294901760
        %v306 = vsub.f32 %v193, %v305
        %v307 = vand.u32 %v306, 4294901760
        %v308 = vsub.f32 %v306, %v307
        %v309 = vand.u32 %v308, 4294901760
        %310 = vmatmul.mubr.f32.gmra.mrb[0].mxu0 %v309
        %v311 = vpop.f32.mrb[0].mxu0
        %v312 = vadd.f32 0.0, %v311
        %v313 = vpop.f32.mrb[0].mxu0
        %v314 = vadd.f32 0.0, %v313
        %315 = vmatprep.mubr.f32.mxu0 0.0
        %v316 = vand.u32 %v196, 4294901760
        %v317 = vsub.f32 %v196, %v316
        %v318 = vand.u32 %v317, 4294901760
        %v319 = vsub.f32 %v317, %v318
        %v320 = vand.u32 %v319, 4294901760
        %321 = vmatmul.mubr.f32.gmra.mrb[0].mxu0 %v320
        %v322 = vpop.f32.mrb[0].mxu0
        %v323 = vadd.f32 0.0, %v322
        %v324 = vpop.f32.mrb[0].mxu0
        %v325 = vadd.f32 0.0, %v324
        %326 = vmatprep.mubr.f32.mxu0 0.0
        %v327 = vand.u32 %v199, 4294901760
        %v328 = vsub.f32 %v199, %v327
        %v329 = vand.u32 %v328, 4294901760
        %v330 = vsub.f32 %v328, %v329
        %v331 = vand.u32 %v330, 4294901760
        %332 = vmatmul.mubr.f32.gmra.mrb[0].mxu0 %v331
        %v333 = vpop.f32.mrb[0].mxu0
        %v334 = vadd.f32 0.0, %v333
        %v335 = vpop.f32.mrb[0].mxu0
        %v336 = vadd.f32 0.0, %v335
        %337 = vmatprep.mubr.f32.mxu0 0.0
        %v338 = vand.u32 %v202, 4294901760
        %v339 = vsub.f32 %v202, %v338
        %v340 = vand.u32 %v339, 4294901760
        %v341 = vsub.f32 %v339, %v340
        %v342 = vand.u32 %v341, 4294901760
        %343 = vmatmul.mubr.f32.gmra.mrb[0].mxu0 %v342
        %v344 = vpop.f32.mrb[0].mxu0
        %v345 = vadd.f32 0.0, %v344
        %v346 = vpop.f32.mrb[0].mxu0
        %v347 = vadd.f32 0.0, %v346
        %348 = vmatprep.mubr.f32.mxu0 0.0
        %v349 = vand.u32 %v205, 4294901760
        %v350 = vsub.f32 %v205, %v349
        %v351 = vand.u32 %v350, 4294901760
        %v352 = vsub.f32 %v350, %v351
        %v353 = vand.u32 %v352, 4294901760
        %354 = vmatmul.mubr.f32.gmra.mrb[0].mxu0 %v353
        %v355 = vpop.f32.mrb[0].mxu0
        %v356 = vadd.f32 0.0, %v355
        %v357 = vpop.f32.mrb[0].mxu0
        %v358 = vadd.f32 0.0, %v357
        %359 = vmatprep.mubr.f32.mxu0 0.0
        %v360 = vand.u32 %v208, 4294901760
        %v361 = vsub.f32 %v208, %v360
        %v362 = vand.u32 %v361, 4294901760
        %v363 = vsub.f32 %v361, %v362
        %v364 = vand.u32 %v363, 4294901760
        %365 = vmatmul.mubr.f32.gmra.mrb[0].mxu0 %v364
        %v366 = vpop.f32.mrb[0].mxu0
        %v367 = vadd.f32 0.0, %v366
        %v368 = vpop.f32.mrb[0].mxu0
        %v369 = vadd.f32 0.0, %v368
        %370 = vmatprep.mubr.f32.mxu0 0.0
        %v371 = vand.u32 %v211, 4294901760
        %v372 = vsub.f32 %v211, %v371
        %v373 = vand.u32 %v372, 4294901760
        %v374 = vsub.f32 %v372, %v373
        %v375 = vand.u32 %v374, 4294901760
        %376 = vmatmul.mubr.f32.gmra.mrb[0].mxu0 %v375
        %v377 = vpop.f32.mrb[0].mxu0
        %v378 = vadd.f32 0.0, %v377
        %v379 = vpop.f32.mrb[0].mxu0
        %v380 = vadd.f32 0.0, %v379
        %381 = vmatprep.mubr.f32.mxu0 0.0
        %v382 = vand.u32 %v214, 4294901760
        %v383 = vsub.f32 %v214, %v382
        %v384 = vand.u32 %v383, 4294901760
        %v385 = vsub.f32 %v383, %v384
        %v386 = vand.u32 %v385, 4294901760
        %387 = vmatmul.mubr.f32.gmra.mrb[0].mxu0 %v386
        %v388 = vpop.f32.mrb[0].mxu0
        %v389 = vadd.f32 0.0, %v388
        %v390 = vpop.f32.mrb[0].mxu0
        %v391 = vadd.f32 0.0, %v390
        %392 = vdwg.mxu0
        %v393 = vand.u32 %v182, 4294901760
        %v394 = vsub.f32 %v182, %v393
        %v395 = vand.u32 %v394, 4294901760
        %v396 = vsub.f32 %v394, %v395
        %v397 = vand.u32 %v396, 4294901760
        %398 = vmatprep.subr.mxu0 %v397
        %v399 = vand.u32 %v181, 4294901760
        %v400 = vsub.f32 %v181, %v399
        %v401 = vand.u32 %v400, 4294901760
        %v402 = vsub.f32 %v400, %v401
        %v403 = vand.u32 %v402, 4294901760
        %404 = vmatpush1.msra.mxu0 %v403
        %405 = vmatprep.subr.mxu0 0.0
        %406 = vmatpush1.msra.mxu0 0.0
        %407 = vmatprep.subr.mxu0 0.0
        %408 = vmatpush1.msra.mxu0 0.0
        %409 = vmatprep.subr.mxu0 0.0
        %410 = vmatpush1.msra.mxu0 0.0
        %411 = vmatprep.subr.mxu0 0.0
        %412 = vmatpush1.msra.mxu0 0.0
        %413 = vmatprep.subr.mxu0 0.0
        %414 = vmatpush1.msra.mxu0 0.0
        %415 = vmatprep.subr.mxu0 0.0
        %416 = vmatpush1.msra.mxu0 0.0
        %417 = vmatprep.subr.mxu0 0.0
        %418 = vmatpush1.msra.mxu0 0.0
        %419 = vmatprep.subr.mxu0 0.0
        %420 = vmatpush1.msra.mxu0 0.0
        %421 = vmatprep.subr.mxu0 0.0
        %422 = vmatpush1.msra.mxu0 0.0
        %423 = vmatprep.subr.mxu0 0.0
        %424 = vmatpush1.msra.mxu0 0.0
        %425 = vmatprep.subr.mxu0 0.0
        %426 = vmatpush1.msra.mxu0 0.0
        %427 = vmatprep.subr.mxu0 0.0
        %428 = vmatpush1.msra.mxu0 0.0
        %429 = vmatprep.subr.mxu0 0.0
        %430 = vmatpush1.msra.mxu0 0.0
        %431 = vmatprep.subr.mxu0 0.0
        %432 = vmatpush1.msra.mxu0 0.0
        %433 = vmatprep.subr.mxu0 0.0
        %434 = vmatpush1.msra.mxu0 0.0
        %435 = vmatprep.subr.mxu0 0.0
        %436 = vmatpush1.msra.mxu0 0.0
        %437 = vmatprep.subr.mxu0 0.0
        %438 = vmatpush1.msra.mxu0 0.0
        %439 = vmatprep.subr.mxu0 0.0
        %440 = vmatpush1.msra.mxu0 0.0
        %441 = vmatprep.subr.mxu0 0.0
        %442 = vmatpush1.msra.mxu0 0.0
        %443 = vmatprep.subr.mxu0 0.0
        %444 = vmatpush1.msra.mxu0 0.0
        %445 = vmatprep.subr.mxu0 0.0
        %446 = vmatpush1.msra.mxu0 0.0
        %447 = vmatprep.subr.mxu0 0.0
        %448 = vmatpush1.msra.mxu0 0.0
        %449 = vmatprep.subr.mxu0 0.0
        %450 = vmatpush1.msra.mxu0 0.0
        %451 = vmatprep.subr.mxu0 0.0
        %452 = vmatpush1.msra.mxu0 0.0
        %453 = vmatprep.subr.mxu0 0.0
        %454 = vmatpush1.msra.mxu0 0.0
        %455 = vmatprep.subr.mxu0 0.0
        %456 = vmatpush1.msra.mxu0 0.0
        %457 = vmatprep.subr.mxu0 0.0
        %458 = vmatpush1.msra.mxu0 0.0
        %459 = vmatprep.subr.mxu0 0.0
        %460 = vmatpush1.msra.mxu0 0.0
        %461 = vmatprep.subr.mxu0 0.0
        %462 = vmatpush1.msra.mxu0 0.0
        %463 = vmatprep.subr.mxu0 0.0
        %464 = vmatpush1.msra.mxu0 0.0
        %465 = vmatprep.subr.mxu0 0.0
        %466 = vmatpush1.msra.mxu0 0.0
        %467 = vmatprep.mubr.f32.mxu0 0.0
        %v468 = vand.u32 %v187, 4294901760
        %469 = vmatmul.mubr.f32.gmra.mrb[0].mxu0 %v468
        %v470 = vpop.f32.mrb[0].mxu0
        %v471 = vadd.f32 %v290, %v470
        %v472 = vpop.f32.mrb[0].mxu0
        %v473 = vadd.f32 %v292, %v472
        %474 = vmatprep.mubr.f32.mxu0 0.0
        %v475 = vand.u32 %v190, 4294901760
        %476 = vmatmul.mubr.f32.gmra.mrb[0].mxu0 %v475
        %v477 = vpop.f32.mrb[0].mxu0
        %v478 = vadd.f32 %v301, %v477
        %v479 = vpop.f32.mrb[0].mxu0
        %v480 = vadd.f32 %v303, %v479
        %481 = vmatprep.mubr.f32.mxu0 0.0
        %v482 = vand.u32 %v193, 4294901760
        %483 = vmatmul.mubr.f32.gmra.mrb[0].mxu0 %v482
        %v484 = vpop.f32.mrb[0].mxu0
        %v485 = vadd.f32 %v312, %v484
        %v486 = vpop.f32.mrb[0].mxu0
        %v487 = vadd.f32 %v314, %v486
        %488 = vmatprep.mubr.f32.mxu0 0.0
        %v489 = vand.u32 %v196, 4294901760
        %490 = vmatmul.mubr.f32.gmra.mrb[0].mxu0 %v489
        %v491 = vpop.f32.mrb[0].mxu0
        %v492 = vadd.f32 %v323, %v491
        %v493 = vpop.f32.mrb[0].mxu0
        %v494 = vadd.f32 %v325, %v493
        %495 = vmatprep.mubr.f32.mxu0 0.0
        %v496 = vand.u32 %v199, 4294901760
        %497 = vmatmul.mubr.f32.gmra.mrb[0].mxu0 %v496
        %v498 = vpop.f32.mrb[0].mxu0
        %v499 = vadd.f32 %v334, %v498
        %v500 = vpop.f32.mrb[0].mxu0
        %v501 = vadd.f32 %v336, %v500
        %502 = vmatprep.mubr.f32.mxu0 0.0
        %v503 = vand.u32 %v202, 4294901760
        %504 = vmatmul.mubr.f32.gmra.mrb[0].mxu0 %v503
        %v505 = vpop.f32.mrb[0].mxu0
        %v506 = vadd.f32 %v345, %v505
        %v507 = vpop.f32.mrb[0].mxu0
        %v508 = vadd.f32 %v347, %v507
        %509 = vmatprep.mubr.f32.mxu0 0.0
        %v510 = vand.u32 %v205, 4294901760
        %511 = vmatmul.mubr.f32.gmra.mrb[0].mxu0 %v510
        %v512 = vpop.f32.mrb[0].mxu0
        %v513 = vadd.f32 %v356, %v512
        %v514 = vpop.f32.mrb[0].mxu0
        %v515 = vadd.f32 %v358, %v514
        %516 = vmatprep.mubr.f32.mxu0 0.0
        %v517 = vand.u32 %v208, 4294901760
        %518 = vmatmul.mubr.f32.gmra.mrb[0].mxu0 %v517
        %v519 = vpop.f32.mrb[0].mxu0
        %v520 = vadd.f32 %v367, %v519
        %v521 = vpop.f32.mrb[0].mxu0
        %v522 = vadd.f32 %v369, %v521
        %523 = vmatprep.mubr.f32.mxu0 0.0
        %v524 = vand.u32 %v211, 4294901760
        %525 = vmatmul.mubr.f32.gmra.mrb[0].mxu0 %v524
        %v526 = vpop.f32.mrb[0].mxu0
        %v527 = vadd.f32 %v378, %v526
        %v528 = vpop.f32.mrb[0].mxu0
        %v529 = vadd.f32 %v380, %v528
        %530 = vmatprep.mubr.f32.mxu0 0.0
        %v531 = vand.u32 %v214, 4294901760
        %532 = vmatmul.mubr.f32.gmra.mrb[0].mxu0 %v531
        %v533 = vpop.f32.mrb[0].mxu0
        %v534 = vadd.f32 %v389, %v533
        %v535 = vpop.f32.mrb[0].mxu0
        %v536 = vadd.f32 %v391, %v535
        %537 = vdwg.mxu0
        %v538 = vand.u32 %v182, 4294901760
        %v539 = vsub.f32 %v182, %v538
        %540 = vmatprep.subr.mxu0 %v539
        %v541 = vand.u32 %v181, 4294901760
        %v542 = vsub.f32 %v181, %v541
        %543 = vmatpush1.msra.mxu0 %v542
        %544 = vmatprep.subr.mxu0 0.0
        %545 = vmatpush1.msra.mxu0 0.0
        %546 = vmatprep.subr.mxu0 0.0
        %547 = vmatpush1.msra.mxu0 0.0
        %548 = vmatprep.subr.mxu0 0.0
        %549 = vmatpush1.msra.mxu0 0.0
        %550 = vmatprep.subr.mxu0 0.0
        %551 = vmatpush1.msra.mxu0 0.0
        %552 = vmatprep.subr.mxu0 0.0
        %553 = vmatpush1.msra.mxu0 0.0
        %554 = vmatprep.subr.mxu0 0.0
        %555 = vmatpush1.msra.mxu0 0.0
        %556 = vmatprep.subr.mxu0 0.0
        %557 = vmatpush1.msra.mxu0 0.0
        %558 = vmatprep.subr.mxu0 0.0
        %559 = vmatpush1.msra.mxu0 0.0
        %560 = vmatprep.subr.mxu0 0.0
        %561 = vmatpush1.msra.mxu0 0.0
        %562 = vmatprep.subr.mxu0 0.0
        %563 = vmatpush1.msra.mxu0 0.0
        %564 = vmatprep.subr.mxu0 0.0
        %565 = vmatpush1.msra.mxu0 0.0
        %566 = vmatprep.subr.mxu0 0.0
        %567 = vmatpush1.msra.mxu0 0.0
        %568 = vmatprep.subr.mxu0 0.0
        %569 = vmatpush1.msra.mxu0 0.0
        %570 = vmatprep.subr.mxu0 0.0
        %571 = vmatpush1.msra.mxu0 0.0
        %572 = vmatprep.subr.mxu0 0.0
        %573 = vmatpush1.msra.mxu0 0.0
        %574 = vmatprep.subr.mxu0 0.0
        %575 = vmatpush1.msra.mxu0 0.0
        %576 = vmatprep.subr.mxu0 0.0
        %577 = vmatpush1.msra.mxu0 0.0
        %578 = vmatprep.subr.mxu0 0.0
        %579 = vmatpush1.msra.mxu0 0.0
        %580 = vmatprep.subr.mxu0 0.0
        %581 = vmatpush1.msra.mxu0 0.0
        %582 = vmatprep.subr.mxu0 0.0
        %583 = vmatpush1.msra.mxu0 0.0
        %584 = vmatprep.subr.mxu0 0.0
        %585 = vmatpush1.msra.mxu0 0.0
        %586 = vmatprep.subr.mxu0 0.0
        %587 = vmatpush1.msra.mxu0 0.0
        %588 = vmatprep.subr.mxu0 0.0
        %589 = vmatpush1.msra.mxu0 0.0
        %590 = vmatprep.subr.mxu0 0.0
        %591 = vmatpush1.msra.mxu0 0.0
        %592 = vmatprep.subr.mxu0 0.0
        %593 = vmatpush1.msra.mxu0 0.0
        %594 = vmatprep.subr.mxu0 0.0
        %595 = vmatpush1.msra.mxu0 0.0
        %596 = vmatprep.subr.mxu0 0.0
        %597 = vmatpush1.msra.mxu0 0.0
        %598 = vmatprep.subr.mxu0 0.0
        %599 = vmatpush1.msra.mxu0 0.0
        %600 = vmatprep.subr.mxu0 0.0
        %601 = vmatpush1.msra.mxu0 0.0
        %602 = vmatprep.subr.mxu0 0.0
        %603 = vmatpush1.msra.mxu0 0.0
        %604 = vmatprep.subr.mxu0 0.0
        %605 = vmatpush1.msra.mxu0 0.0
        %606 = vmatprep.mubr.f32.mxu0 0.0
        %v607 = vand.u32 %v187, 4294901760
        %v608 = vsub.f32 %v187, %v607
        %609 = vmatmul.mubr.f32.gmra.mrb[0].mxu0 %v608
        %v610 = vpop.f32.mrb[0].mxu0
        %v611 = vadd.f32 %v471, %v610
        %v612 = vpop.f32.mrb[0].mxu0
        %v613 = vadd.f32 %v473, %v612
        %614 = vmatprep.mubr.f32.mxu0 0.0
        %v615 = vand.u32 %v190, 4294901760
        %v616 = vsub.f32 %v190, %v615
        %617 = vmatmul.mubr.f32.gmra.mrb[0].mxu0 %v616
        %v618 = vpop.f32.mrb[0].mxu0
        %v619 = vadd.f32 %v478, %v618
        %v620 = vpop.f32.mrb[0].mxu0
        %v621 = vadd.f32 %v480, %v620
        %622 = vmatprep.mubr.f32.mxu0 0.0
        %v623 = vand.u32 %v193, 4294901760
        %v624 = vsub.f32 %v193, %v623
        %625 = vmatmul.mubr.f32.gmra.mrb[0].mxu0 %v624
        %v626 = vpop.f32.mrb[0].mxu0
        %v627 = vadd.f32 %v485, %v626
        %v628 = vpop.f32.mrb[0].mxu0
        %v629 = vadd.f32 %v487, %v628
        %630 = vmatprep.mubr.f32.mxu0 0.0
        %v631 = vand.u32 %v196, 4294901760
        %v632 = vsub.f32 %v196, %v631
        %633 = vmatmul.mubr.f32.gmra.mrb[0].mxu0 %v632
        %v634 = vpop.f32.mrb[0].mxu0
        %v635 = vadd.f32 %v492, %v634
        %v636 = vpop.f32.mrb[0].mxu0
        %v637 = vadd.f32 %v494, %v636
        %638 = vmatprep.mubr.f32.mxu0 0.0
        %v639 = vand.u32 %v199, 4294901760
        %v640 = vsub.f32 %v199, %v639
        %641 = vmatmul.mubr.f32.gmra.mrb[0].mxu0 %v640
        %v642 = vpop.f32.mrb[0].mxu0
        %v643 = vadd.f32 %v499, %v642
        %v644 = vpop.f32.mrb[0].mxu0
        %v645 = vadd.f32 %v501, %v644
        %646 = vmatprep.mubr.f32.mxu0 0.0
        %v647 = vand.u32 %v202, 4294901760
        %v648 = vsub.f32 %v202, %v647
        %649 = vmatmul.mubr.f32.gmra.mrb[0].mxu0 %v648
        %v650 = vpop.f32.mrb[0].mxu0
        %v651 = vadd.f32 %v506, %v650
        %v652 = vpop.f32.mrb[0].mxu0
        %v653 = vadd.f32 %v508, %v652
        %654 = vmatprep.mubr.f32.mxu0 0.0
        %v655 = vand.u32 %v205, 4294901760
        %v656 = vsub.f32 %v205, %v655
        %657 = vmatmul.mubr.f32.gmra.mrb[0].mxu0 %v656
        %v658 = vpop.f32.mrb[0].mxu0
        %v659 = vadd.f32 %v513, %v658
        %v660 = vpop.f32.mrb[0].mxu0
        %v661 = vadd.f32 %v515, %v660
        %662 = vmatprep.mubr.f32.mxu0 0.0
        %v663 = vand.u32 %v208, 4294901760
        %v664 = vsub.f32 %v208, %v663
        %665 = vmatmul.mubr.f32.gmra.mrb[0].mxu0 %v664
        %v666 = vpop.f32.mrb[0].mxu0
        %v667 = vadd.f32 %v520, %v666
        %v668 = vpop.f32.mrb[0].mxu0
        %v669 = vadd.f32 %v522, %v668
        %670 = vmatprep.mubr.f32.mxu0 0.0
        %v671 = vand.u32 %v211, 4294901760
        %v672 = vsub.f32 %v211, %v671
        %673 = vmatmul.mubr.f32.gmra.mrb[0].mxu0 %v672
        %v674 = vpop.f32.mrb[0].mxu0
        %v675 = vadd.f32 %v527, %v674
        %v676 = vpop.f32.mrb[0].mxu0
        %v677 = vadd.f32 %v529, %v676
        %678 = vmatprep.mubr.f32.mxu0 0.0
        %v679 = vand.u32 %v214, 4294901760
        %v680 = vsub.f32 %v214, %v679
        %681 = vmatmul.mubr.f32.gmra.mrb[0].mxu0 %v680
        %v682 = vpop.f32.mrb[0].mxu0
        %v683 = vadd.f32 %v534, %v682
        %v684 = vpop.f32.mrb[0].mxu0
        %v685 = vadd.f32 %v536, %v684
        %686 = vdwg.mxu0
        %v687 = vand.u32 %v182, 4294901760
        %688 = vmatprep.subr.mxu0 %v687
        %v689 = vand.u32 %v181, 4294901760
        %690 = vmatpush1.msra.mxu0 %v689
        %691 = vmatprep.subr.mxu0 0.0
        %692 = vmatpush1.msra.mxu0 0.0
        %693 = vmatprep.subr.mxu0 0.0
        %694 = vmatpush1.msra.mxu0 0.0
        %695 = vmatprep.subr.mxu0 0.0
        %696 = vmatpush1.msra.mxu0 0.0
        %697 = vmatprep.subr.mxu0 0.0
        %698 = vmatpush1.msra.mxu0 0.0
        %699 = vmatprep.subr.mxu0 0.0
        %700 = vmatpush1.msra.mxu0 0.0
        %701 = vmatprep.subr.mxu0 0.0
        %702 = vmatpush1.msra.mxu0 0.0
        %703 = vmatprep.subr.mxu0 0.0
        %704 = vmatpush1.msra.mxu0 0.0
        %705 = vmatprep.subr.mxu0 0.0
        %706 = vmatpush1.msra.mxu0 0.0
        %707 = vmatprep.subr.mxu0 0.0
        %708 = vmatpush1.msra.mxu0 0.0
        %709 = vmatprep.subr.mxu0 0.0
        %710 = vmatpush1.msra.mxu0 0.0
        %711 = vmatprep.subr.mxu0 0.0
        %712 = vmatpush1.msra.mxu0 0.0
        %713 = vmatprep.subr.mxu0 0.0
        %714 = vmatpush1.msra.mxu0 0.0
        %715 = vmatprep.subr.mxu0 0.0
        %716 = vmatpush1.msra.mxu0 0.0
        %717 = vmatprep.subr.mxu0 0.0
        %718 = vmatpush1.msra.mxu0 0.0
        %719 = vmatprep.subr.mxu0 0.0
        %720 = vmatpush1.msra.mxu0 0.0
        %721 = vmatprep.subr.mxu0 0.0
        %722 = vmatpush1.msra.mxu0 0.0
        %723 = vmatprep.subr.mxu0 0.0
        %724 = vmatpush1.msra.mxu0 0.0
        %725 = vmatprep.subr.mxu0 0.0
        %726 = vmatpush1.msra.mxu0 0.0
        %727 = vmatprep.subr.mxu0 0.0
        %728 = vmatpush1.msra.mxu0 0.0
        %729 = vmatprep.subr.mxu0 0.0
        %730 = vmatpush1.msra.mxu0 0.0
        %731 = vmatprep.subr.mxu0 0.0
        %732 = vmatpush1.msra.mxu0 0.0
        %733 = vmatprep.subr.mxu0 0.0
        %734 = vmatpush1.msra.mxu0 0.0
        %735 = vmatprep.subr.mxu0 0.0
        %736 = vmatpush1.msra.mxu0 0.0
        %737 = vmatprep.subr.mxu0 0.0
        %738 = vmatpush1.msra.mxu0 0.0
        %739 = vmatprep.subr.mxu0 0.0
        %740 = vmatpush1.msra.mxu0 0.0
        %741 = vmatprep.subr.mxu0 0.0
        %742 = vmatpush1.msra.mxu0 0.0
        %743 = vmatprep.subr.mxu0 0.0
        %744 = vmatpush1.msra.mxu0 0.0
        %745 = vmatprep.subr.mxu0 0.0
        %746 = vmatpush1.msra.mxu0 0.0
        %747 = vmatprep.subr.mxu0 0.0
        %748 = vmatpush1.msra.mxu0 0.0
        %749 = vmatprep.subr.mxu0 0.0
        %750 = vmatpush1.msra.mxu0 0.0
        %751 = vmatprep.subr.mxu0 0.0
        %752 = vmatpush1.msra.mxu0 0.0
        %753 = vmatprep.mubr.f32.mxu0 0.0
        %v754 = vand.u32 %v187, 4294901760
        %v755 = vsub.f32 %v187, %v754
        %v756 = vand.u32 %v755, 4294901760
        %757 = vmatmul.mubr.f32.gmra.mrb[0].mxu0 %v756
        %v758 = vpop.f32.mrb[0].mxu0
        %v759 = vadd.f32 %v611, %v758
        %v760 = vpop.f32.mrb[0].mxu0
        %v761 = vadd.f32 %v613, %v760
        %762 = vmatprep.mubr.f32.mxu0 0.0
        %v763 = vand.u32 %v190, 4294901760
        %v764 = vsub.f32 %v190, %v763
        %v765 = vand.u32 %v764, 4294901760
        %766 = vmatmul.mubr.f32.gmra.mrb[0].mxu0 %v765
        %v767 = vpop.f32.mrb[0].mxu0
        %v768 = vadd.f32 %v619, %v767
        %v769 = vpop.f32.mrb[0].mxu0
        %v770 = vadd.f32 %v621, %v769
        %771 = vmatprep.mubr.f32.mxu0 0.0
        %v772 = vand.u32 %v193, 4294901760
        %v773 = vsub.f32 %v193, %v772
        %v774 = vand.u32 %v773, 4294901760
        %775 = vmatmul.mubr.f32.gmra.mrb[0].mxu0 %v774
        %v776 = vpop.f32.mrb[0].mxu0
        %v777 = vadd.f32 %v627, %v776
        %v778 = vpop.f32.mrb[0].mxu0
        %v779 = vadd.f32 %v629, %v778
        %780 = vmatprep.mubr.f32.mxu0 0.0
        %v781 = vand.u32 %v196, 4294901760
        %v782 = vsub.f32 %v196, %v781
        %v783 = vand.u32 %v782, 4294901760
        %784 = vmatmul.mubr.f32.gmra.mrb[0].mxu0 %v783
        %v785 = vpop.f32.mrb[0].mxu0
        %v786 = vadd.f32 %v635, %v785
        %v787 = vpop.f32.mrb[0].mxu0
        %v788 = vadd.f32 %v637, %v787
        %789 = vmatprep.mubr.f32.mxu0 0.0
        %v790 = vand.u32 %v199, 4294901760
        %v791 = vsub.f32 %v199, %v790
        %v792 = vand.u32 %v791, 4294901760
        %793 = vmatmul.mubr.f32.gmra.mrb[0].mxu0 %v792
        %v794 = vpop.f32.mrb[0].mxu0
        %v795 = vadd.f32 %v643, %v794
        %v796 = vpop.f32.mrb[0].mxu0
        %v797 = vadd.f32 %v645, %v796
        %798 = vmatprep.mubr.f32.mxu0 0.0
        %v799 = vand.u32 %v202, 4294901760
        %v800 = vsub.f32 %v202, %v799
        %v801 = vand.u32 %v800, 4294901760
        %802 = vmatmul.mubr.f32.gmra.mrb[0].mxu0 %v801
        %v803 = vpop.f32.mrb[0].mxu0
        %v804 = vadd.f32 %v651, %v803
        %v805 = vpop.f32.mrb[0].mxu0
        %v806 = vadd.f32 %v653, %v805
        %807 = vmatprep.mubr.f32.mxu0 0.0
        %v808 = vand.u32 %v205, 4294901760
        %v809 = vsub.f32 %v205, %v808
        %v810 = vand.u32 %v809, 4294901760
        %811 = vmatmul.mubr.f32.gmra.mrb[0].mxu0 %v810
        %v812 = vpop.f32.mrb[0].mxu0
        %v813 = vadd.f32 %v659, %v812
        %v814 = vpop.f32.mrb[0].mxu0
        %v815 = vadd.f32 %v661, %v814
        %816 = vmatprep.mubr.f32.mxu0 0.0
        %v817 = vand.u32 %v208, 4294901760
        %v818 = vsub.f32 %v208, %v817
        %v819 = vand.u32 %v818, 4294901760
        %820 = vmatmul.mubr.f32.gmra.mrb[0].mxu0 %v819
        %v821 = vpop.f32.mrb[0].mxu0
        %v822 = vadd.f32 %v667, %v821
        %v823 = vpop.f32.mrb[0].mxu0
        %v824 = vadd.f32 %v669, %v823
        %825 = vmatprep.mubr.f32.mxu0 0.0
        %v826 = vand.u32 %v211, 4294901760
        %v827 = vsub.f32 %v211, %v826
        %v828 = vand.u32 %v827, 4294901760
        %829 = vmatmul.mubr.f32.gmra.mrb[0].mxu0 %v828
        %v830 = vpop.f32.mrb[0].mxu0
        %v831 = vadd.f32 %v675, %v830
        %v832 = vpop.f32.mrb[0].mxu0
        %v833 = vadd.f32 %v677, %v832
        %834 = vmatprep.mubr.f32.mxu0 0.0
        %v835 = vand.u32 %v214, 4294901760
        %v836 = vsub.f32 %v214, %v835
        %v837 = vand.u32 %v836, 4294901760
        %838 = vmatmul.mubr.f32.gmra.mrb[0].mxu0 %v837
        %v839 = vpop.f32.mrb[0].mxu0
        %v840 = vadd.f32 %v683, %v839
        %v841 = vpop.f32.mrb[0].mxu0
        %v842 = vadd.f32 %v685, %v841
        %843 = vdwg.mxu0
        %v844 = vand.u32 %v182, 4294901760
        %v845 = vsub.f32 %v182, %v844
        %v846 = vand.u32 %v845, 4294901760
        %847 = vmatprep.subr.mxu0 %v846
        %v848 = vand.u32 %v181, 4294901760
        %v849 = vsub.f32 %v181, %v848
        %v850 = vand.u32 %v849, 4294901760
        %851 = vmatpush1.msra.mxu0 %v850
        %852 = vmatprep.subr.mxu0 0.0
        %853 = vmatpush1.msra.mxu0 0.0
        %854 = vmatprep.subr.mxu0 0.0
        %855 = vmatpush1.msra.mxu0 0.0
        %856 = vmatprep.subr.mxu0 0.0
        %857 = vmatpush1.msra.mxu0 0.0
        %858 = vmatprep.subr.mxu0 0.0
        %859 = vmatpush1.msra.mxu0 0.0
        %860 = vmatprep.subr.mxu0 0.0
        %861 = vmatpush1.msra.mxu0 0.0
        %862 = vmatprep.subr.mxu0 0.0
        %863 = vmatpush1.msra.mxu0 0.0
        %864 = vmatprep.subr.mxu0 0.0
        %865 = vmatpush1.msra.mxu0 0.0
        %866 = vmatprep.subr.mxu0 0.0
        %867 = vmatpush1.msra.mxu0 0.0
        %868 = vmatprep.subr.mxu0 0.0
        %869 = vmatpush1.msra.mxu0 0.0
        %870 = vmatprep.subr.mxu0 0.0
        %871 = vmatpush1.msra.mxu0 0.0
        %872 = vmatprep.subr.mxu0 0.0
        %873 = vmatpush1.msra.mxu0 0.0
        %874 = vmatprep.subr.mxu0 0.0
        %875 = vmatpush1.msra.mxu0 0.0
        %876 = vmatprep.subr.mxu0 0.0
        %877 = vmatpush1.msra.mxu0 0.0
        %878 = vmatprep.subr.mxu0 0.0
        %879 = vmatpush1.msra.mxu0 0.0
        %880 = vmatprep.subr.mxu0 0.0
        %881 = vmatpush1.msra.mxu0 0.0
        %882 = vmatprep.subr.mxu0 0.0
        %883 = vmatpush1.msra.mxu0 0.0
        %884 = vmatprep.subr.mxu0 0.0
        %885 = vmatpush1.msra.mxu0 0.0
        %886 = vmatprep.subr.mxu0 0.0
        %887 = vmatpush1.msra.mxu0 0.0
        %888 = vmatprep.subr.mxu0 0.0
        %889 = vmatpush1.msra.mxu0 0.0
        %890 = vmatprep.subr.mxu0 0.0
        %891 = vmatpush1.msra.mxu0 0.0
        %892 = vmatprep.subr.mxu0 0.0
        %893 = vmatpush1.msra.mxu0 0.0
        %894 = vmatprep.subr.mxu0 0.0
        %895 = vmatpush1.msra.mxu0 0.0
        %896 = vmatprep.subr.mxu0 0.0
        %897 = vmatpush1.msra.mxu0 0.0
        %898 = vmatprep.subr.mxu0 0.0
        %899 = vmatpush1.msra.mxu0 0.0
        %900 = vmatprep.subr.mxu0 0.0
        %901 = vmatpush1.msra.mxu0 0.0
        %902 = vmatprep.subr.mxu0 0.0
        %903 = vmatpush1.msra.mxu0 0.0
        %904 = vmatprep.subr.mxu0 0.0
        %905 = vmatpush1.msra.mxu0 0.0
        %906 = vmatprep.subr.mxu0 0.0
        %907 = vmatpush1.msra.mxu0 0.0
        %908 = vmatprep.subr.mxu0 0.0
        %909 = vmatpush1.msra.mxu0 0.0
        %910 = vmatprep.subr.mxu0 0.0
        %911 = vmatpush1.msra.mxu0 0.0
        %912 = vmatprep.subr.mxu0 0.0
        %913 = vmatpush1.msra.mxu0 0.0
        %914 = vmatprep.mubr.f32.mxu0 0.0
        %v915 = vand.u32 %v187, 4294901760
        %916 = vmatmul.mubr.f32.gmra.mrb[0].mxu0 %v915
        %v917 = vpop.f32.mrb[0].mxu0
        %v918 = vadd.f32 %v759, %v917
        %v919 = vpop.f32.mrb[0].mxu0
        %v920 = vadd.f32 %v761, %v919
        %921 = vmatprep.mubr.f32.mxu0 0.0
        %v922 = vand.u32 %v190, 4294901760
        %923 = vmatmul.mubr.f32.gmra.mrb[0].mxu0 %v922
        %v924 = vpop.f32.mrb[0].mxu0
        %v925 = vadd.f32 %v768, %v924
        %v926 = vpop.f32.mrb[0].mxu0
        %v927 = vadd.f32 %v770, %v926
        %928 = vmatprep.mubr.f32.mxu0 0.0
        %v929 = vand.u32 %v193, 4294901760
        %930 = vmatmul.mubr.f32.gmra.mrb[0].mxu0 %v929
        %v931 = vpop.f32.mrb[0].mxu0
        %v932 = vadd.f32 %v777, %v931
        %v933 = vpop.f32.mrb[0].mxu0
        %v934 = vadd.f32 %v779, %v933
        %935 = vmatprep.mubr.f32.mxu0 0.0
        %v936 = vand.u32 %v196, 4294901760
        %937 = vmatmul.mubr.f32.gmra.mrb[0].mxu0 %v936
        %v938 = vpop.f32.mrb[0].mxu0
        %v939 = vadd.f32 %v786, %v938
        %v940 = vpop.f32.mrb[0].mxu0
        %v941 = vadd.f32 %v788, %v940
        %942 = vmatprep.mubr.f32.mxu0 0.0
        %v943 = vand.u32 %v199, 4294901760
        %944 = vmatmul.mubr.f32.gmra.mrb[0].mxu0 %v943
        %v945 = vpop.f32.mrb[0].mxu0
        %v946 = vadd.f32 %v795, %v945
        %v947 = vpop.f32.mrb[0].mxu0
        %v948 = vadd.f32 %v797, %v947
        %949 = vmatprep.mubr.f32.mxu0 0.0
        %v950 = vand.u32 %v202, 4294901760
        %951 = vmatmul.mubr.f32.gmra.mrb[0].mxu0 %v950
        %v952 = vpop.f32.mrb[0].mxu0
        %v953 = vadd.f32 %v804, %v952
        %v954 = vpop.f32.mrb[0].mxu0
        %v955 = vadd.f32 %v806, %v954
        %956 = vmatprep.mubr.f32.mxu0 0.0
        %v957 = vand.u32 %v205, 4294901760
        %958 = vmatmul.mubr.f32.gmra.mrb[0].mxu0 %v957
        %v959 = vpop.f32.mrb[0].mxu0
        %v960 = vadd.f32 %v813, %v959
        %v961 = vpop.f32.mrb[0].mxu0
        %v962 = vadd.f32 %v815, %v961
        %963 = vmatprep.mubr.f32.mxu0 0.0
        %v964 = vand.u32 %v208, 4294901760
        %965 = vmatmul.mubr.f32.gmra.mrb[0].mxu0 %v964
        %v966 = vpop.f32.mrb[0].mxu0
        %v967 = vadd.f32 %v822, %v966
        %v968 = vpop.f32.mrb[0].mxu0
        %v969 = vadd.f32 %v824, %v968
        %970 = vmatprep.mubr.f32.mxu0 0.0
        %v971 = vand.u32 %v211, 4294901760
        %972 = vmatmul.mubr.f32.gmra.mrb[0].mxu0 %v971
        %v973 = vpop.f32.mrb[0].mxu0
        %v974 = vadd.f32 %v831, %v973
        %v975 = vpop.f32.mrb[0].mxu0
        %v976 = vadd.f32 %v833, %v975
        %977 = vmatprep.mubr.f32.mxu0 0.0
        %v978 = vand.u32 %v214, 4294901760
        %979 = vmatmul.mubr.f32.gmra.mrb[0].mxu0 %v978
        %v980 = vpop.f32.mrb[0].mxu0
        %v981 = vadd.f32 %v840, %v980
        %v982 = vpop.f32.mrb[0].mxu0
        %v983 = vadd.f32 %v842, %v982
        %984 = vdwg.mxu0
        %v985 = vand.u32 %v182, 4294901760
        %986 = vmatprep.subr.mxu0 %v985
        %v987 = vand.u32 %v181, 4294901760
        %988 = vmatpush1.msra.mxu0 %v987
        %989 = vmatprep.subr.mxu0 0.0
        %990 = vmatpush1.msra.mxu0 0.0
        %991 = vmatprep.subr.mxu0 0.0
        %992 = vmatpush1.msra.mxu0 0.0
        %993 = vmatprep.subr.mxu0 0.0
        %994 = vmatpush1.msra.mxu0 0.0
        %995 = vmatprep.subr.mxu0 0.0
        %996 = vmatpush1.msra.mxu0 0.0
        %997 = vmatprep.subr.mxu0 0.0
        %998 = vmatpush1.msra.mxu0 0.0
        %999 = vmatprep.subr.mxu0 0.0
        %1000 = vmatpush1.msra.mxu0 0.0
        %1001 = vmatprep.subr.mxu0 0.0
        %1002 = vmatpush1.msra.mxu0 0.0
        %1003 = vmatprep.subr.mxu0 0.0
        %1004 = vmatpush1.msra.mxu0 0.0
        %1005 = vmatprep.subr.mxu0 0.0
        %1006 = vmatpush1.msra.mxu0 0.0
        %1007 = vmatprep.subr.mxu0 0.0
        %1008 = vmatpush1.msra.mxu0 0.0
        %1009 = vmatprep.subr.mxu0 0.0
        %1010 = vmatpush1.msra.mxu0 0.0
        %1011 = vmatprep.subr.mxu0 0.0
        %1012 = vmatpush1.msra.mxu0 0.0
        %1013 = vmatprep.subr.mxu0 0.0
        %1014 = vmatpush1.msra.mxu0 0.0
        %1015 = vmatprep.subr.mxu0 0.0
        %1016 = vmatpush1.msra.mxu0 0.0
        %1017 = vmatprep.subr.mxu0 0.0
        %1018 = vmatpush1.msra.mxu0 0.0
        %1019 = vmatprep.subr.mxu0 0.0
        %1020 = vmatpush1.msra.mxu0 0.0
        %1021 = vmatprep.subr.mxu0 0.0
        %1022 = vmatpush1.msra.mxu0 0.0
        %1023 = vmatprep.subr.mxu0 0.0
        %1024 = vmatpush1.msra.mxu0 0.0
        %1025 = vmatprep.subr.mxu0 0.0
        %1026 = vmatpush1.msra.mxu0 0.0
        %1027 = vmatprep.subr.mxu0 0.0
        %1028 = vmatpush1.msra.mxu0 0.0
        %1029 = vmatprep.subr.mxu0 0.0
        %1030 = vmatpush1.msra.mxu0 0.0
        %1031 = vmatprep.subr.mxu0 0.0
        %1032 = vmatpush1.msra.mxu0 0.0
        %1033 = vmatprep.subr.mxu0 0.0
        %1034 = vmatpush1.msra.mxu0 0.0
        %1035 = vmatprep.subr.mxu0 0.0
        %1036 = vmatpush1.msra.mxu0 0.0
        %1037 = vmatprep.subr.mxu0 0.0
        %1038 = vmatpush1.msra.mxu0 0.0
        %1039 = vmatprep.subr.mxu0 0.0
        %1040 = vmatpush1.msra.mxu0 0.0
        %1041 = vmatprep.subr.mxu0 0.0
        %1042 = vmatpush1.msra.mxu0 0.0
        %1043 = vmatprep.subr.mxu0 0.0
        %1044 = vmatpush1.msra.mxu0 0.0
        %1045 = vmatprep.subr.mxu0 0.0
        %1046 = vmatpush1.msra.mxu0 0.0
        %1047 = vmatprep.subr.mxu0 0.0
        %1048 = vmatpush1.msra.mxu0 0.0
        %1049 = vmatprep.subr.mxu0 0.0
        %1050 = vmatpush1.msra.mxu0 0.0
        %1051 = vmatprep.mubr.f32.mxu0 0.0
        %v1052 = vand.u32 %v187, 4294901760
        %1053 = vmatmul.mubr.f32.gmra.mrb[0].mxu0 %v1052
        %v1054 = vpop.f32.mrb[0].mxu0
        %v1055 = vadd.f32 %v918, %v1054
        %v1056 = vpop.f32.mrb[0].mxu0
        %v1057 = vadd.f32 %v920, %v1056
        %1058 = vmatprep.mubr.f32.mxu0 0.0
        %v1059 = vand.u32 %v190, 4294901760
        %1060 = vmatmul.mubr.f32.gmra.mrb[0].mxu0 %v1059
        %v1061 = vpop.f32.mrb[0].mxu0
        %v1062 = vadd.f32 %v925, %v1061
        %v1063 = vpop.f32.mrb[0].mxu0
        %v1064 = vadd.f32 %v927, %v1063
        %1065 = vmatprep.mubr.f32.mxu0 0.0
        %v1066 = vand.u32 %v193, 4294901760
        %1067 = vmatmul.mubr.f32.gmra.mrb[0].mxu0 %v1066
        %v1068 = vpop.f32.mrb[0].mxu0
        %v1069 = vadd.f32 %v932, %v1068
        %v1070 = vpop.f32.mrb[0].mxu0
        %v1071 = vadd.f32 %v934, %v1070
        %1072 = vmatprep.mubr.f32.mxu0 0.0
        %v1073 = vand.u32 %v196, 4294901760
        %1074 = vmatmul.mubr.f32.gmra.mrb[0].mxu0 %v1073
        %v1075 = vpop.f32.mrb[0].mxu0
        %v1076 = vadd.f32 %v939, %v1075
        %v1077 = vpop.f32.mrb[0].mxu0
        %v1078 = vadd.f32 %v941, %v1077
        %1079 = vmatprep.mubr.f32.mxu0 0.0
        %v1080 = vand.u32 %v199, 4294901760
        %1081 = vmatmul.mubr.f32.gmra.mrb[0].mxu0 %v1080
        %v1082 = vpop.f32.mrb[0].mxu0
        %v1083 = vadd.f32 %v946, %v1082
        %v1084 = vpop.f32.mrb[0].mxu0
        %v1085 = vadd.f32 %v948, %v1084
        %1086 = vmatprep.mubr.f32.mxu0 0.0
        %v1087 = vand.u32 %v202, 4294901760
        %1088 = vmatmul.mubr.f32.gmra.mrb[0].mxu0 %v1087
        %v1089 = vpop.f32.mrb[0].mxu0
        %v1090 = vadd.f32 %v953, %v1089
        %v1091 = vpop.f32.mrb[0].mxu0
        %v1092 = vadd.f32 %v955, %v1091
        %1093 = vmatprep.mubr.f32.mxu0 0.0
        %v1094 = vand.u32 %v205, 4294901760
        %1095 = vmatmul.mubr.f32.gmra.mrb[0].mxu0 %v1094
        %v1096 = vpop.f32.mrb[0].mxu0
        %v1097 = vadd.f32 %v960, %v1096
        %v1098 = vpop.f32.mrb[0].mxu0
        %v1099 = vadd.f32 %v962, %v1098
        %1100 = vmatprep.mubr.f32.mxu0 0.0
        %v1101 = vand.u32 %v208, 4294901760
        %1102 = vmatmul.mubr.f32.gmra.mrb[0].mxu0 %v1101
        %v1103 = vpop.f32.mrb[0].mxu0
        %v1104 = vadd.f32 %v967, %v1103
        %v1105 = vpop.f32.mrb[0].mxu0
        %v1106 = vadd.f32 %v969, %v1105
        %1107 = vmatprep.mubr.f32.mxu0 0.0
        %v1108 = vand.u32 %v211, 4294901760
        %1109 = vmatmul.mubr.f32.gmra.mrb[0].mxu0 %v1108
        %v1110 = vpop.f32.mrb[0].mxu0
        %v1111 = vadd.f32 %v974, %v1110
        %v1112 = vpop.f32.mrb[0].mxu0
        %v1113 = vadd.f32 %v976, %v1112
        %1114 = vmatprep.mubr.f32.mxu0 0.0
        %v1115 = vand.u32 %v214, 4294901760
        %1116 = vmatmul.mubr.f32.gmra.mrb[0].mxu0 %v1115
        %v1117 = vpop.f32.mrb[0].mxu0
        %v1118 = vadd.f32 %v981, %v1117
        %v1119 = vpop.f32.mrb[0].mxu0
        %v1120 = vadd.f32 %v983, %v1119
        %1121 = vdwg.mxu0
        %v1122 = vand.u32 %v184, 4294901760
        %1123 = vmatprep.subr.mxu0 %v1122
        %v1124 = vand.u32 %v183, 4294901760
        %1125 = vmatpush1.msra.mxu0 %v1124
        %1126 = vmatprep.subr.mxu0 0.0
        %1127 = vmatpush1.msra.mxu0 0.0
        %1128 = vmatprep.subr.mxu0 0.0
        %1129 = vmatpush1.msra.mxu0 0.0
        %1130 = vmatprep.subr.mxu0 0.0
        %1131 = vmatpush1.msra.mxu0 0.0
        %1132 = vmatprep.subr.mxu0 0.0
        %1133 = vmatpush1.msra.mxu0 0.0
        %1134 = vmatprep.subr.mxu0 0.0
        %1135 = vmatpush1.msra.mxu0 0.0
        %1136 = vmatprep.subr.mxu0 0.0
        %1137 = vmatpush1.msra.mxu0 0.0
        %1138 = vmatprep.subr.mxu0 0.0
        %1139 = vmatpush1.msra.mxu0 0.0
        %1140 = vmatprep.subr.mxu0 0.0
        %1141 = vmatpush1.msra.mxu0 0.0
        %1142 = vmatprep.subr.mxu0 0.0
        %1143 = vmatpush1.msra.mxu0 0.0
        %1144 = vmatprep.subr.mxu0 0.0
        %1145 = vmatpush1.msra.mxu0 0.0
        %1146 = vmatprep.subr.mxu0 0.0
        %1147 = vmatpush1.msra.mxu0 0.0
        %1148 = vmatprep.subr.mxu0 0.0
        %1149 = vmatpush1.msra.mxu0 0.0
        %1150 = vmatprep.subr.mxu0 0.0
        %1151 = vmatpush1.msra.mxu0 0.0
        %1152 = vmatprep.subr.mxu0 0.0
        %1153 = vmatpush1.msra.mxu0 0.0
        %1154 = vmatprep.subr.mxu0 0.0
        %1155 = vmatpush1.msra.mxu0 0.0
        %1156 = vmatprep.subr.mxu0 0.0
        %1157 = vmatpush1.msra.mxu0 0.0
        %1158 = vmatprep.subr.mxu0 0.0
        %1159 = vmatpush1.msra.mxu0 0.0
        %1160 = vmatprep.subr.mxu0 0.0
        %1161 = vmatpush1.msra.mxu0 0.0
        %1162 = vmatprep.subr.mxu0 0.0
        %1163 = vmatpush1.msra.mxu0 0.0
        %1164 = vmatprep.subr.mxu0 0.0
        %1165 = vmatpush1.msra.mxu0 0.0
        %1166 = vmatprep.subr.mxu0 0.0
        %1167 = vmatpush1.msra.mxu0 0.0
        %1168 = vmatprep.subr.mxu0 0.0
        %1169 = vmatpush1.msra.mxu0 0.0
        %1170 = vmatprep.subr.mxu0 0.0
        %1171 = vmatpush1.msra.mxu0 0.0
        %1172 = vmatprep.subr.mxu0 0.0
        %1173 = vmatpush1.msra.mxu0 0.0
        %1174 = vmatprep.subr.mxu0 0.0
        %1175 = vmatpush1.msra.mxu0 0.0
        %1176 = vmatprep.subr.mxu0 0.0
        %1177 = vmatpush1.msra.mxu0 0.0
        %1178 = vmatprep.subr.mxu0 0.0
        %1179 = vmatpush1.msra.mxu0 0.0
        %1180 = vmatprep.subr.mxu0 0.0
        %1181 = vmatpush1.msra.mxu0 0.0
        %1182 = vmatprep.subr.mxu0 0.0
        %1183 = vmatpush1.msra.mxu0 0.0
        %1184 = vmatprep.subr.mxu0 0.0
        %1185 = vmatpush1.msra.mxu0 0.0
        %1186 = vmatprep.subr.mxu0 0.0
        %1187 = vmatpush1.msra.mxu0 0.0
        %1188 = vmatprep.mubr.f32.mxu0 0.0
        %v1189 = vand.u32 %v187, 4294901760
        %v1190 = vsub.f32 %v187, %v1189
        %v1191 = vand.u32 %v1190, 4294901760
        %v1192 = vsub.f32 %v1190, %v1191
        %v1193 = vand.u32 %v1192, 4294901760
        %1194 = vmatmul.mubr.f32.gmra.mrb[0].mxu0 %v1193
        %v1195 = vpop.f32.mrb[0].mxu0
        %v1196 = vadd.f32 0.0, %v1195
        %v1197 = vpop.f32.mrb[0].mxu0
        %v1198 = vadd.f32 0.0, %v1197
        %1199 = vmatprep.mubr.f32.mxu0 0.0
        %v1200 = vand.u32 %v190, 4294901760
        %v1201 = vsub.f32 %v190, %v1200
        %v1202 = vand.u32 %v1201, 4294901760
        %v1203 = vsub.f32 %v1201, %v1202
        %v1204 = vand.u32 %v1203, 4294901760
        %1205 = vmatmul.mubr.f32.gmra.mrb[0].mxu0 %v1204
        %v1206 = vpop.f32.mrb[0].mxu0
        %v1207 = vadd.f32 0.0, %v1206
        %v1208 = vpop.f32.mrb[0].mxu0
        %v1209 = vadd.f32 0.0, %v1208
        %1210 = vmatprep.mubr.f32.mxu0 0.0
        %v1211 = vand.u32 %v193, 4294901760
        %v1212 = vsub.f32 %v193, %v1211
        %v1213 = vand.u32 %v1212, 4294901760
        %v1214 = vsub.f32 %v1212, %v1213
        %v1215 = vand.u32 %v1214, 4294901760
        %1216 = vmatmul.mubr.f32.gmra.mrb[0].mxu0 %v1215
        %v1217 = vpop.f32.mrb[0].mxu0
        %v1218 = vadd.f32 0.0, %v1217
        %v1219 = vpop.f32.mrb[0].mxu0
        %v1220 = vadd.f32 0.0, %v1219
        %1221 = vmatprep.mubr.f32.mxu0 0.0
        %v1222 = vand.u32 %v196, 4294901760
        %v1223 = vsub.f32 %v196, %v1222
        %v1224 = vand.u32 %v1223, 4294901760
        %v1225 = vsub.f32 %v1223, %v1224
        %v1226 = vand.u32 %v1225, 4294901760
        %1227 = vmatmul.mubr.f32.gmra.mrb[0].mxu0 %v1226
        %v1228 = vpop.f32.mrb[0].mxu0
        %v1229 = vadd.f32 0.0, %v1228
        %v1230 = vpop.f32.mrb[0].mxu0
        %v1231 = vadd.f32 0.0, %v1230
        %1232 = vmatprep.mubr.f32.mxu0 0.0
        %v1233 = vand.u32 %v199, 4294901760
        %v1234 = vsub.f32 %v199, %v1233
        %v1235 = vand.u32 %v1234, 4294901760
        %v1236 = vsub.f32 %v1234, %v1235
        %v1237 = vand.u32 %v1236, 4294901760
        %1238 = vmatmul.mubr.f32.gmra.mrb[0].mxu0 %v1237
        %v1239 = vpop.f32.mrb[0].mxu0
        %v1240 = vadd.f32 0.0, %v1239
        %v1241 = vpop.f32.mrb[0].mxu0
        %v1242 = vadd.f32 0.0, %v1241
        %1243 = vmatprep.mubr.f32.mxu0 0.0
        %v1244 = vand.u32 %v202, 4294901760
        %v1245 = vsub.f32 %v202, %v1244
        %v1246 = vand.u32 %v1245, 4294901760
        %v1247 = vsub.f32 %v1245, %v1246
        %v1248 = vand.u32 %v1247, 4294901760
        %1249 = vmatmul.mubr.f32.gmra.mrb[0].mxu0 %v1248
        %v1250 = vpop.f32.mrb[0].mxu0
        %v1251 = vadd.f32 0.0, %v1250
        %v1252 = vpop.f32.mrb[0].mxu0
        %v1253 = vadd.f32 0.0, %v1252
        %1254 = vmatprep.mubr.f32.mxu0 0.0
        %v1255 = vand.u32 %v205, 4294901760
        %v1256 = vsub.f32 %v205, %v1255
        %v1257 = vand.u32 %v1256, 4294901760
        %v1258 = vsub.f32 %v1256, %v1257
        %v1259 = vand.u32 %v1258, 4294901760
        %1260 = vmatmul.mubr.f32.gmra.mrb[0].mxu0 %v1259
        %v1261 = vpop.f32.mrb[0].mxu0
        %v1262 = vadd.f32 0.0, %v1261
        %v1263 = vpop.f32.mrb[0].mxu0
        %v1264 = vadd.f32 0.0, %v1263
        %1265 = vmatprep.mubr.f32.mxu0 0.0
        %v1266 = vand.u32 %v208, 4294901760
        %v1267 = vsub.f32 %v208, %v1266
        %v1268 = vand.u32 %v1267, 4294901760
        %v1269 = vsub.f32 %v1267, %v1268
        %v1270 = vand.u32 %v1269, 4294901760
        %1271 = vmatmul.mubr.f32.gmra.mrb[0].mxu0 %v1270
        %v1272 = vpop.f32.mrb[0].mxu0
        %v1273 = vadd.f32 0.0, %v1272
        %v1274 = vpop.f32.mrb[0].mxu0
        %v1275 = vadd.f32 0.0, %v1274
        %1276 = vmatprep.mubr.f32.mxu0 0.0
        %v1277 = vand.u32 %v211, 4294901760
        %v1278 = vsub.f32 %v211, %v1277
        %v1279 = vand.u32 %v1278, 4294901760
        %v1280 = vsub.f32 %v1278, %v1279
        %v1281 = vand.u32 %v1280, 4294901760
        %1282 = vmatmul.mubr.f32.gmra.mrb[0].mxu0 %v1281
        %v1283 = vpop.f32.mrb[0].mxu0
        %v1284 = vadd.f32 0.0, %v1283
        %v1285 = vpop.f32.mrb[0].mxu0
        %v1286 = vadd.f32 0.0, %v1285
        %1287 = vmatprep.mubr.f32.mxu0 0.0
        %v1288 = vand.u32 %v214, 4294901760
        %v1289 = vsub.f32 %v214, %v1288
        %v1290 = vand.u32 %v1289, 4294901760
        %v1291 = vsub.f32 %v1289, %v1290
        %v1292 = vand.u32 %v1291, 4294901760
        %1293 = vmatmul.mubr.f32.gmra.mrb[0].mxu0 %v1292
        %v1294 = vpop.f32.mrb[0].mxu0
        %v1295 = vadd.f32 0.0, %v1294
        %v1296 = vpop.f32.mrb[0].mxu0
        %v1297 = vadd.f32 0.0, %v1296
        %1298 = vdwg.mxu0
        %v1299 = vand.u32 %v184, 4294901760
        %v1300 = vsub.f32 %v184, %v1299
        %v1301 = vand.u32 %v1300, 4294901760
        %v1302 = vsub.f32 %v1300, %v1301
        %v1303 = vand.u32 %v1302, 4294901760
        %1304 = vmatprep.subr.mxu0 %v1303
        %v1305 = vand.u32 %v183, 4294901760
        %v1306 = vsub.f32 %v183, %v1305
        %v1307 = vand.u32 %v1306, 4294901760
        %v1308 = vsub.f32 %v1306, %v1307
        %v1309 = vand.u32 %v1308, 4294901760
        %1310 = vmatpush1.msra.mxu0 %v1309
        %1311 = vmatprep.subr.mxu0 0.0
        %1312 = vmatpush1.msra.mxu0 0.0
        %1313 = vmatprep.subr.mxu0 0.0
        %1314 = vmatpush1.msra.mxu0 0.0
        %1315 = vmatprep.subr.mxu0 0.0
        %1316 = vmatpush1.msra.mxu0 0.0
        %1317 = vmatprep.subr.mxu0 0.0
        %1318 = vmatpush1.msra.mxu0 0.0
        %1319 = vmatprep.subr.mxu0 0.0
        %1320 = vmatpush1.msra.mxu0 0.0
        %1321 = vmatprep.subr.mxu0 0.0
        %1322 = vmatpush1.msra.mxu0 0.0
        %1323 = vmatprep.subr.mxu0 0.0
        %1324 = vmatpush1.msra.mxu0 0.0
        %1325 = vmatprep.subr.mxu0 0.0
        %1326 = vmatpush1.msra.mxu0 0.0
        %1327 = vmatprep.subr.mxu0 0.0
        %1328 = vmatpush1.msra.mxu0 0.0
        %1329 = vmatprep.subr.mxu0 0.0
        %1330 = vmatpush1.msra.mxu0 0.0
        %1331 = vmatprep.subr.mxu0 0.0
        %1332 = vmatpush1.msra.mxu0 0.0
        %1333 = vmatprep.subr.mxu0 0.0
        %1334 = vmatpush1.msra.mxu0 0.0
        %1335 = vmatprep.subr.mxu0 0.0
        %1336 = vmatpush1.msra.mxu0 0.0
        %1337 = vmatprep.subr.mxu0 0.0
        %1338 = vmatpush1.msra.mxu0 0.0
        %1339 = vmatprep.subr.mxu0 0.0
        %1340 = vmatpush1.msra.mxu0 0.0
        %1341 = vmatprep.subr.mxu0 0.0
        %1342 = vmatpush1.msra.mxu0 0.0
        %1343 = vmatprep.subr.mxu0 0.0
        %1344 = vmatpush1.msra.mxu0 0.0
        %1345 = vmatprep.subr.mxu0 0.0
        %1346 = vmatpush1.msra.mxu0 0.0
        %1347 = vmatprep.subr.mxu0 0.0
        %1348 = vmatpush1.msra.mxu0 0.0
        %1349 = vmatprep.subr.mxu0 0.0
        %1350 = vmatpush1.msra.mxu0 0.0
        %1351 = vmatprep.subr.mxu0 0.0
        %1352 = vmatpush1.msra.mxu0 0.0
        %1353 = vmatprep.subr.mxu0 0.0
        %1354 = vmatpush1.msra.mxu0 0.0
        %1355 = vmatprep.subr.mxu0 0.0
        %1356 = vmatpush1.msra.mxu0 0.0
        %1357 = vmatprep.subr.mxu0 0.0
        %1358 = vmatpush1.msra.mxu0 0.0
        %1359 = vmatprep.subr.mxu0 0.0
        %1360 = vmatpush1.msra.mxu0 0.0
        %1361 = vmatprep.subr.mxu0 0.0
        %1362 = vmatpush1.msra.mxu0 0.0
        %1363 = vmatprep.subr.mxu0 0.0
        %1364 = vmatpush1.msra.mxu0 0.0
        %1365 = vmatprep.subr.mxu0 0.0
        %1366 = vmatpush1.msra.mxu0 0.0
        %1367 = vmatprep.subr.mxu0 0.0
        %1368 = vmatpush1.msra.mxu0 0.0
        %1369 = vmatprep.subr.mxu0 0.0
        %1370 = vmatpush1.msra.mxu0 0.0
        %1371 = vmatprep.subr.mxu0 0.0
        %1372 = vmatpush1.msra.mxu0 0.0
        %1373 = vmatprep.mubr.f32.mxu0 0.0
        %v1374 = vand.u32 %v187, 4294901760
        %1375 = vmatmul.mubr.f32.gmra.mrb[0].mxu0 %v1374
        %v1376 = vpop.f32.mrb[0].mxu0
        %v1377 = vadd.f32 %v1196, %v1376
        %v1378 = vpop.f32.mrb[0].mxu0
        %v1379 = vadd.f32 %v1198, %v1378
        %1380 = vmatprep.mubr.f32.mxu0 0.0
        %v1381 = vand.u32 %v190, 4294901760
        %1382 = vmatmul.mubr.f32.gmra.mrb[0].mxu0 %v1381
        %v1383 = vpop.f32.mrb[0].mxu0
        %v1384 = vadd.f32 %v1207, %v1383
        %v1385 = vpop.f32.mrb[0].mxu0
        %v1386 = vadd.f32 %v1209, %v1385
        %1387 = vmatprep.mubr.f32.mxu0 0.0
        %v1388 = vand.u32 %v193, 4294901760
        %1389 = vmatmul.mubr.f32.gmra.mrb[0].mxu0 %v1388
        %v1390 = vpop.f32.mrb[0].mxu0
        %v1391 = vadd.f32 %v1218, %v1390
        %v1392 = vpop.f32.mrb[0].mxu0
        %v1393 = vadd.f32 %v1220, %v1392
        %1394 = vmatprep.mubr.f32.mxu0 0.0
        %v1395 = vand.u32 %v196, 4294901760
        %1396 = vmatmul.mubr.f32.gmra.mrb[0].mxu0 %v1395
        %v1397 = vpop.f32.mrb[0].mxu0
        %v1398 = vadd.f32 %v1229, %v1397
        %v1399 = vpop.f32.mrb[0].mxu0
        %v1400 = vadd.f32 %v1231, %v1399
        %1401 = vmatprep.mubr.f32.mxu0 0.0
        %v1402 = vand.u32 %v199, 4294901760
        %1403 = vmatmul.mubr.f32.gmra.mrb[0].mxu0 %v1402
        %v1404 = vpop.f32.mrb[0].mxu0
        %v1405 = vadd.f32 %v1240, %v1404
        %v1406 = vpop.f32.mrb[0].mxu0
        %v1407 = vadd.f32 %v1242, %v1406
        %1408 = vmatprep.mubr.f32.mxu0 0.0
        %v1409 = vand.u32 %v202, 4294901760
        %1410 = vmatmul.mubr.f32.gmra.mrb[0].mxu0 %v1409
        %v1411 = vpop.f32.mrb[0].mxu0
        %v1412 = vadd.f32 %v1251, %v1411
        %v1413 = vpop.f32.mrb[0].mxu0
        %v1414 = vadd.f32 %v1253, %v1413
        %1415 = vmatprep.mubr.f32.mxu0 0.0
        %v1416 = vand.u32 %v205, 4294901760
        %1417 = vmatmul.mubr.f32.gmra.mrb[0].mxu0 %v1416
        %v1418 = vpop.f32.mrb[0].mxu0
        %v1419 = vadd.f32 %v1262, %v1418
        %v1420 = vpop.f32.mrb[0].mxu0
        %v1421 = vadd.f32 %v1264, %v1420
        %1422 = vmatprep.mubr.f32.mxu0 0.0
        %v1423 = vand.u32 %v208, 4294901760
        %1424 = vmatmul.mubr.f32.gmra.mrb[0].mxu0 %v1423
        %v1425 = vpop.f32.mrb[0].mxu0
        %v1426 = vadd.f32 %v1273, %v1425
        %v1427 = vpop.f32.mrb[0].mxu0
        %v1428 = vadd.f32 %v1275, %v1427
        %1429 = vmatprep.mubr.f32.mxu0 0.0
        %v1430 = vand.u32 %v211, 4294901760
        %1431 = vmatmul.mubr.f32.gmra.mrb[0].mxu0 %v1430
        %v1432 = vpop.f32.mrb[0].mxu0
        %v1433 = vadd.f32 %v1284, %v1432
        %v1434 = vpop.f32.mrb[0].mxu0
        %v1435 = vadd.f32 %v1286, %v1434
        %1436 = vmatprep.mubr.f32.mxu0 0.0
        %v1437 = vand.u32 %v214, 4294901760
        %1438 = vmatmul.mubr.f32.gmra.mrb[0].mxu0 %v1437
        %v1439 = vpop.f32.mrb[0].mxu0
        %v1440 = vadd.f32 %v1295, %v1439
        %v1441 = vpop.f32.mrb[0].mxu0
        %v1442 = vadd.f32 %v1297, %v1441
        %1443 = vdwg.mxu0
        %v1444 = vand.u32 %v184, 4294901760
        %v1445 = vsub.f32 %v184, %v1444
        %1446 = vmatprep.subr.mxu0 %v1445
        %v1447 = vand.u32 %v183, 4294901760
        %v1448 = vsub.f32 %v183, %v1447
        %1449 = vmatpush1.msra.mxu0 %v1448
        %1450 = vmatprep.subr.mxu0 0.0
        %1451 = vmatpush1.msra.mxu0 0.0
        %1452 = vmatprep.subr.mxu0 0.0
        %1453 = vmatpush1.msra.mxu0 0.0
        %1454 = vmatprep.subr.mxu0 0.0
        %1455 = vmatpush1.msra.mxu0 0.0
        %1456 = vmatprep.subr.mxu0 0.0
        %1457 = vmatpush1.msra.mxu0 0.0
        %1458 = vmatprep.subr.mxu0 0.0
        %1459 = vmatpush1.msra.mxu0 0.0
        %1460 = vmatprep.subr.mxu0 0.0
        %1461 = vmatpush1.msra.mxu0 0.0
        %1462 = vmatprep.subr.mxu0 0.0
        %1463 = vmatpush1.msra.mxu0 0.0
        %1464 = vmatprep.subr.mxu0 0.0
        %1465 = vmatpush1.msra.mxu0 0.0
        %1466 = vmatprep.subr.mxu0 0.0
        %1467 = vmatpush1.msra.mxu0 0.0
        %1468 = vmatprep.subr.mxu0 0.0
        %1469 = vmatpush1.msra.mxu0 0.0
        %1470 = vmatprep.subr.mxu0 0.0
        %1471 = vmatpush1.msra.mxu0 0.0
        %1472 = vmatprep.subr.mxu0 0.0
        %1473 = vmatpush1.msra.mxu0 0.0
        %1474 = vmatprep.subr.mxu0 0.0
        %1475 = vmatpush1.msra.mxu0 0.0
        %1476 = vmatprep.subr.mxu0 0.0
        %1477 = vmatpush1.msra.mxu0 0.0
        %1478 = vmatprep.subr.mxu0 0.0
        %1479 = vmatpush1.msra.mxu0 0.0
        %1480 = vmatprep.subr.mxu0 0.0
        %1481 = vmatpush1.msra.mxu0 0.0
        %1482 = vmatprep.subr.mxu0 0.0
        %1483 = vmatpush1.msra.mxu0 0.0
        %1484 = vmatprep.subr.mxu0 0.0
        %1485 = vmatpush1.msra.mxu0 0.0
        %1486 = vmatprep.subr.mxu0 0.0
        %1487 = vmatpush1.msra.mxu0 0.0
        %1488 = vmatprep.subr.mxu0 0.0
        %1489 = vmatpush1.msra.mxu0 0.0
        %1490 = vmatprep.subr.mxu0 0.0
        %1491 = vmatpush1.msra.mxu0 0.0
        %1492 = vmatprep.subr.mxu0 0.0
        %1493 = vmatpush1.msra.mxu0 0.0
        %1494 = vmatprep.subr.mxu0 0.0
        %1495 = vmatpush1.msra.mxu0 0.0
        %1496 = vmatprep.subr.mxu0 0.0
        %1497 = vmatpush1.msra.mxu0 0.0
        %1498 = vmatprep.subr.mxu0 0.0
        %1499 = vmatpush1.msra.mxu0 0.0
        %1500 = vmatprep.subr.mxu0 0.0
        %1501 = vmatpush1.msra.mxu0 0.0
        %1502 = vmatprep.subr.mxu0 0.0
        %1503 = vmatpush1.msra.mxu0 0.0
        %1504 = vmatprep.subr.mxu0 0.0
        %1505 = vmatpush1.msra.mxu0 0.0
        %1506 = vmatprep.subr.mxu0 0.0
        %1507 = vmatpush1.msra.mxu0 0.0
        %1508 = vmatprep.subr.mxu0 0.0
        %1509 = vmatpush1.msra.mxu0 0.0
        %1510 = vmatprep.subr.mxu0 0.0
        %1511 = vmatpush1.msra.mxu0 0.0
        %1512 = vmatprep.mubr.f32.mxu0 0.0
        %v1513 = vand.u32 %v187, 4294901760
        %v1514 = vsub.f32 %v187, %v1513
        %1515 = vmatmul.mubr.f32.gmra.mrb[0].mxu0 %v1514
        %v1516 = vpop.f32.mrb[0].mxu0
        %v1517 = vadd.f32 %v1377, %v1516
        %v1518 = vpop.f32.mrb[0].mxu0
        %v1519 = vadd.f32 %v1379, %v1518
        %1520 = vmatprep.mubr.f32.mxu0 0.0
        %v1521 = vand.u32 %v190, 4294901760
        %v1522 = vsub.f32 %v190, %v1521
        %1523 = vmatmul.mubr.f32.gmra.mrb[0].mxu0 %v1522
        %v1524 = vpop.f32.mrb[0].mxu0
        %v1525 = vadd.f32 %v1384, %v1524
        %v1526 = vpop.f32.mrb[0].mxu0
        %v1527 = vadd.f32 %v1386, %v1526
        %1528 = vmatprep.mubr.f32.mxu0 0.0
        %v1529 = vand.u32 %v193, 4294901760
        %v1530 = vsub.f32 %v193, %v1529
        %1531 = vmatmul.mubr.f32.gmra.mrb[0].mxu0 %v1530
        %v1532 = vpop.f32.mrb[0].mxu0
        %v1533 = vadd.f32 %v1391, %v1532
        %v1534 = vpop.f32.mrb[0].mxu0
        %v1535 = vadd.f32 %v1393, %v1534
        %1536 = vmatprep.mubr.f32.mxu0 0.0
        %v1537 = vand.u32 %v196, 4294901760
        %v1538 = vsub.f32 %v196, %v1537
        %1539 = vmatmul.mubr.f32.gmra.mrb[0].mxu0 %v1538
        %v1540 = vpop.f32.mrb[0].mxu0
        %v1541 = vadd.f32 %v1398, %v1540
        %v1542 = vpop.f32.mrb[0].mxu0
        %v1543 = vadd.f32 %v1400, %v1542
        %1544 = vmatprep.mubr.f32.mxu0 0.0
        %v1545 = vand.u32 %v199, 4294901760
        %v1546 = vsub.f32 %v199, %v1545
        %1547 = vmatmul.mubr.f32.gmra.mrb[0].mxu0 %v1546
        %v1548 = vpop.f32.mrb[0].mxu0
        %v1549 = vadd.f32 %v1405, %v1548
        %v1550 = vpop.f32.mrb[0].mxu0
        %v1551 = vadd.f32 %v1407, %v1550
        %1552 = vmatprep.mubr.f32.mxu0 0.0
        %v1553 = vand.u32 %v202, 4294901760
        %v1554 = vsub.f32 %v202, %v1553
        %1555 = vmatmul.mubr.f32.gmra.mrb[0].mxu0 %v1554
        %v1556 = vpop.f32.mrb[0].mxu0
        %v1557 = vadd.f32 %v1412, %v1556
        %v1558 = vpop.f32.mrb[0].mxu0
        %v1559 = vadd.f32 %v1414, %v1558
        %1560 = vmatprep.mubr.f32.mxu0 0.0
        %v1561 = vand.u32 %v205, 4294901760
        %v1562 = vsub.f32 %v205, %v1561
        %1563 = vmatmul.mubr.f32.gmra.mrb[0].mxu0 %v1562
        %v1564 = vpop.f32.mrb[0].mxu0
        %v1565 = vadd.f32 %v1419, %v1564
        %v1566 = vpop.f32.mrb[0].mxu0
        %v1567 = vadd.f32 %v1421, %v1566
        %1568 = vmatprep.mubr.f32.mxu0 0.0
        %v1569 = vand.u32 %v208, 4294901760
        %v1570 = vsub.f32 %v208, %v1569
        %1571 = vmatmul.mubr.f32.gmra.mrb[0].mxu0 %v1570
        %v1572 = vpop.f32.mrb[0].mxu0
        %v1573 = vadd.f32 %v1426, %v1572
        %v1574 = vpop.f32.mrb[0].mxu0
        %v1575 = vadd.f32 %v1428, %v1574
        %1576 = vmatprep.mubr.f32.mxu0 0.0
        %v1577 = vand.u32 %v211, 4294901760
        %v1578 = vsub.f32 %v211, %v1577
        %1579 = vmatmul.mubr.f32.gmra.mrb[0].mxu0 %v1578
        %v1580 = vpop.f32.mrb[0].mxu0
        %v1581 = vadd.f32 %v1433, %v1580
        %v1582 = vpop.f32.mrb[0].mxu0
        %v1583 = vadd.f32 %v1435, %v1582
        %1584 = vmatprep.mubr.f32.mxu0 0.0
        %v1585 = vand.u32 %v214, 4294901760
        %v1586 = vsub.f32 %v214, %v1585
        %1587 = vmatmul.mubr.f32.gmra.mrb[0].mxu0 %v1586
        %v1588 = vpop.f32.mrb[0].mxu0
        %v1589 = vadd.f32 %v1440, %v1588
        %v1590 = vpop.f32.mrb[0].mxu0
        %v1591 = vadd.f32 %v1442, %v1590
        %1592 = vdwg.mxu0
        %v1593 = vand.u32 %v184, 4294901760
        %1594 = vmatprep.subr.mxu0 %v1593
        %v1595 = vand.u32 %v183, 4294901760
        %1596 = vmatpush1.msra.mxu0 %v1595
        %1597 = vmatprep.subr.mxu0 0.0
        %1598 = vmatpush1.msra.mxu0 0.0
        %1599 = vmatprep.subr.mxu0 0.0
        %1600 = vmatpush1.msra.mxu0 0.0
        %1601 = vmatprep.subr.mxu0 0.0
        %1602 = vmatpush1.msra.mxu0 0.0
        %1603 = vmatprep.subr.mxu0 0.0
        %1604 = vmatpush1.msra.mxu0 0.0
        %1605 = vmatprep.subr.mxu0 0.0
        %1606 = vmatpush1.msra.mxu0 0.0
        %1607 = vmatprep.subr.mxu0 0.0
        %1608 = vmatpush1.msra.mxu0 0.0
        %1609 = vmatprep.subr.mxu0 0.0
        %1610 = vmatpush1.msra.mxu0 0.0
        %1611 = vmatprep.subr.mxu0 0.0
        %1612 = vmatpush1.msra.mxu0 0.0
        %1613 = vmatprep.subr.mxu0 0.0
        %1614 = vmatpush1.msra.mxu0 0.0
        %1615 = vmatprep.subr.mxu0 0.0
        %1616 = vmatpush1.msra.mxu0 0.0
        %1617 = vmatprep.subr.mxu0 0.0
        %1618 = vmatpush1.msra.mxu0 0.0
        %1619 = vmatprep.subr.mxu0 0.0
        %1620 = vmatpush1.msra.mxu0 0.0
        %1621 = vmatprep.subr.mxu0 0.0
        %1622 = vmatpush1.msra.mxu0 0.0
        %1623 = vmatprep.subr.mxu0 0.0
        %1624 = vmatpush1.msra.mxu0 0.0
        %1625 = vmatprep.subr.mxu0 0.0
        %1626 = vmatpush1.msra.mxu0 0.0
        %1627 = vmatprep.subr.mxu0 0.0
        %1628 = vmatpush1.msra.mxu0 0.0
        %1629 = vmatprep.subr.mxu0 0.0
        %1630 = vmatpush1.msra.mxu0 0.0
        %1631 = vmatprep.subr.mxu0 0.0
        %1632 = vmatpush1.msra.mxu0 0.0
        %1633 = vmatprep.subr.mxu0 0.0
        %1634 = vmatpush1.msra.mxu0 0.0
        %1635 = vmatprep.subr.mxu0 0.0
        %1636 = vmatpush1.msra.mxu0 0.0
        %1637 = vmatprep.subr.mxu0 0.0
        %1638 = vmatpush1.msra.mxu0 0.0
        %1639 = vmatprep.subr.mxu0 0.0
        %1640 = vmatpush1.msra.mxu0 0.0
        %1641 = vmatprep.subr.mxu0 0.0
        %1642 = vmatpush1.msra.mxu0 0.0
        %1643 = vmatprep.subr.mxu0 0.0
        %1644 = vmatpush1.msra.mxu0 0.0
        %1645 = vmatprep.subr.mxu0 0.0
        %1646 = vmatpush1.msra.mxu0 0.0
        %1647 = vmatprep.subr.mxu0 0.0
        %1648 = vmatpush1.msra.mxu0 0.0
        %1649 = vmatprep.subr.mxu0 0.0
        %1650 = vmatpush1.msra.mxu0 0.0
        %1651 = vmatprep.subr.mxu0 0.0
        %1652 = vmatpush1.msra.mxu0 0.0
        %1653 = vmatprep.subr.mxu0 0.0
        %1654 = vmatpush1.msra.mxu0 0.0
        %1655 = vmatprep.subr.mxu0 0.0
        %1656 = vmatpush1.msra.mxu0 0.0
        %1657 = vmatprep.subr.mxu0 0.0
        %1658 = vmatpush1.msra.mxu0 0.0
        %1659 = vmatprep.mubr.f32.mxu0 0.0
        %v1660 = vand.u32 %v187, 4294901760
        %v1661 = vsub.f32 %v187, %v1660
        %v1662 = vand.u32 %v1661, 4294901760
        %1663 = vmatmul.mubr.f32.gmra.mrb[0].mxu0 %v1662
        %v1664 = vpop.f32.mrb[0].mxu0
        %v1665 = vadd.f32 %v1517, %v1664
        %v1666 = vpop.f32.mrb[0].mxu0
        %v1667 = vadd.f32 %v1519, %v1666
        %1668 = vmatprep.mubr.f32.mxu0 0.0
        %v1669 = vand.u32 %v190, 4294901760
        %v1670 = vsub.f32 %v190, %v1669
        %v1671 = vand.u32 %v1670, 4294901760
        %1672 = vmatmul.mubr.f32.gmra.mrb[0].mxu0 %v1671
        %v1673 = vpop.f32.mrb[0].mxu0
        %v1674 = vadd.f32 %v1525, %v1673
        %v1675 = vpop.f32.mrb[0].mxu0
        %v1676 = vadd.f32 %v1527, %v1675
        %1677 = vmatprep.mubr.f32.mxu0 0.0
        %v1678 = vand.u32 %v193, 4294901760
        %v1679 = vsub.f32 %v193, %v1678
        %v1680 = vand.u32 %v1679, 4294901760
        %1681 = vmatmul.mubr.f32.gmra.mrb[0].mxu0 %v1680
        %v1682 = vpop.f32.mrb[0].mxu0
        %v1683 = vadd.f32 %v1533, %v1682
        %v1684 = vpop.f32.mrb[0].mxu0
        %v1685 = vadd.f32 %v1535, %v1684
        %1686 = vmatprep.mubr.f32.mxu0 0.0
        %v1687 = vand.u32 %v196, 4294901760
        %v1688 = vsub.f32 %v196, %v1687
        %v1689 = vand.u32 %v1688, 4294901760
        %1690 = vmatmul.mubr.f32.gmra.mrb[0].mxu0 %v1689
        %v1691 = vpop.f32.mrb[0].mxu0
        %v1692 = vadd.f32 %v1541, %v1691
        %v1693 = vpop.f32.mrb[0].mxu0
        %v1694 = vadd.f32 %v1543, %v1693
        %1695 = vmatprep.mubr.f32.mxu0 0.0
        %v1696 = vand.u32 %v199, 4294901760
        %v1697 = vsub.f32 %v199, %v1696
        %v1698 = vand.u32 %v1697, 4294901760
        %1699 = vmatmul.mubr.f32.gmra.mrb[0].mxu0 %v1698
        %v1700 = vpop.f32.mrb[0].mxu0
        %v1701 = vadd.f32 %v1549, %v1700
        %v1702 = vpop.f32.mrb[0].mxu0
        %v1703 = vadd.f32 %v1551, %v1702
        %1704 = vmatprep.mubr.f32.mxu0 0.0
        %v1705 = vand.u32 %v202, 4294901760
        %v1706 = vsub.f32 %v202, %v1705
        %v1707 = vand.u32 %v1706, 4294901760
        %1708 = vmatmul.mubr.f32.gmra.mrb[0].mxu0 %v1707
        %v1709 = vpop.f32.mrb[0].mxu0
        %v1710 = vadd.f32 %v1557, %v1709
        %v1711 = vpop.f32.mrb[0].mxu0
        %v1712 = vadd.f32 %v1559, %v1711
        %1713 = vmatprep.mubr.f32.mxu0 0.0
        %v1714 = vand.u32 %v205, 4294901760
        %v1715 = vsub.f32 %v205, %v1714
        %v1716 = vand.u32 %v1715, 4294901760
        %1717 = vmatmul.mubr.f32.gmra.mrb[0].mxu0 %v1716
        %v1718 = vpop.f32.mrb[0].mxu0
        %v1719 = vadd.f32 %v1565, %v1718
        %v1720 = vpop.f32.mrb[0].mxu0
        %v1721 = vadd.f32 %v1567, %v1720
        %1722 = vmatprep.mubr.f32.mxu0 0.0
        %v1723 = vand.u32 %v208, 4294901760
        %v1724 = vsub.f32 %v208, %v1723
        %v1725 = vand.u32 %v1724, 4294901760
        %1726 = vmatmul.mubr.f32.gmra.mrb[0].mxu0 %v1725
        %v1727 = vpop.f32.mrb[0].mxu0
        %v1728 = vadd.f32 %v1573, %v1727
        %v1729 = vpop.f32.mrb[0].mxu0
        %v1730 = vadd.f32 %v1575, %v1729
        %1731 = vmatprep.mubr.f32.mxu0 0.0
        %v1732 = vand.u32 %v211, 4294901760
        %v1733 = vsub.f32 %v211, %v1732
        %v1734 = vand.u32 %v1733, 4294901760
        %1735 = vmatmul.mubr.f32.gmra.mrb[0].mxu0 %v1734
        %v1736 = vpop.f32.mrb[0].mxu0
        %v1737 = vadd.f32 %v1581, %v1736
        %v1738 = vpop.f32.mrb[0].mxu0
        %v1739 = vadd.f32 %v1583, %v1738
        %1740 = vmatprep.mubr.f32.mxu0 0.0
        %v1741 = vand.u32 %v214, 4294901760
        %v1742 = vsub.f32 %v214, %v1741
        %v1743 = vand.u32 %v1742, 4294901760
        %1744 = vmatmul.mubr.f32.gmra.mrb[0].mxu0 %v1743
        %v1745 = vpop.f32.mrb[0].mxu0
        %v1746 = vadd.f32 %v1589, %v1745
        %v1747 = vpop.f32.mrb[0].mxu0
        %v1748 = vadd.f32 %v1591, %v1747
        %1749 = vdwg.mxu0
        %v1750 = vand.u32 %v184, 4294901760
        %v1751 = vsub.f32 %v184, %v1750
        %v1752 = vand.u32 %v1751, 4294901760
        %1753 = vmatprep.subr.mxu0 %v1752
        %v1754 = vand.u32 %v183, 4294901760
        %v1755 = vsub.f32 %v183, %v1754
        %v1756 = vand.u32 %v1755, 4294901760
        %1757 = vmatpush1.msra.mxu0 %v1756
        %1758 = vmatprep.subr.mxu0 0.0
        %1759 = vmatpush1.msra.mxu0 0.0
        %1760 = vmatprep.subr.mxu0 0.0
        %1761 = vmatpush1.msra.mxu0 0.0
        %1762 = vmatprep.subr.mxu0 0.0
        %1763 = vmatpush1.msra.mxu0 0.0
        %1764 = vmatprep.subr.mxu0 0.0
        %1765 = vmatpush1.msra.mxu0 0.0
        %1766 = vmatprep.subr.mxu0 0.0
        %1767 = vmatpush1.msra.mxu0 0.0
        %1768 = vmatprep.subr.mxu0 0.0
        %1769 = vmatpush1.msra.mxu0 0.0
        %1770 = vmatprep.subr.mxu0 0.0
        %1771 = vmatpush1.msra.mxu0 0.0
        %1772 = vmatprep.subr.mxu0 0.0
        %1773 = vmatpush1.msra.mxu0 0.0
        %1774 = vmatprep.subr.mxu0 0.0
        %1775 = vmatpush1.msra.mxu0 0.0
        %1776 = vmatprep.subr.mxu0 0.0
        %1777 = vmatpush1.msra.mxu0 0.0
        %1778 = vmatprep.subr.mxu0 0.0
        %1779 = vmatpush1.msra.mxu0 0.0
        %1780 = vmatprep.subr.mxu0 0.0
        %1781 = vmatpush1.msra.mxu0 0.0
        %1782 = vmatprep.subr.mxu0 0.0
        %1783 = vmatpush1.msra.mxu0 0.0
        %1784 = vmatprep.subr.mxu0 0.0
        %1785 = vmatpush1.msra.mxu0 0.0
        %1786 = vmatprep.subr.mxu0 0.0
        %1787 = vmatpush1.msra.mxu0 0.0
        %1788 = vmatprep.subr.mxu0 0.0
        %1789 = vmatpush1.msra.mxu0 0.0
        %1790 = vmatprep.subr.mxu0 0.0
        %1791 = vmatpush1.msra.mxu0 0.0
        %1792 = vmatprep.subr.mxu0 0.0
        %1793 = vmatpush1.msra.mxu0 0.0
        %1794 = vmatprep.subr.mxu0 0.0
        %1795 = vmatpush1.msra.mxu0 0.0
        %1796 = vmatprep.subr.mxu0 0.0
        %1797 = vmatpush1.msra.mxu0 0.0
        %1798 = vmatprep.subr.mxu0 0.0
        %1799 = vmatpush1.msra.mxu0 0.0
        %1800 = vmatprep.subr.mxu0 0.0
        %1801 = vmatpush1.msra.mxu0 0.0
        %1802 = vmatprep.subr.mxu0 0.0
        %1803 = vmatpush1.msra.mxu0 0.0
        %1804 = vmatprep.subr.mxu0 0.0
        %1805 = vmatpush1.msra.mxu0 0.0
        %1806 = vmatprep.subr.mxu0 0.0
        %1807 = vmatpush1.msra.mxu0 0.0
        %1808 = vmatprep.subr.mxu0 0.0
        %1809 = vmatpush1.msra.mxu0 0.0
        %1810 = vmatprep.subr.mxu0 0.0
        %1811 = vmatpush1.msra.mxu0 0.0
        %1812 = vmatprep.subr.mxu0 0.0
        %1813 = vmatpush1.msra.mxu0 0.0
        %1814 = vmatprep.subr.mxu0 0.0
        %1815 = vmatpush1.msra.mxu0 0.0
        %1816 = vmatprep.subr.mxu0 0.0
        %1817 = vmatpush1.msra.mxu0 0.0
        %1818 = vmatprep.subr.mxu0 0.0
        %1819 = vmatpush1.msra.mxu0 0.0
        %1820 = vmatprep.mubr.f32.mxu0 0.0
        %v1821 = vand.u32 %v187, 4294901760
        %1822 = vmatmul.mubr.f32.gmra.mrb[0].mxu0 %v1821
        %v1823 = vpop.f32.mrb[0].mxu0
        %v1824 = vadd.f32 %v1665, %v1823
        %v1825 = vpop.f32.mrb[0].mxu0
        %v1826 = vadd.f32 %v1667, %v1825
        %1827 = vmatprep.mubr.f32.mxu0 0.0
        %v1828 = vand.u32 %v190, 4294901760
        %1829 = vmatmul.mubr.f32.gmra.mrb[0].mxu0 %v1828
        %v1830 = vpop.f32.mrb[0].mxu0
        %v1831 = vadd.f32 %v1674, %v1830
        %v1832 = vpop.f32.mrb[0].mxu0
        %v1833 = vadd.f32 %v1676, %v1832
        %1834 = vmatprep.mubr.f32.mxu0 0.0
        %v1835 = vand.u32 %v193, 4294901760
        %1836 = vmatmul.mubr.f32.gmra.mrb[0].mxu0 %v1835
        %v1837 = vpop.f32.mrb[0].mxu0
        %v1838 = vadd.f32 %v1683, %v1837
        %v1839 = vpop.f32.mrb[0].mxu0
        %v1840 = vadd.f32 %v1685, %v1839
        %1841 = vmatprep.mubr.f32.mxu0 0.0
        %v1842 = vand.u32 %v196, 4294901760
        %1843 = vmatmul.mubr.f32.gmra.mrb[0].mxu0 %v1842
        %v1844 = vpop.f32.mrb[0].mxu0
        %v1845 = vadd.f32 %v1692, %v1844
        %v1846 = vpop.f32.mrb[0].mxu0
        %v1847 = vadd.f32 %v1694, %v1846
        %1848 = vmatprep.mubr.f32.mxu0 0.0
        %v1849 = vand.u32 %v199, 4294901760
        %1850 = vmatmul.mubr.f32.gmra.mrb[0].mxu0 %v1849
        %v1851 = vpop.f32.mrb[0].mxu0
        %v1852 = vadd.f32 %v1701, %v1851
        %v1853 = vpop.f32.mrb[0].mxu0
        %v1854 = vadd.f32 %v1703, %v1853
        %1855 = vmatprep.mubr.f32.mxu0 0.0
        %v1856 = vand.u32 %v202, 4294901760
        %1857 = vmatmul.mubr.f32.gmra.mrb[0].mxu0 %v1856
        %v1858 = vpop.f32.mrb[0].mxu0
        %v1859 = vadd.f32 %v1710, %v1858
        %v1860 = vpop.f32.mrb[0].mxu0
        %v1861 = vadd.f32 %v1712, %v1860
        %1862 = vmatprep.mubr.f32.mxu0 0.0
        %v1863 = vand.u32 %v205, 4294901760
        %1864 = vmatmul.mubr.f32.gmra.mrb[0].mxu0 %v1863
        %v1865 = vpop.f32.mrb[0].mxu0
        %v1866 = vadd.f32 %v1719, %v1865
        %v1867 = vpop.f32.mrb[0].mxu0
        %v1868 = vadd.f32 %v1721, %v1867
        %1869 = vmatprep.mubr.f32.mxu0 0.0
        %v1870 = vand.u32 %v208, 4294901760
        %1871 = vmatmul.mubr.f32.gmra.mrb[0].mxu0 %v1870
        %v1872 = vpop.f32.mrb[0].mxu0
        %v1873 = vadd.f32 %v1728, %v1872
        %v1874 = vpop.f32.mrb[0].mxu0
        %v1875 = vadd.f32 %v1730, %v1874
        %1876 = vmatprep.mubr.f32.mxu0 0.0
        %v1877 = vand.u32 %v211, 4294901760
        %1878 = vmatmul.mubr.f32.gmra.mrb[0].mxu0 %v1877
        %v1879 = vpop.f32.mrb[0].mxu0
        %v1880 = vadd.f32 %v1737, %v1879
        %v1881 = vpop.f32.mrb[0].mxu0
        %v1882 = vadd.f32 %v1739, %v1881
        %1883 = vmatprep.mubr.f32.mxu0 0.0
        %v1884 = vand.u32 %v214, 4294901760
        %1885 = vmatmul.mubr.f32.gmra.mrb[0].mxu0 %v1884
        %v1886 = vpop.f32.mrb[0].mxu0
        %v1887 = vadd.f32 %v1746, %v1886
        %v1888 = vpop.f32.mrb[0].mxu0
        %v1889 = vadd.f32 %v1748, %v1888
        %1890 = vdwg.mxu0
        %v1891 = vand.u32 %v184, 4294901760
        %1892 = vmatprep.subr.mxu0 %v1891
        %v1893 = vand.u32 %v183, 4294901760
        %1894 = vmatpush1.msra.mxu0 %v1893
        %1895 = vmatprep.subr.mxu0 0.0
        %1896 = vmatpush1.msra.mxu0 0.0
        %1897 = vmatprep.subr.mxu0 0.0
        %1898 = vmatpush1.msra.mxu0 0.0
        %1899 = vmatprep.subr.mxu0 0.0
        %1900 = vmatpush1.msra.mxu0 0.0
        %1901 = vmatprep.subr.mxu0 0.0
        %1902 = vmatpush1.msra.mxu0 0.0
        %1903 = vmatprep.subr.mxu0 0.0
        %1904 = vmatpush1.msra.mxu0 0.0
        %1905 = vmatprep.subr.mxu0 0.0
        %1906 = vmatpush1.msra.mxu0 0.0
        %1907 = vmatprep.subr.mxu0 0.0
        %1908 = vmatpush1.msra.mxu0 0.0
        %1909 = vmatprep.subr.mxu0 0.0
        %1910 = vmatpush1.msra.mxu0 0.0
        %1911 = vmatprep.subr.mxu0 0.0
        %1912 = vmatpush1.msra.mxu0 0.0
        %1913 = vmatprep.subr.mxu0 0.0
        %1914 = vmatpush1.msra.mxu0 0.0
        %1915 = vmatprep.subr.mxu0 0.0
        %1916 = vmatpush1.msra.mxu0 0.0
        %1917 = vmatprep.subr.mxu0 0.0
        %1918 = vmatpush1.msra.mxu0 0.0
        %1919 = vmatprep.subr.mxu0 0.0
        %1920 = vmatpush1.msra.mxu0 0.0
        %1921 = vmatprep.subr.mxu0 0.0
        %1922 = vmatpush1.msra.mxu0 0.0
        %1923 = vmatprep.subr.mxu0 0.0
        %1924 = vmatpush1.msra.mxu0 0.0
        %1925 = vmatprep.subr.mxu0 0.0
        %1926 = vmatpush1.msra.mxu0 0.0
        %1927 = vmatprep.subr.mxu0 0.0
        %1928 = vmatpush1.msra.mxu0 0.0
        %1929 = vmatprep.subr.mxu0 0.0
        %1930 = vmatpush1.msra.mxu0 0.0
        %1931 = vmatprep.subr.mxu0 0.0
        %1932 = vmatpush1.msra.mxu0 0.0
        %1933 = vmatprep.subr.mxu0 0.0
        %1934 = vmatpush1.msra.mxu0 0.0
        %1935 = vmatprep.subr.mxu0 0.0
        %1936 = vmatpush1.msra.mxu0 0.0
        %1937 = vmatprep.subr.mxu0 0.0
        %1938 = vmatpush1.msra.mxu0 0.0
        %1939 = vmatprep.subr.mxu0 0.0
        %1940 = vmatpush1.msra.mxu0 0.0
        %1941 = vmatprep.subr.mxu0 0.0
        %1942 = vmatpush1.msra.mxu0 0.0
        %1943 = vmatprep.subr.mxu0 0.0
        %1944 = vmatpush1.msra.mxu0 0.0
        %1945 = vmatprep.subr.mxu0 0.0
        %1946 = vmatpush1.msra.mxu0 0.0
        %1947 = vmatprep.subr.mxu0 0.0
        %1948 = vmatpush1.msra.mxu0 0.0
        %1949 = vmatprep.subr.mxu0 0.0
        %1950 = vmatpush1.msra.mxu0 0.0
        %1951 = vmatprep.subr.mxu0 0.0
        %1952 = vmatpush1.msra.mxu0 0.0
        %1953 = vmatprep.subr.mxu0 0.0
        %1954 = vmatpush1.msra.mxu0 0.0
        %1955 = vmatprep.subr.mxu0 0.0
        %1956 = vmatpush1.msra.mxu0 0.0
        %1957 = vmatprep.mubr.f32.mxu0 0.0
        %v1958 = vand.u32 %v187, 4294901760
        %1959 = vmatmul.mubr.f32.gmra.mrb[0].mxu0 %v1958
        %v1960 = vpop.f32.mrb[0].mxu0
        %v1961 = vadd.f32 %v1824, %v1960
        %v1962 = vpop.f32.mrb[0].mxu0
        %v1963 = vadd.f32 %v1826, %v1962
        %1964 = vmatprep.mubr.f32.mxu0 0.0
        %v1965 = vand.u32 %v190, 4294901760
        %1966 = vmatmul.mubr.f32.gmra.mrb[0].mxu0 %v1965
        %v1967 = vpop.f32.mrb[0].mxu0
        %v1968 = vadd.f32 %v1831, %v1967
        %v1969 = vpop.f32.mrb[0].mxu0
        %v1970 = vadd.f32 %v1833, %v1969
        %1971 = vmatprep.mubr.f32.mxu0 0.0
        %v1972 = vand.u32 %v193, 4294901760
        %1973 = vmatmul.mubr.f32.gmra.mrb[0].mxu0 %v1972
        %v1974 = vpop.f32.mrb[0].mxu0
        %v1975 = vadd.f32 %v1838, %v1974
        %v1976 = vpop.f32.mrb[0].mxu0
        %v1977 = vadd.f32 %v1840, %v1976
        %1978 = vmatprep.mubr.f32.mxu0 0.0
        %v1979 = vand.u32 %v196, 4294901760
        %1980 = vmatmul.mubr.f32.gmra.mrb[0].mxu0 %v1979
        %v1981 = vpop.f32.mrb[0].mxu0
        %v1982 = vadd.f32 %v1845, %v1981
        %v1983 = vpop.f32.mrb[0].mxu0
        %v1984 = vadd.f32 %v1847, %v1983
        %1985 = vmatprep.mubr.f32.mxu0 0.0
        %v1986 = vand.u32 %v199, 4294901760
        %1987 = vmatmul.mubr.f32.gmra.mrb[0].mxu0 %v1986
        %v1988 = vpop.f32.mrb[0].mxu0
        %v1989 = vadd.f32 %v1852, %v1988
        %v1990 = vpop.f32.mrb[0].mxu0
        %v1991 = vadd.f32 %v1854, %v1990
        %1992 = vmatprep.mubr.f32.mxu0 0.0
        %v1993 = vand.u32 %v202, 4294901760
        %1994 = vmatmul.mubr.f32.gmra.mrb[0].mxu0 %v1993
        %v1995 = vpop.f32.mrb[0].mxu0
        %v1996 = vadd.f32 %v1859, %v1995
        %v1997 = vpop.f32.mrb[0].mxu0
        %v1998 = vadd.f32 %v1861, %v1997
        %1999 = vmatprep.mubr.f32.mxu0 0.0
        %v2000 = vand.u32 %v205, 4294901760
        %2001 = vmatmul.mubr.f32.gmra.mrb[0].mxu0 %v2000
        %v2002 = vpop.f32.mrb[0].mxu0
        %v2003 = vadd.f32 %v1866, %v2002
        %v2004 = vpop.f32.mrb[0].mxu0
        %v2005 = vadd.f32 %v1868, %v2004
        %2006 = vmatprep.mubr.f32.mxu0 0.0
        %v2007 = vand.u32 %v208, 4294901760
        %2008 = vmatmul.mubr.f32.gmra.mrb[0].mxu0 %v2007
        %v2009 = vpop.f32.mrb[0].mxu0
        %v2010 = vadd.f32 %v1873, %v2009
        %v2011 = vpop.f32.mrb[0].mxu0
        %v2012 = vadd.f32 %v1875, %v2011
        %2013 = vmatprep.mubr.f32.mxu0 0.0
        %v2014 = vand.u32 %v211, 4294901760
        %2015 = vmatmul.mubr.f32.gmra.mrb[0].mxu0 %v2014
        %v2016 = vpop.f32.mrb[0].mxu0
        %v2017 = vadd.f32 %v1880, %v2016
        %v2018 = vpop.f32.mrb[0].mxu0
        %v2019 = vadd.f32 %v1882, %v2018
        %2020 = vmatprep.mubr.f32.mxu0 0.0
        %v2021 = vand.u32 %v214, 4294901760
        %2022 = vmatmul.mubr.f32.gmra.mrb[0].mxu0 %v2021
        %v2023 = vpop.f32.mrb[0].mxu0
        %v2024 = vadd.f32 %v1887, %v2023
        %v2025 = vpop.f32.mrb[0].mxu0
        %v2026 = vadd.f32 %v1889, %v2025
        %2027 = vdwg.mxu0
        %vm2028 = vcmp.ge.f32.partialorder %v1055, 0.0
        %vm2029 = vcmp.ge.f32.partialorder %v1062, 0.0
        %vm2030 = vcmp.ge.f32.partialorder %v1069, 0.0
        %vm2031 = vcmp.ge.f32.partialorder %v1076, 0.0
        %vm2032 = vcmp.ge.f32.partialorder %v1083, 0.0
        %vm2033 = vcmp.ge.f32.partialorder %v1090, 0.0
        %vm2034 = vcmp.ge.f32.partialorder %v1097, 0.0
        %vm2035 = vcmp.ge.f32.partialorder %v1104, 0.0
        %vm2036 = vcmp.ge.f32.partialorder %v1111, 0.0
        %vm2037 = vcmp.ge.f32.partialorder %v1118, 0.0
        %vm2038 = vcmp.ge.f32.partialorder %v1057, 0.0
        %vm2039 = vcmp.ge.f32.partialorder %v1064, 0.0
        %vm2040 = vcmp.ge.f32.partialorder %v1071, 0.0
        %vm2041 = vcmp.ge.f32.partialorder %v1078, 0.0
        %vm2042 = vcmp.ge.f32.partialorder %v1085, 0.0
        %vm2043 = vcmp.ge.f32.partialorder %v1092, 0.0
        %vm2044 = vcmp.ge.f32.partialorder %v1099, 0.0
        %vm2045 = vcmp.ge.f32.partialorder %v1106, 0.0
        %vm2046 = vcmp.ge.f32.partialorder %v1113, 0.0
        %vm2047 = vcmp.ge.f32.partialorder %v1120, 0.0
        %vm2048 = vmand %vm2028, %vm2038
        %vm2049 = vmand %vm2029, %vm2039
        %vm2050 = vmand %vm2030, %vm2040
        %vm2051 = vmand %vm2031, %vm2041
        %vm2052 = vmand %vm2032, %vm2042
        %vm2053 = vmand %vm2033, %vm2043
        %vm2054 = vmand %vm2034, %vm2044
        %vm2055 = vmand %vm2035, %vm2045
        %vm2056 = vmand %vm2036, %vm2046
        %vm2057 = vmand %vm2037, %vm2047
        %vm2058 = vcmp.ge.f32.partialorder %v1961, 0.0
        %vm2059 = vcmp.ge.f32.partialorder %v1968, 0.0
        %vm2060 = vcmp.ge.f32.partialorder %v1975, 0.0
        %vm2061 = vcmp.ge.f32.partialorder %v1982, 0.0
        %vm2062 = vcmp.ge.f32.partialorder %v1989, 0.0
        %vm2063 = vcmp.ge.f32.partialorder %v1996, 0.0
        %vm2064 = vcmp.ge.f32.partialorder %v2003, 0.0
        %vm2065 = vcmp.ge.f32.partialorder %v2010, 0.0
        %vm2066 = vcmp.ge.f32.partialorder %v2017, 0.0
        %vm2067 = vcmp.ge.f32.partialorder %v2024, 0.0
        %vm2068 = vmand %vm2048, %vm2058
        %vm2069 = vmand %vm2049, %vm2059
        %vm2070 = vmand %vm2050, %vm2060
        %vm2071 = vmand %vm2051, %vm2061
        %vm2072 = vmand %vm2052, %vm2062
        %vm2073 = vmand %vm2053, %vm2063
        %vm2074 = vmand %vm2054, %vm2064
        %vm2075 = vmand %vm2055, %vm2065
        %vm2076 = vmand %vm2056, %vm2066
        %vm2077 = vmand %vm2057, %vm2067
        %v2078 = vld [vmem:[%s2] sm:$0x1]
        %v2080 = vlaneseq
        %v2081 = vshrl.u32 %v2080, 7
        %v2082 = vsub.s32 0, %v2081
        %v2083 = vrot.slane %v2078, %v2082
        %v2085 = vsel %vm2068, %v2083, 0.0
        %v2086 = vsel %vm2069, %v2083, 0.0
        %v2087 = vsel %vm2070, %v2083, 0.0
        %v2088 = vsel %vm2071, %v2083, 0.0
        %v2089 = vsel %vm2072, %v2083, 0.0
        %v2090 = vsel %vm2073, %v2083, 0.0
        %v2091 = vsel %vm2074, %v2083, 0.0
        %v2092 = vsel %vm2075, %v2083, 0.0
        %v2093 = vsel %vm2076, %v2083, 0.0
        %v2094 = vsel %vm2077, %v2083, 0.0
        %2095 = vmin.xlane.f32.xlu0 %v1963
        %v2096 = vpop.xlane.xlu0 %2095
        %2097 = vmin.xlane.f32.xlu0 %v1970
        %v2098 = vpop.xlane.xlu0 %2097
        %2099 = vmin.xlane.f32.xlu0 %v1977
        %v2100 = vpop.xlane.xlu0 %2099
        %2101 = vmin.xlane.f32.xlu0 %v1984
        %v2102 = vpop.xlane.xlu0 %2101
        %2103 = vmin.xlane.f32.xlu0 %v1991
        %v2104 = vpop.xlane.xlu0 %2103
        %2105 = vmin.xlane.f32.xlu0 %v1998
        %v2106 = vpop.xlane.xlu0 %2105
        %2107 = vmin.xlane.f32.xlu0 %v2005
        %v2108 = vpop.xlane.xlu0 %2107
        %2109 = vmin.xlane.f32.xlu0 %v2012
        %v2110 = vpop.xlane.xlu0 %2109
        %2111 = vmin.xlane.f32.xlu0 %v2019
        %v2112 = vpop.xlane.xlu0 %2111
        %2113 = vmin.xlane.f32.xlu0 %v2026
        %v2114 = vpop.xlane.xlu0 %2113
        %vm2115 = vcmp.le.f32.partialorder %v1963, %v2096
        %vm2116 = vcmp.le.f32.partialorder %v1970, %v2098
        %vm2117 = vcmp.le.f32.partialorder %v1977, %v2100
        %vm2118 = vcmp.le.f32.partialorder %v1984, %v2102
        %vm2119 = vcmp.le.f32.partialorder %v1991, %v2104
        %vm2120 = vcmp.le.f32.partialorder %v1998, %v2106
        %vm2121 = vcmp.le.f32.partialorder %v2005, %v2108
        %vm2122 = vcmp.le.f32.partialorder %v2012, %v2110
        %vm2123 = vcmp.le.f32.partialorder %v2019, %v2112
        %vm2124 = vcmp.le.f32.partialorder %v2026, %v2114
        %v2125 = vsel %vm2115, inf, %v1963
        %v2126 = vsel %vm2116, inf, %v1970
        %v2127 = vsel %vm2117, inf, %v1977
        %v2128 = vsel %vm2118, inf, %v1984
        %v2129 = vsel %vm2119, inf, %v1991
        %v2130 = vsel %vm2120, inf, %v1998
        %v2131 = vsel %vm2121, inf, %v2005
        %v2132 = vsel %vm2122, inf, %v2012
        %v2133 = vsel %vm2123, inf, %v2019
        %v2134 = vsel %vm2124, inf, %v2026
        %2135 = vmin.xlane.f32.xlu0 %v2125
        %v2136 = vpop.xlane.xlu0 %2135
        %2137 = vmin.xlane.f32.xlu0 %v2126
        %v2138 = vpop.xlane.xlu0 %2137
        %2139 = vmin.xlane.f32.xlu0 %v2127
        %v2140 = vpop.xlane.xlu0 %2139
        %2141 = vmin.xlane.f32.xlu0 %v2128
        %v2142 = vpop.xlane.xlu0 %2141
        %2143 = vmin.xlane.f32.xlu0 %v2129
        %v2144 = vpop.xlane.xlu0 %2143
        %2145 = vmin.xlane.f32.xlu0 %v2130
        %v2146 = vpop.xlane.xlu0 %2145
        %2147 = vmin.xlane.f32.xlu0 %v2131
        %v2148 = vpop.xlane.xlu0 %2147
        %2149 = vmin.xlane.f32.xlu0 %v2132
        %v2150 = vpop.xlane.xlu0 %2149
        %2151 = vmin.xlane.f32.xlu0 %v2133
        %v2152 = vpop.xlane.xlu0 %2151
        %2153 = vmin.xlane.f32.xlu0 %v2134
        %v2154 = vpop.xlane.xlu0 %2153
        %vm2155 = vcmp.le.f32.partialorder %v2125, %v2136
        %vm2156 = vcmp.le.f32.partialorder %v2126, %v2138
        %vm2157 = vcmp.le.f32.partialorder %v2127, %v2140
        %vm2158 = vcmp.le.f32.partialorder %v2128, %v2142
        %vm2159 = vcmp.le.f32.partialorder %v2129, %v2144
        %vm2160 = vcmp.le.f32.partialorder %v2130, %v2146
        %vm2161 = vcmp.le.f32.partialorder %v2131, %v2148
        %vm2162 = vcmp.le.f32.partialorder %v2132, %v2150
        %vm2163 = vcmp.le.f32.partialorder %v2133, %v2152
        %vm2164 = vcmp.le.f32.partialorder %v2134, %v2154
        %v2165 = vsel %vm2155, inf, %v2125
        %v2166 = vsel %vm2156, inf, %v2126
        %v2167 = vsel %vm2157, inf, %v2127
        %v2168 = vsel %vm2158, inf, %v2128
        %v2169 = vsel %vm2159, inf, %v2129
        %v2170 = vsel %vm2160, inf, %v2130
        %v2171 = vsel %vm2161, inf, %v2131
        %v2172 = vsel %vm2162, inf, %v2132
        %v2173 = vsel %vm2163, inf, %v2133
        %v2174 = vsel %vm2164, inf, %v2134
        %2175 = vmin.xlane.f32.xlu0 %v2165
        %v2176 = vpop.xlane.xlu0 %2175
        %2177 = vmin.xlane.f32.xlu0 %v2166
        %v2178 = vpop.xlane.xlu0 %2177
        %2179 = vmin.xlane.f32.xlu0 %v2167
        %v2180 = vpop.xlane.xlu0 %2179
        %2181 = vmin.xlane.f32.xlu0 %v2168
        %v2182 = vpop.xlane.xlu0 %2181
        %2183 = vmin.xlane.f32.xlu0 %v2169
        %v2184 = vpop.xlane.xlu0 %2183
        %2185 = vmin.xlane.f32.xlu0 %v2170
        %v2186 = vpop.xlane.xlu0 %2185
        %2187 = vmin.xlane.f32.xlu0 %v2171
        %v2188 = vpop.xlane.xlu0 %2187
        %2189 = vmin.xlane.f32.xlu0 %v2172
        %v2190 = vpop.xlane.xlu0 %2189
        %2191 = vmin.xlane.f32.xlu0 %v2173
        %v2192 = vpop.xlane.xlu0 %2191
        %2193 = vmin.xlane.f32.xlu0 %v2174
        %v2194 = vpop.xlane.xlu0 %2193
        %vm2195 = vcmp.le.f32.partialorder %v2165, %v2176
        %vm2196 = vcmp.le.f32.partialorder %v2166, %v2178
        %vm2197 = vcmp.le.f32.partialorder %v2167, %v2180
        %vm2198 = vcmp.le.f32.partialorder %v2168, %v2182
        %vm2199 = vcmp.le.f32.partialorder %v2169, %v2184
        %vm2200 = vcmp.le.f32.partialorder %v2170, %v2186
        %vm2201 = vcmp.le.f32.partialorder %v2171, %v2188
        %vm2202 = vcmp.le.f32.partialorder %v2172, %v2190
        %vm2203 = vcmp.le.f32.partialorder %v2173, %v2192
        %vm2204 = vcmp.le.f32.partialorder %v2174, %v2194
        %v2205 = vsel %vm2195, inf, %v2165
        %v2206 = vsel %vm2196, inf, %v2166
        %v2207 = vsel %vm2197, inf, %v2167
        %v2208 = vsel %vm2198, inf, %v2168
        %v2209 = vsel %vm2199, inf, %v2169
        %v2210 = vsel %vm2200, inf, %v2170
        %v2211 = vsel %vm2201, inf, %v2171
        %v2212 = vsel %vm2202, inf, %v2172
        %v2213 = vsel %vm2203, inf, %v2173
        %v2214 = vsel %vm2204, inf, %v2174
        %2215 = vmin.xlane.f32.xlu0 %v2205
        %v2216 = vpop.xlane.xlu0 %2215
        %2217 = vmin.xlane.f32.xlu0 %v2206
        %v2218 = vpop.xlane.xlu0 %2217
        %2219 = vmin.xlane.f32.xlu0 %v2207
        %v2220 = vpop.xlane.xlu0 %2219
        %2221 = vmin.xlane.f32.xlu0 %v2208
        %v2222 = vpop.xlane.xlu0 %2221
        %2223 = vmin.xlane.f32.xlu0 %v2209
        %v2224 = vpop.xlane.xlu0 %2223
        %2225 = vmin.xlane.f32.xlu0 %v2210
        %v2226 = vpop.xlane.xlu0 %2225
        %2227 = vmin.xlane.f32.xlu0 %v2211
        %v2228 = vpop.xlane.xlu0 %2227
        %2229 = vmin.xlane.f32.xlu0 %v2212
        %v2230 = vpop.xlane.xlu0 %2229
        %2231 = vmin.xlane.f32.xlu0 %v2213
        %v2232 = vpop.xlane.xlu0 %2231
        %2233 = vmin.xlane.f32.xlu0 %v2214
        %v2234 = vpop.xlane.xlu0 %2233
        %vm2235 = vcmp.le.f32.partialorder %v2205, %v2216
        %vm2236 = vcmp.le.f32.partialorder %v2206, %v2218
        %vm2237 = vcmp.le.f32.partialorder %v2207, %v2220
        %vm2238 = vcmp.le.f32.partialorder %v2208, %v2222
        %vm2239 = vcmp.le.f32.partialorder %v2209, %v2224
        %vm2240 = vcmp.le.f32.partialorder %v2210, %v2226
        %vm2241 = vcmp.le.f32.partialorder %v2211, %v2228
        %vm2242 = vcmp.le.f32.partialorder %v2212, %v2230
        %vm2243 = vcmp.le.f32.partialorder %v2213, %v2232
        %vm2244 = vcmp.le.f32.partialorder %v2214, %v2234
        %v2245 = vsel %vm2235, inf, %v2205
        %v2246 = vsel %vm2236, inf, %v2206
        %v2247 = vsel %vm2237, inf, %v2207
        %v2248 = vsel %vm2238, inf, %v2208
        %v2249 = vsel %vm2239, inf, %v2209
        %v2250 = vsel %vm2240, inf, %v2210
        %v2251 = vsel %vm2241, inf, %v2211
        %v2252 = vsel %vm2242, inf, %v2212
        %v2253 = vsel %vm2243, inf, %v2213
        %v2254 = vsel %vm2244, inf, %v2214
        %2255 = vmin.xlane.f32.xlu0 %v2245
        %v2256 = vpop.xlane.xlu0 %2255
        %2257 = vmin.xlane.f32.xlu0 %v2246
        %v2258 = vpop.xlane.xlu0 %2257
        %2259 = vmin.xlane.f32.xlu0 %v2247
        %v2260 = vpop.xlane.xlu0 %2259
        %2261 = vmin.xlane.f32.xlu0 %v2248
        %v2262 = vpop.xlane.xlu0 %2261
        %2263 = vmin.xlane.f32.xlu0 %v2249
        %v2264 = vpop.xlane.xlu0 %2263
        %2265 = vmin.xlane.f32.xlu0 %v2250
        %v2266 = vpop.xlane.xlu0 %2265
        %2267 = vmin.xlane.f32.xlu0 %v2251
        %v2268 = vpop.xlane.xlu0 %2267
        %2269 = vmin.xlane.f32.xlu0 %v2252
        %v2270 = vpop.xlane.xlu0 %2269
        %2271 = vmin.xlane.f32.xlu0 %v2253
        %v2272 = vpop.xlane.xlu0 %2271
        %2273 = vmin.xlane.f32.xlu0 %v2254
        %v2274 = vpop.xlane.xlu0 %2273
        %vm2275 = vcmp.le.f32.partialorder %v1963, %v2256
        %vm2276 = vcmp.le.f32.partialorder %v1970, %v2258
        %vm2277 = vcmp.le.f32.partialorder %v1977, %v2260
        %vm2278 = vcmp.le.f32.partialorder %v1984, %v2262
        %vm2279 = vcmp.le.f32.partialorder %v1991, %v2264
        %vm2280 = vcmp.le.f32.partialorder %v1998, %v2266
        %vm2281 = vcmp.le.f32.partialorder %v2005, %v2268
        %vm2282 = vcmp.le.f32.partialorder %v2012, %v2270
        %vm2283 = vcmp.le.f32.partialorder %v2019, %v2272
        %vm2284 = vcmp.le.f32.partialorder %v2026, %v2274
        %v2285 = vsel %vm2275, %v2085, 0.0
        %v2286 = vsel %vm2276, %v2086, 0.0
        %v2287 = vsel %vm2277, %v2087, 0.0
        %v2288 = vsel %vm2278, %v2088, 0.0
        %v2289 = vsel %vm2279, %v2089, 0.0
        %v2290 = vsel %vm2280, %v2090, 0.0
        %v2291 = vsel %vm2281, %v2091, 0.0
        %v2292 = vsel %vm2282, %v2092, 0.0
        %v2293 = vsel %vm2283, %v2093, 0.0
        %v2294 = vsel %vm2284, %v2094, 0.0
        %2295 = vadd.xlane.f32.xlu0 %v2285
        %v2296 = vpop.xlane.xlu0 %2295
        %2297 = vadd.xlane.f32.xlu0 %v2286
        %v2298 = vpop.xlane.xlu0 %2297
        %2299 = vadd.xlane.f32.xlu0 %v2287
        %v2300 = vpop.xlane.xlu0 %2299
        %2301 = vadd.xlane.f32.xlu0 %v2288
        %v2302 = vpop.xlane.xlu0 %2301
        %2303 = vadd.xlane.f32.xlu0 %v2289
        %v2304 = vpop.xlane.xlu0 %2303
        %2305 = vadd.xlane.f32.xlu0 %v2290
        %v2306 = vpop.xlane.xlu0 %2305
        %2307 = vadd.xlane.f32.xlu0 %v2291
        %v2308 = vpop.xlane.xlu0 %2307
        %2309 = vadd.xlane.f32.xlu0 %v2292
        %v2310 = vpop.xlane.xlu0 %2309
        %2311 = vadd.xlane.f32.xlu0 %v2293
        %v2312 = vpop.xlane.xlu0 %2311
        %2313 = vadd.xlane.f32.xlu0 %v2294
        %v2314 = vpop.xlane.xlu0 %2313
        %v2315 = vmul.f32 %v2296, %v171
        %v2316 = vmul.f32 %v2298, %v172
        %v2317 = vmul.f32 %v2300, %v173
        %v2318 = vmul.f32 %v2302, %v174
        %v2319 = vmul.f32 %v2304, %v175
        %v2320 = vmul.f32 %v2306, %v176
        %v2321 = vmul.f32 %v2308, %v177
        %v2322 = vmul.f32 %v2310, %v178
        %v2323 = vmul.f32 %v2312, %v179
        %v2324 = vmul.f32 %v2314, %v180
        %2335 = vrot.lane.b32.xlu0 %v2315, 125
        %v2336 = vpop.permute.xlu0 %2335
        %2337 = vrot.lane.b32.xlu0 %v2316, 125
        %v2338 = vpop.permute.xlu0 %2337
        %2339 = vrot.lane.b32.xlu0 %v2317, 125
        %v2340 = vpop.permute.xlu0 %2339
        %2341 = vrot.lane.b32.xlu0 %v2318, 125
        %v2342 = vpop.permute.xlu0 %2341
        %2343 = vrot.lane.b32.xlu0 %v2319, 125
        %v2344 = vpop.permute.xlu0 %2343
        %2345 = vrot.lane.b32.xlu0 %v2320, 125
        %v2346 = vpop.permute.xlu0 %2345
        %2347 = vrot.lane.b32.xlu0 %v2321, 125
        %v2348 = vpop.permute.xlu0 %2347
        %2349 = vrot.lane.b32.xlu0 %v2322, 125
        %v2350 = vpop.permute.xlu0 %2349
        %2351 = vrot.lane.b32.xlu0 %v2323, 125
        %v2352 = vpop.permute.xlu0 %2351
        %2353 = vrot.lane.b32.xlu0 %v2324, 125
        %v2354 = vpop.permute.xlu0 %2353
        %vm2365 = vcmask 7168
        %v2366 = vsel %vm2365, %v2336, 0.0
        %v2367 = vsel %vm2365, %v2338, 0.0
        %v2368 = vadd.f32 %v2366, %v2367
        %v2369 = vsel %vm2365, %v2340, 0.0
        %v2370 = vadd.f32 %v2368, %v2369
        %v2371 = vsel %vm2365, %v2342, 0.0
        %v2372 = vadd.f32 %v2370, %v2371
        %v2373 = vsel %vm2365, %v2344, 0.0
        %v2374 = vadd.f32 %v2372, %v2373
        %v2375 = vsel %vm2365, %v2346, 0.0
        %v2376 = vadd.f32 %v2374, %v2375
        %v2377 = vsel %vm2365, %v2348, 0.0
        %v2378 = vadd.f32 %v2376, %v2377
        %v2379 = vsel %vm2365, %v2350, 0.0
        %v2380 = vadd.f32 %v2378, %v2379
        %v2381 = vsel %vm2365, %v2352, 0.0
        %v2382 = vadd.f32 %v2380, %v2381
        %v2383 = vsel %vm2365, %v2354, 0.0
        %v2384 = vadd.f32 %v2382, %v2383
        %2385 = vadd.xlane.f32.xlu0 %v2384
        %v2386 = vpop.xlane.xlu0 %2385
        %v2387 = vrot.slane %v2386, 4
        %v2388 = vadd.f32 %v2386, %v2387
        %v2389 = vrot.slane %v2388, 2
        %v2390 = vadd.f32 %v2388, %v2389
        %v2391 = vrot.slane %v2390, 1
        %v2392 = vadd.f32 %v2390, %v2391
        %s2393 = vtos %v2392
        %v2394 = vstv %s2393
        %2395 = vst [vmem:[%s164] sm:$0xff] %v2394
        %s2396 = sand.u32 %s93, 1
        %s2397 = scalar_lea.sflag [#allocation3], %s2396
        %s2398 = sand.u32 %s93, 1
        %s2399 = smul.addr %s2398, 8
        %s2400 = scalar_lea.vmem [#allocation2], %s2399
        // Predicated region
        $region33: #{tpu_custom_call.1} parent=31 // pred_check
          %p2401 = pneg %p103
        $region34: #{tpu_custom_call.1} parent=31 // pred_check_branch
          %2403 = sbr.rel (%p2401) target = $region36
        $region35: #{tpu_custom_call.1} parent=31 // pred_region
          %s2405 = ssub.s32 128, 128
          %2406 = vsyncadd %s2397, %s2405
          %s2407 = smul.addr %s17, 128
          %s2408 = scalar_lea.hbm %s3, %s2407
          %s2410 = sshll.u32 %s2400, 4
          %s2411 = int_to_ptr.vmem [resolvable:$true] %s2410
          %2413 = dma.vmem_to_hbm [thread:$0]  %s2411, 128, %s2408, %s2397
        $region36: #{tpu_custom_call.1} parent=31 // pred_fallthru
          _
      $region32: #{tpu_custom_call.1} parent=5 // pred_fallthru
        _
      %p2414 = scmp.le.s32.totalorder 2, %s12
      // Predicated region
      $region37: #{tpu_custom_call.1} parent=5 // pred_check
        %p2415 = pneg %p2414
      $region38: #{tpu_custom_call.1} parent=5 // pred_check_branch
        %2417 = sbr.rel (%p2415) target = $region40
      $region39: #{tpu_custom_call.1} parent=5 // pred_region
        %s2418 = ssub.s32 %s12, 2
        // Predicated region
        $region41: #{tpu_custom_call.1} parent=39 // pred_check
          %p2419 = pneg %p109
        $region42: #{tpu_custom_call.1} parent=39 // pred_check_branch
          %2421 = sbr.rel (%p2419) target = $region44
        $region43: #{tpu_custom_call.1} parent=39 // pred_region
          %s2422 = sand.u32 %s94, 1
          %s2423 = scalar_lea.sflag [#allocation3], %s2422
          %s2424 = sand.u32 %s94, 1
          %s2425 = smul.addr %s2424, 8
          %s2426 = scalar_lea.vmem [#allocation2], %s2425
          %2427 = dma.done %s2423, 128
        $region44: #{tpu_custom_call.1} parent=39 // pred_fallthru
          _
      $region40: #{tpu_custom_call.1} parent=5 // pred_fallthru
        _
    $region6: #{tpu_custom_call.1} parent=1 // loop_footer
      %s16 = sadd.s32 1, %s12
    $region7: #{tpu_custom_call.1} parent=1 // loop_footer_branch
      %11 = sbr.rel target = $region3
    $region8: #{tpu_custom_call.1} parent=1 // loop_exit
      _
    %2428 = vsyncpa [#allocation3], 1
    %s2429 = scalar_lea.sflag [#allocation3], 1
    %2430 = vsyncpa %s2429, 1

</llo_original>
